<compile_context>
chip_gen: v7x
topology: tpu7x:2x2x1
jax: 0.10.0
libtpu: 0.0.40
codegen_flags: <defaults>
</compile_context>

<pallas_src>
import numpy as np
from functools import partial

import jax
import jax.numpy as jnp
from jax.experimental import pallas as pl
from jax.experimental.pallas import tpu as pltpu


# ----------------------------------------------------------------------------
# Static setup (host python): exact index mixing of
#   nn.Unfold(kernel_size=s)(te_mid).view(B, M, sum**2, s**2)
# Group `a` (dim 2 of the view) gathers the listed (dh, dw) offsets of the
# k*k patch; torch's max/min reduction runs over dim 3 (the `e` axis).
# ----------------------------------------------------------------------------
def build_groups(k, s):
    summ = k - s + 1
    gn = summ * summ
    ss = s * s
    groups = []
    for a in range(gn):
        offs = []
        for e in range(ss):
            flat = a * ss + e              # flat pos inside the (sum^2, s^2) view
            j, l = flat // gn, flat % gn   # (within-window pos, window idx) of unfold
            u, v = j // s, j % s
            p, q = l // summ, l % summ
            offs.append((p + u, q + v))    # offset inside the k*k patch
        groups.append(list(dict.fromkeys(offs)))   # dedup ok: max/min idempotent
    return groups


# ----------------------------------------------------------------------------
# Fused kernel: fractal estimate + (+x) + 1x1 conv, all lane-dense.
# ----------------------------------------------------------------------------
def _make_kernel(k, s_list, groups_per_s, H):
    pad = k // 2
    inv_nblocks = 1.0 / float(len(s_list))
    # NOTE: the reference also accumulates w_r = sum(log(k/s)) but never uses it.
    # TODO(synk): w_r is dead code in the PyTorch forward; intentionally omitted.

    def kernel(xsh_ref, wmix_ref, bias_ref, out_ref):
        # xsh_ref : (k, Hp, L) f32 ; xsh[dw, hp, (b,c,w)] = xpad[b, c, hp, w+dw]
        # wmix_ref: (L, L)  f32    ; I_B (x) conv_w.T (x) I_W  (lane mixing)
        # bias_ref: (1, L)  f32    ; bias[o] broadcast onto the (b,o,w) lane axis
        # out_ref : (H, L)  f32
        def window(dh, dw):                 # (H, L): sublane-offset, lane-dense read
            return xsh_ref[dw, dh:dh + H, :]

        ws = None
        for s, groups in zip(s_list, groups_per_s):
            scale = float(k) / float(s)
            gn = float(len(groups))
            acc = None                      # sum_a (max_a - min_a)
            for offs in groups:
                mx = window(*offs[0])
                mn = mx
                for od in offs[1:]:
                    v = window(*od)
                    mx = jnp.maximum(mx, v)
                    mn = jnp.minimum(mn, v)
                d = mx - mn
                acc = d if acc is None else acc + d
            # hoisted: sum_a[(max-min)*scale + 1] == scale*acc + gn
            lg = jnp.log(acc * scale + gn)
            ws = lg if ws is None else ws + lg

        z = ws * inv_nblocks + window(pad, pad)        # + x (centre of the patch)
        out_ref[...] = jnp.dot(
            z, wmix_ref[...],
            preferred_element_type=jnp.float32,
            precision=jax.lax.Precision.HIGHEST,
        ) + bias_ref[...]

    return kernel


# ----------------------------------------------------------------------------
# Wrapper: layout plumbing + pallas_call
# ----------------------------------------------------------------------------
@partial(jax.jit, static_argnums=1)
def frat_piror_forward(x, kernel_size, conv_w, conv_b):
    k = kernel_size
    B, C, H, W = x.shape
    assert k % 2 == 1, "odd kernel_size so unfold output spatial == image size"
    pad = k // 2
    s_list = list(range(2, k // 2 + 1))
    assert len(s_list) >= 1, "need kernel_size >= 5 for a non-empty Fratseq"
    Hp = H + 2 * pad
    L = B * C * W

    xf = x.astype(jnp.float32)
    # Layout plumbing: zero-pad, pre-shift along w (k slabs), pack (b,c,w) onto
    # the lane axis.  HBM traffic ~k x input (<< the 49x of a full unfold).
    xp = jnp.pad(xf, ((0, 0), (0, 0), (pad, pad), (pad, pad)))       # (B,C,Hp,Wp)
    xsh = jnp.stack([xp[:, :, :, dw:dw + W] for dw in range(k)], axis=0)  # (k,B,C,Hp,W)
    xsh = jnp.transpose(xsh, (0, 3, 1, 2, 4)).reshape(k, Hp, L)      # (k,Hp,L)

    # 1x1 conv as a lane-mixing matmul: out[h,(b,o,w)] = sum_c W[o,c] z[h,(b,c,w)]
    wmix = jnp.kron(jnp.kron(jnp.eye(B, dtype=jnp.float32),
                             conv_w.astype(jnp.float32).T),
                    jnp.eye(W, dtype=jnp.float32))                   # (L, L)
    bias_lane = jnp.tile(jnp.repeat(conv_b.astype(jnp.float32), W), B).reshape(1, L)

    groups_per_s = [build_groups(k, s) for s in s_list]
    kern = _make_kernel(k, s_list, groups_per_s, H)

    out = pl.pallas_call(
        kern,
        out_shape=jax.ShapeDtypeStruct((H, L), jnp.float32),
        grid=(1,),   # single step: whole problem fits VMEM; see TODO above for scale
        in_specs=[
            pl.BlockSpec((k, Hp, L), lambda i: (0, 0, 0)),
            pl.BlockSpec((L, L), lambda i: (0, 0)),
            pl.BlockSpec((1, L), lambda i: (0, 0)),
        ],
        out_specs=pl.BlockSpec((H, L), lambda i: (0, 0)),
        compiler_params=pltpu.CompilerParams(
            dimension_semantics=("arbitrary",),
            vmem_limit_bytes=32 * 1024 * 1024,
        ),
    )(xsh, wmix, bias_lane)

    # (H, B*C*W) -> (B, C, H, W)
    return jnp.transpose(out.reshape(H, B, C, W), (1, 2, 0, 3))


# ----------------------------------------------------------------------------
# Pure-JAX reference (direct transliteration of the PyTorch module) for checking
# ----------------------------------------------------------------------------
def _unfold2d(x, ks, padding=0):
    # matches torch.nn.Unfold(kernel_size=ks, stride=1, padding=padding)
    n, c, h, w = x.shape
    xpad = jnp.pad(x, ((0, 0), (0, 0), (padding, padding), (padding, padding)))
    ho = h + 2 * padding - ks + 1
    wo = w + 2 * padding - ks + 1
    cols = []
    for dh in range(ks):
        for dw in range(ks):
            cols.append(xpad[:, :, dh:dh + ho, dw:dw + wo].reshape(n, c, ho * wo))
    out = jnp.stack(cols, axis=2)                 # (N, C, ks*ks, L)
    return out.reshape(n, c * ks * ks, ho * wo)


def reference_forward(x, k, image_size, conv_w, conv_b):
    b = x.shape[0]
    te = _unfold2d(x, k, padding=k // 2)
    te_mid = te.reshape(b, -1, k * k, image_size, image_size)
    te_mid = jnp.transpose(te_mid, (0, 1, 3, 4, 2)).reshape(b, -1, k, k)
    s_list = list(range(2, k // 2 + 1))
    w_s = 0.0
    for s in s_list:
        summ = k - s + 1
        t = _unfold2d(te_mid, s, padding=0)
        t = t.reshape(b, t.shape[1] // (s * s), summ * summ, s * s)
        tp = (t.max(axis=3) - t.min(axis=3)) / (s / k) + 1.0
        tp = tp.sum(axis=2)
        w_s = w_s + jnp.log(tp)
    w_s = w_s / len(s_list)
    z = w_s.reshape(b, -1, image_size, image_size) + x
    y = jnp.einsum('oc,bchw->bohw', conv_w, z,
                   precision=jax.lax.Precision.HIGHEST) + conv_b[None, :, None, None]
    return y


# ----------------------------------------------------------------------------
if __name__ == "__main__":
    kernel_size = 7     # -> FratPirorBlocks with s = 2, 3
    image_size = 16
    in_chans = 4
    batch = 2

    key = jax.random.PRNGKey(0)
    kx, kw, kb = jax.random.split(key, 3)
    x = jax.random.normal(kx, (batch, in_chans, image_size, image_size), jnp.float32)
    # deterministic synthetic 1x1-conv parameters (nn.Conv2d(in_chans, in_chans, 1, 1))
    conv_w = 0.1 * jax.random.normal(kw, (in_chans, in_chans), jnp.float32)
    conv_b = 0.1 * jax.random.normal(kb, (in_chans,), jnp.float32)

    out = jax.block_until_ready(frat_piror_forward(x, kernel_size, conv_w, conv_b))
    ref = jax.block_until_ready(
        reference_forward(x, kernel_size, image_size, conv_w, conv_b))

    assert out.shape == x.shape == ref.shape
    np.testing.assert_allclose(np.asarray(out), np.asarray(ref), rtol=2e-3, atol=2e-3)
    print("KERNEL_OK")
</pallas_src>

<mosaic_0001>
module attributes {stable_mosaic.version = 11 : i64} {
  func.func @kernel(%arg0: i32, %arg1: memref<7x22x128xf32, #tpu.memory_space<vmem>>, %arg2: memref<128x128xf32, #tpu.memory_space<vmem>>, %arg3: memref<1x128xf32, #tpu.memory_space<vmem>>, %arg4: memref<16x128xf32, #tpu.memory_space<vmem>>) attributes {dimension_semantics = [#tpu.dimension_semantics<arbitrary>], iteration_bounds = array<i64: 1>, scalar_prefetch = 0 : i64, scratch_operands = 0 : i64, tpu.core_type = #tpu.core_type<tc>, window_params = [{pipeline_mode = #tpu.pipeline_mode<synchronous>, transform_indices = @transform_0, window_bounds = array<i64: 7, 22, 128>}, {pipeline_mode = #tpu.pipeline_mode<synchronous>, transform_indices = @transform_1, window_bounds = array<i64: 128, 128>}, {pipeline_mode = #tpu.pipeline_mode<synchronous>, transform_indices = @transform_2, window_bounds = array<i64: 1, 128>}, {pipeline_mode = #tpu.pipeline_mode<synchronous>, transform_indices = @transform_3, window_bounds = array<i64: 16, 128>}]} {
    %c0 = arith.constant 0 : index
    %c0_0 = arith.constant 0 : index
    %c0_1 = arith.constant 0 : index
    %0 = vector.load %arg1[%c0, %c0_0, %c0_1] : memref<7x22x128xf32, #tpu.memory_space<vmem>>, vector<1x16x128xf32>
    %1 = vector.shape_cast %0 : vector<1x16x128xf32> to vector<16x128xf32>
    %c1 = arith.constant 1 : index
    %c0_2 = arith.constant 0 : index
    %c0_3 = arith.constant 0 : index
    %2 = vector.load %arg1[%c1, %c0_2, %c0_3] : memref<7x22x128xf32, #tpu.memory_space<vmem>>, vector<1x16x128xf32>
    %3 = vector.shape_cast %2 : vector<1x16x128xf32> to vector<16x128xf32>
    %4 = arith.maximumf %1, %3 : vector<16x128xf32>
    %5 = arith.minimumf %1, %3 : vector<16x128xf32>
    %c2 = arith.constant 2 : index
    %c0_4 = arith.constant 0 : index
    %c0_5 = arith.constant 0 : index
    %6 = vector.load %arg1[%c2, %c0_4, %c0_5] : memref<7x22x128xf32, #tpu.memory_space<vmem>>, vector<1x16x128xf32>
    %7 = vector.shape_cast %6 : vector<1x16x128xf32> to vector<16x128xf32>
    %8 = arith.maximumf %4, %7 : vector<16x128xf32>
    %9 = arith.minimumf %5, %7 : vector<16x128xf32>
    %c3 = arith.constant 3 : index
    %c0_6 = arith.constant 0 : index
    %c0_7 = arith.constant 0 : index
    %10 = vector.load %arg1[%c3, %c0_6, %c0_7] : memref<7x22x128xf32, #tpu.memory_space<vmem>>, vector<1x16x128xf32>
    %11 = vector.shape_cast %10 : vector<1x16x128xf32> to vector<16x128xf32>
    %12 = arith.maximumf %8, %11 : vector<16x128xf32>
    %13 = arith.minimumf %9, %11 : vector<16x128xf32>
    %14 = arith.subf %12, %13 : vector<16x128xf32>
    %c4 = arith.constant 4 : index
    %c0_8 = arith.constant 0 : index
    %c0_9 = arith.constant 0 : index
    %15 = vector.load %arg1[%c4, %c0_8, %c0_9] : memref<7x22x128xf32, #tpu.memory_space<vmem>>, vector<1x16x128xf32>
    %16 = vector.shape_cast %15 : vector<1x16x128xf32> to vector<16x128xf32>
    %c5 = arith.constant 5 : index
    %c0_10 = arith.constant 0 : index
    %c0_11 = arith.constant 0 : index
    %17 = vector.load %arg1[%c5, %c0_10, %c0_11] : memref<7x22x128xf32, #tpu.memory_space<vmem>>, vector<1x16x128xf32>
    %18 = vector.shape_cast %17 : vector<1x16x128xf32> to vector<16x128xf32>
    %19 = arith.maximumf %16, %18 : vector<16x128xf32>
    %20 = arith.minimumf %16, %18 : vector<16x128xf32>
    %c0_12 = arith.constant 0 : index
    %c1_13 = arith.constant 1 : index
    %c0_14 = arith.constant 0 : index
    %21 = vector.load %arg1[%c0_12, %c1_13, %c0_14] : memref<7x22x128xf32, #tpu.memory_space<vmem>>, vector<1x16x128xf32>
    %22 = vector.shape_cast %21 : vector<1x16x128xf32> to vector<16x128xf32>
    %23 = arith.maximumf %19, %22 : vector<16x128xf32>
    %24 = arith.minimumf %20, %22 : vector<16x128xf32>
    %c1_15 = arith.constant 1 : index
    %c1_16 = arith.constant 1 : index
    %c0_17 = arith.constant 0 : index
    %25 = vector.load %arg1[%c1_15, %c1_16, %c0_17] : memref<7x22x128xf32, #tpu.memory_space<vmem>>, vector<1x16x128xf32>
    %26 = vector.shape_cast %25 : vector<1x16x128xf32> to vector<16x128xf32>
    %27 = arith.maximumf %23, %26 : vector<16x128xf32>
    %28 = arith.minimumf %24, %26 : vector<16x128xf32>
    %29 = arith.subf %27, %28 : vector<16x128xf32>
    %30 = arith.addf %14, %29 : vector<16x128xf32>
    %c2_18 = arith.constant 2 : index
    %c1_19 = arith.constant 1 : index
    %c0_20 = arith.constant 0 : index
    %31 = vector.load %arg1[%c2_18, %c1_19, %c0_20] : memref<7x22x128xf32, #tpu.memory_space<vmem>>, vector<1x16x128xf32>
    %32 = vector.shape_cast %31 : vector<1x16x128xf32> to vector<16x128xf32>
    %c3_21 = arith.constant 3 : index
    %c1_22 = arith.constant 1 : index
    %c0_23 = arith.constant 0 : index
    %33 = vector.load %arg1[%c3_21, %c1_22, %c0_23] : memref<7x22x128xf32, #tpu.memory_space<vmem>>, vector<1x16x128xf32>
    %34 = vector.shape_cast %33 : vector<1x16x128xf32> to vector<16x128xf32>
    %35 = arith.maximumf %32, %34 : vector<16x128xf32>
    %36 = arith.minimumf %32, %34 : vector<16x128xf32>
    %c4_24 = arith.constant 4 : index
    %c1_25 = arith.constant 1 : index
    %c0_26 = arith.constant 0 : index
    %37 = vector.load %arg1[%c4_24, %c1_25, %c0_26] : memref<7x22x128xf32, #tpu.memory_space<vmem>>, vector<1x16x128xf32>
    %38 = vector.shape_cast %37 : vector<1x16x128xf32> to vector<16x128xf32>
    %39 = arith.maximumf %35, %38 : vector<16x128xf32>
    %40 = arith.minimumf %36, %38 : vector<16x128xf32>
    %c5_27 = arith.constant 5 : index
    %c1_28 = arith.constant 1 : index
    %c0_29 = arith.constant 0 : index
    %41 = vector.load %arg1[%c5_27, %c1_28, %c0_29] : memref<7x22x128xf32, #tpu.memory_space<vmem>>, vector<1x16x128xf32>
    %42 = vector.shape_cast %41 : vector<1x16x128xf32> to vector<16x128xf32>
    %43 = arith.maximumf %39, %42 : vector<16x128xf32>
    %44 = arith.minimumf %40, %42 : vector<16x128xf32>
    %45 = arith.subf %43, %44 : vector<16x128xf32>
    %46 = arith.addf %30, %45 : vector<16x128xf32>
    %c0_30 = arith.constant 0 : index
    %c2_31 = arith.constant 2 : index
    %c0_32 = arith.constant 0 : index
    %47 = vector.load %arg1[%c0_30, %c2_31, %c0_32] : memref<7x22x128xf32, #tpu.memory_space<vmem>>, vector<1x16x128xf32>
    %48 = vector.shape_cast %47 : vector<1x16x128xf32> to vector<16x128xf32>
    %c1_33 = arith.constant 1 : index
    %c2_34 = arith.constant 2 : index
    %c0_35 = arith.constant 0 : index
    %49 = vector.load %arg1[%c1_33, %c2_34, %c0_35] : memref<7x22x128xf32, #tpu.memory_space<vmem>>, vector<1x16x128xf32>
    %50 = vector.shape_cast %49 : vector<1x16x128xf32> to vector<16x128xf32>
    %51 = arith.maximumf %48, %50 : vector<16x128xf32>
    %52 = arith.minimumf %48, %50 : vector<16x128xf32>
    %c2_36 = arith.constant 2 : index
    %c2_37 = arith.constant 2 : index
    %c0_38 = arith.constant 0 : index
    %53 = vector.load %arg1[%c2_36, %c2_37, %c0_38] : memref<7x22x128xf32, #tpu.memory_space<vmem>>, vector<1x16x128xf32>
    %54 = vector.shape_cast %53 : vector<1x16x128xf32> to vector<16x128xf32>
    %55 = arith.maximumf %51, %54 : vector<16x128xf32>
    %56 = arith.minimumf %52, %54 : vector<16x128xf32>
    %c3_39 = arith.constant 3 : index
    %c2_40 = arith.constant 2 : index
    %c0_41 = arith.constant 0 : index
    %57 = vector.load %arg1[%c3_39, %c2_40, %c0_41] : memref<7x22x128xf32, #tpu.memory_space<vmem>>, vector<1x16x128xf32>
    %58 = vector.shape_cast %57 : vector<1x16x128xf32> to vector<16x128xf32>
    %59 = arith.maximumf %55, %58 : vector<16x128xf32>
    %60 = arith.minimumf %56, %58 : vector<16x128xf32>
    %61 = arith.subf %59, %60 : vector<16x128xf32>
    %62 = arith.addf %46, %61 : vector<16x128xf32>
    %c4_42 = arith.constant 4 : index
    %c2_43 = arith.constant 2 : index
    %c0_44 = arith.constant 0 : index
    %63 = vector.load %arg1[%c4_42, %c2_43, %c0_44] : memref<7x22x128xf32, #tpu.memory_space<vmem>>, vector<1x16x128xf32>
    %64 = vector.shape_cast %63 : vector<1x16x128xf32> to vector<16x128xf32>
    %c5_45 = arith.constant 5 : index
    %c2_46 = arith.constant 2 : index
    %c0_47 = arith.constant 0 : index
    %65 = vector.load %arg1[%c5_45, %c2_46, %c0_47] : memref<7x22x128xf32, #tpu.memory_space<vmem>>, vector<1x16x128xf32>
    %66 = vector.shape_cast %65 : vector<1x16x128xf32> to vector<16x128xf32>
    %67 = arith.maximumf %64, %66 : vector<16x128xf32>
    %68 = arith.minimumf %64, %66 : vector<16x128xf32>
    %c0_48 = arith.constant 0 : index
    %c3_49 = arith.constant 3 : index
    %c0_50 = arith.constant 0 : index
    %69 = vector.load %arg1[%c0_48, %c3_49, %c0_50] : memref<7x22x128xf32, #tpu.memory_space<vmem>>, vector<1x16x128xf32>
    %70 = vector.shape_cast %69 : vector<1x16x128xf32> to vector<16x128xf32>
    %71 = arith.maximumf %67, %70 : vector<16x128xf32>
    %72 = arith.minimumf %68, %70 : vector<16x128xf32>
    %c1_51 = arith.constant 1 : index
    %c3_52 = arith.constant 3 : index
    %c0_53 = arith.constant 0 : index
    %73 = vector.load %arg1[%c1_51, %c3_52, %c0_53] : memref<7x22x128xf32, #tpu.memory_space<vmem>>, vector<1x16x128xf32>
    %74 = vector.shape_cast %73 : vector<1x16x128xf32> to vector<16x128xf32>
    %75 = arith.maximumf %71, %74 : vector<16x128xf32>
    %76 = arith.minimumf %72, %74 : vector<16x128xf32>
    %77 = arith.subf %75, %76 : vector<16x128xf32>
    %78 = arith.addf %62, %77 : vector<16x128xf32>
    %c2_54 = arith.constant 2 : index
    %c3_55 = arith.constant 3 : index
    %c0_56 = arith.constant 0 : index
    %79 = vector.load %arg1[%c2_54, %c3_55, %c0_56] : memref<7x22x128xf32, #tpu.memory_space<vmem>>, vector<1x16x128xf32>
    %80 = vector.shape_cast %79 : vector<1x16x128xf32> to vector<16x128xf32>
    %c3_57 = arith.constant 3 : index
    %c3_58 = arith.constant 3 : index
    %c0_59 = arith.constant 0 : index
    %81 = vector.load %arg1[%c3_57, %c3_58, %c0_59] : memref<7x22x128xf32, #tpu.memory_space<vmem>>, vector<1x16x128xf32>
    %82 = vector.shape_cast %81 : vector<1x16x128xf32> to vector<16x128xf32>
    %83 = arith.maximumf %80, %82 : vector<16x128xf32>
    %84 = arith.minimumf %80, %82 : vector<16x128xf32>
    %c4_60 = arith.constant 4 : index
    %c3_61 = arith.constant 3 : index
    %c0_62 = arith.constant 0 : index
    %85 = vector.load %arg1[%c4_60, %c3_61, %c0_62] : memref<7x22x128xf32, #tpu.memory_space<vmem>>, vector<1x16x128xf32>
    %86 = vector.shape_cast %85 : vector<1x16x128xf32> to vector<16x128xf32>
    %87 = arith.maximumf %83, %86 : vector<16x128xf32>
    %88 = arith.minimumf %84, %86 : vector<16x128xf32>
    %c5_63 = arith.constant 5 : index
    %c3_64 = arith.constant 3 : index
    %c0_65 = arith.constant 0 : index
    %89 = vector.load %arg1[%c5_63, %c3_64, %c0_65] : memref<7x22x128xf32, #tpu.memory_space<vmem>>, vector<1x16x128xf32>
    %90 = vector.shape_cast %89 : vector<1x16x128xf32> to vector<16x128xf32>
    %91 = arith.maximumf %87, %90 : vector<16x128xf32>
    %92 = arith.minimumf %88, %90 : vector<16x128xf32>
    %93 = arith.subf %91, %92 : vector<16x128xf32>
    %94 = arith.addf %78, %93 : vector<16x128xf32>
    %c0_66 = arith.constant 0 : index
    %c4_67 = arith.constant 4 : index
    %c0_68 = arith.constant 0 : index
    %95 = vector.load %arg1[%c0_66, %c4_67, %c0_68] : memref<7x22x128xf32, #tpu.memory_space<vmem>>, vector<1x16x128xf32>
    %96 = vector.shape_cast %95 : vector<1x16x128xf32> to vector<16x128xf32>
    %c1_69 = arith.constant 1 : index
    %c4_70 = arith.constant 4 : index
    %c0_71 = arith.constant 0 : index
    %97 = vector.load %arg1[%c1_69, %c4_70, %c0_71] : memref<7x22x128xf32, #tpu.memory_space<vmem>>, vector<1x16x128xf32>
    %98 = vector.shape_cast %97 : vector<1x16x128xf32> to vector<16x128xf32>
    %99 = arith.maximumf %96, %98 : vector<16x128xf32>
    %100 = arith.minimumf %96, %98 : vector<16x128xf32>
    %c2_72 = arith.constant 2 : index
    %c4_73 = arith.constant 4 : index
    %c0_74 = arith.constant 0 : index
    %101 = vector.load %arg1[%c2_72, %c4_73, %c0_74] : memref<7x22x128xf32, #tpu.memory_space<vmem>>, vector<1x16x128xf32>
    %102 = vector.shape_cast %101 : vector<1x16x128xf32> to vector<16x128xf32>
    %103 = arith.maximumf %99, %102 : vector<16x128xf32>
    %104 = arith.minimumf %100, %102 : vector<16x128xf32>
    %c3_75 = arith.constant 3 : index
    %c4_76 = arith.constant 4 : index
    %c0_77 = arith.constant 0 : index
    %105 = vector.load %arg1[%c3_75, %c4_76, %c0_77] : memref<7x22x128xf32, #tpu.memory_space<vmem>>, vector<1x16x128xf32>
    %106 = vector.shape_cast %105 : vector<1x16x128xf32> to vector<16x128xf32>
    %107 = arith.maximumf %103, %106 : vector<16x128xf32>
    %108 = arith.minimumf %104, %106 : vector<16x128xf32>
    %109 = arith.subf %107, %108 : vector<16x128xf32>
    %110 = arith.addf %94, %109 : vector<16x128xf32>
    %c4_78 = arith.constant 4 : index
    %c4_79 = arith.constant 4 : index
    %c0_80 = arith.constant 0 : index
    %111 = vector.load %arg1[%c4_78, %c4_79, %c0_80] : memref<7x22x128xf32, #tpu.memory_space<vmem>>, vector<1x16x128xf32>
    %112 = vector.shape_cast %111 : vector<1x16x128xf32> to vector<16x128xf32>
    %c5_81 = arith.constant 5 : index
    %c4_82 = arith.constant 4 : index
    %c0_83 = arith.constant 0 : index
    %113 = vector.load %arg1[%c5_81, %c4_82, %c0_83] : memref<7x22x128xf32, #tpu.memory_space<vmem>>, vector<1x16x128xf32>
    %114 = vector.shape_cast %113 : vector<1x16x128xf32> to vector<16x128xf32>
    %115 = arith.maximumf %112, %114 : vector<16x128xf32>
    %116 = arith.minimumf %112, %114 : vector<16x128xf32>
    %c0_84 = arith.constant 0 : index
    %c5_85 = arith.constant 5 : index
    %c0_86 = arith.constant 0 : index
    %117 = vector.load %arg1[%c0_84, %c5_85, %c0_86] : memref<7x22x128xf32, #tpu.memory_space<vmem>>, vector<1x16x128xf32>
    %118 = vector.shape_cast %117 : vector<1x16x128xf32> to vector<16x128xf32>
    %119 = arith.maximumf %115, %118 : vector<16x128xf32>
    %120 = arith.minimumf %116, %118 : vector<16x128xf32>
    %c1_87 = arith.constant 1 : index
    %c5_88 = arith.constant 5 : index
    %c0_89 = arith.constant 0 : index
    %121 = vector.load %arg1[%c1_87, %c5_88, %c0_89] : memref<7x22x128xf32, #tpu.memory_space<vmem>>, vector<1x16x128xf32>
    %122 = vector.shape_cast %121 : vector<1x16x128xf32> to vector<16x128xf32>
    %123 = arith.maximumf %119, %122 : vector<16x128xf32>
    %124 = arith.minimumf %120, %122 : vector<16x128xf32>
    %125 = arith.subf %123, %124 : vector<16x128xf32>
    %126 = arith.addf %110, %125 : vector<16x128xf32>
    %c2_90 = arith.constant 2 : index
    %c5_91 = arith.constant 5 : index
    %c0_92 = arith.constant 0 : index
    %127 = vector.load %arg1[%c2_90, %c5_91, %c0_92] : memref<7x22x128xf32, #tpu.memory_space<vmem>>, vector<1x16x128xf32>
    %128 = vector.shape_cast %127 : vector<1x16x128xf32> to vector<16x128xf32>
    %c3_93 = arith.constant 3 : index
    %c5_94 = arith.constant 5 : index
    %c0_95 = arith.constant 0 : index
    %129 = vector.load %arg1[%c3_93, %c5_94, %c0_95] : memref<7x22x128xf32, #tpu.memory_space<vmem>>, vector<1x16x128xf32>
    %130 = vector.shape_cast %129 : vector<1x16x128xf32> to vector<16x128xf32>
    %131 = arith.maximumf %128, %130 : vector<16x128xf32>
    %132 = arith.minimumf %128, %130 : vector<16x128xf32>
    %c4_96 = arith.constant 4 : index
    %c5_97 = arith.constant 5 : index
    %c0_98 = arith.constant 0 : index
    %133 = vector.load %arg1[%c4_96, %c5_97, %c0_98] : memref<7x22x128xf32, #tpu.memory_space<vmem>>, vector<1x16x128xf32>
    %134 = vector.shape_cast %133 : vector<1x16x128xf32> to vector<16x128xf32>
    %135 = arith.maximumf %131, %134 : vector<16x128xf32>
    %136 = arith.minimumf %132, %134 : vector<16x128xf32>
    %c5_99 = arith.constant 5 : index
    %c5_100 = arith.constant 5 : index
    %c0_101 = arith.constant 0 : index
    %137 = vector.load %arg1[%c5_99, %c5_100, %c0_101] : memref<7x22x128xf32, #tpu.memory_space<vmem>>, vector<1x16x128xf32>
    %138 = vector.shape_cast %137 : vector<1x16x128xf32> to vector<16x128xf32>
    %139 = arith.maximumf %135, %138 : vector<16x128xf32>
    %140 = arith.minimumf %136, %138 : vector<16x128xf32>
    %141 = arith.subf %139, %140 : vector<16x128xf32>
    %142 = arith.addf %126, %141 : vector<16x128xf32>
    %c1_102 = arith.constant 1 : index
    %c0_103 = arith.constant 0 : index
    %c0_104 = arith.constant 0 : index
    %143 = vector.load %arg1[%c1_102, %c0_103, %c0_104] : memref<7x22x128xf32, #tpu.memory_space<vmem>>, vector<1x16x128xf32>
    %144 = vector.shape_cast %143 : vector<1x16x128xf32> to vector<16x128xf32>
    %c2_105 = arith.constant 2 : index
    %c0_106 = arith.constant 0 : index
    %c0_107 = arith.constant 0 : index
    %145 = vector.load %arg1[%c2_105, %c0_106, %c0_107] : memref<7x22x128xf32, #tpu.memory_space<vmem>>, vector<1x16x128xf32>
    %146 = vector.shape_cast %145 : vector<1x16x128xf32> to vector<16x128xf32>
    %147 = arith.maximumf %144, %146 : vector<16x128xf32>
    %148 = arith.minimumf %144, %146 : vector<16x128xf32>
    %c3_108 = arith.constant 3 : index
    %c0_109 = arith.constant 0 : index
    %c0_110 = arith.constant 0 : index
    %149 = vector.load %arg1[%c3_108, %c0_109, %c0_110] : memref<7x22x128xf32, #tpu.memory_space<vmem>>, vector<1x16x128xf32>
    %150 = vector.shape_cast %149 : vector<1x16x128xf32> to vector<16x128xf32>
    %151 = arith.maximumf %147, %150 : vector<16x128xf32>
    %152 = arith.minimumf %148, %150 : vector<16x128xf32>
    %c4_111 = arith.constant 4 : index
    %c0_112 = arith.constant 0 : index
    %c0_113 = arith.constant 0 : index
    %153 = vector.load %arg1[%c4_111, %c0_112, %c0_113] : memref<7x22x128xf32, #tpu.memory_space<vmem>>, vector<1x16x128xf32>
    %154 = vector.shape_cast %153 : vector<1x16x128xf32> to vector<16x128xf32>
    %155 = arith.maximumf %151, %154 : vector<16x128xf32>
    %156 = arith.minimumf %152, %154 : vector<16x128xf32>
    %157 = arith.subf %155, %156 : vector<16x128xf32>
    %158 = arith.addf %142, %157 : vector<16x128xf32>
    %c5_114 = arith.constant 5 : index
    %c0_115 = arith.constant 0 : index
    %c0_116 = arith.constant 0 : index
    %159 = vector.load %arg1[%c5_114, %c0_115, %c0_116] : memref<7x22x128xf32, #tpu.memory_space<vmem>>, vector<1x16x128xf32>
    %160 = vector.shape_cast %159 : vector<1x16x128xf32> to vector<16x128xf32>
    %c6 = arith.constant 6 : index
    %c0_117 = arith.constant 0 : index
    %c0_118 = arith.constant 0 : index
    %161 = vector.load %arg1[%c6, %c0_117, %c0_118] : memref<7x22x128xf32, #tpu.memory_space<vmem>>, vector<1x16x128xf32>
    %162 = vector.shape_cast %161 : vector<1x16x128xf32> to vector<16x128xf32>
    %163 = arith.maximumf %160, %162 : vector<16x128xf32>
    %164 = arith.minimumf %160, %162 : vector<16x128xf32>
    %c1_119 = arith.constant 1 : index
    %c1_120 = arith.constant 1 : index
    %c0_121 = arith.constant 0 : index
    %165 = vector.load %arg1[%c1_119, %c1_120, %c0_121] : memref<7x22x128xf32, #tpu.memory_space<vmem>>, vector<1x16x128xf32>
    %166 = vector.shape_cast %165 : vector<1x16x128xf32> to vector<16x128xf32>
    %167 = arith.maximumf %163, %166 : vector<16x128xf32>
    %168 = arith.minimumf %164, %166 : vector<16x128xf32>
    %c2_122 = arith.constant 2 : index
    %c1_123 = arith.constant 1 : index
    %c0_124 = arith.constant 0 : index
    %169 = vector.load %arg1[%c2_122, %c1_123, %c0_124] : memref<7x22x128xf32, #tpu.memory_space<vmem>>, vector<1x16x128xf32>
    %170 = vector.shape_cast %169 : vector<1x16x128xf32> to vector<16x128xf32>
    %171 = arith.maximumf %167, %170 : vector<16x128xf32>
    %172 = arith.minimumf %168, %170 : vector<16x128xf32>
    %173 = arith.subf %171, %172 : vector<16x128xf32>
    %174 = arith.addf %158, %173 : vector<16x128xf32>
    %c3_125 = arith.constant 3 : index
    %c1_126 = arith.constant 1 : index
    %c0_127 = arith.constant 0 : index
    %175 = vector.load %arg1[%c3_125, %c1_126, %c0_127] : memref<7x22x128xf32, #tpu.memory_space<vmem>>, vector<1x16x128xf32>
    %176 = vector.shape_cast %175 : vector<1x16x128xf32> to vector<16x128xf32>
    %c4_128 = arith.constant 4 : index
    %c1_129 = arith.constant 1 : index
    %c0_130 = arith.constant 0 : index
    %177 = vector.load %arg1[%c4_128, %c1_129, %c0_130] : memref<7x22x128xf32, #tpu.memory_space<vmem>>, vector<1x16x128xf32>
    %178 = vector.shape_cast %177 : vector<1x16x128xf32> to vector<16x128xf32>
    %179 = arith.maximumf %176, %178 : vector<16x128xf32>
    %180 = arith.minimumf %176, %178 : vector<16x128xf32>
    %c5_131 = arith.constant 5 : index
    %c1_132 = arith.constant 1 : index
    %c0_133 = arith.constant 0 : index
    %181 = vector.load %arg1[%c5_131, %c1_132, %c0_133] : memref<7x22x128xf32, #tpu.memory_space<vmem>>, vector<1x16x128xf32>
    %182 = vector.shape_cast %181 : vector<1x16x128xf32> to vector<16x128xf32>
    %183 = arith.maximumf %179, %182 : vector<16x128xf32>
    %184 = arith.minimumf %180, %182 : vector<16x128xf32>
    %c6_134 = arith.constant 6 : index
    %c1_135 = arith.constant 1 : index
    %c0_136 = arith.constant 0 : index
    %185 = vector.load %arg1[%c6_134, %c1_135, %c0_136] : memref<7x22x128xf32, #tpu.memory_space<vmem>>, vector<1x16x128xf32>
    %186 = vector.shape_cast %185 : vector<1x16x128xf32> to vector<16x128xf32>
    %187 = arith.maximumf %183, %186 : vector<16x128xf32>
    %188 = arith.minimumf %184, %186 : vector<16x128xf32>
    %189 = arith.subf %187, %188 : vector<16x128xf32>
    %190 = arith.addf %174, %189 : vector<16x128xf32>
    %c1_137 = arith.constant 1 : index
    %c2_138 = arith.constant 2 : index
    %c0_139 = arith.constant 0 : index
    %191 = vector.load %arg1[%c1_137, %c2_138, %c0_139] : memref<7x22x128xf32, #tpu.memory_space<vmem>>, vector<1x16x128xf32>
    %192 = vector.shape_cast %191 : vector<1x16x128xf32> to vector<16x128xf32>
    %c2_140 = arith.constant 2 : index
    %c2_141 = arith.constant 2 : index
    %c0_142 = arith.constant 0 : index
    %193 = vector.load %arg1[%c2_140, %c2_141, %c0_142] : memref<7x22x128xf32, #tpu.memory_space<vmem>>, vector<1x16x128xf32>
    %194 = vector.shape_cast %193 : vector<1x16x128xf32> to vector<16x128xf32>
    %195 = arith.maximumf %192, %194 : vector<16x128xf32>
    %196 = arith.minimumf %192, %194 : vector<16x128xf32>
    %c3_143 = arith.constant 3 : index
    %c2_144 = arith.constant 2 : index
    %c0_145 = arith.constant 0 : index
    %197 = vector.load %arg1[%c3_143, %c2_144, %c0_145] : memref<7x22x128xf32, #tpu.memory_space<vmem>>, vector<1x16x128xf32>
    %198 = vector.shape_cast %197 : vector<1x16x128xf32> to vector<16x128xf32>
    %199 = arith.maximumf %195, %198 : vector<16x128xf32>
    %200 = arith.minimumf %196, %198 : vector<16x128xf32>
    %c4_146 = arith.constant 4 : index
    %c2_147 = arith.constant 2 : index
    %c0_148 = arith.constant 0 : index
    %201 = vector.load %arg1[%c4_146, %c2_147, %c0_148] : memref<7x22x128xf32, #tpu.memory_space<vmem>>, vector<1x16x128xf32>
    %202 = vector.shape_cast %201 : vector<1x16x128xf32> to vector<16x128xf32>
    %203 = arith.maximumf %199, %202 : vector<16x128xf32>
    %204 = arith.minimumf %200, %202 : vector<16x128xf32>
    %205 = arith.subf %203, %204 : vector<16x128xf32>
    %206 = arith.addf %190, %205 : vector<16x128xf32>
    %c5_149 = arith.constant 5 : index
    %c2_150 = arith.constant 2 : index
    %c0_151 = arith.constant 0 : index
    %207 = vector.load %arg1[%c5_149, %c2_150, %c0_151] : memref<7x22x128xf32, #tpu.memory_space<vmem>>, vector<1x16x128xf32>
    %208 = vector.shape_cast %207 : vector<1x16x128xf32> to vector<16x128xf32>
    %c6_152 = arith.constant 6 : index
    %c2_153 = arith.constant 2 : index
    %c0_154 = arith.constant 0 : index
    %209 = vector.load %arg1[%c6_152, %c2_153, %c0_154] : memref<7x22x128xf32, #tpu.memory_space<vmem>>, vector<1x16x128xf32>
    %210 = vector.shape_cast %209 : vector<1x16x128xf32> to vector<16x128xf32>
    %211 = arith.maximumf %208, %210 : vector<16x128xf32>
    %212 = arith.minimumf %208, %210 : vector<16x128xf32>
    %c1_155 = arith.constant 1 : index
    %c3_156 = arith.constant 3 : index
    %c0_157 = arith.constant 0 : index
    %213 = vector.load %arg1[%c1_155, %c3_156, %c0_157] : memref<7x22x128xf32, #tpu.memory_space<vmem>>, vector<1x16x128xf32>
    %214 = vector.shape_cast %213 : vector<1x16x128xf32> to vector<16x128xf32>
    %215 = arith.maximumf %211, %214 : vector<16x128xf32>
    %216 = arith.minimumf %212, %214 : vector<16x128xf32>
    %c2_158 = arith.constant 2 : index
    %c3_159 = arith.constant 3 : index
    %c0_160 = arith.constant 0 : index
    %217 = vector.load %arg1[%c2_158, %c3_159, %c0_160] : memref<7x22x128xf32, #tpu.memory_space<vmem>>, vector<1x16x128xf32>
    %218 = vector.shape_cast %217 : vector<1x16x128xf32> to vector<16x128xf32>
    %219 = arith.maximumf %215, %218 : vector<16x128xf32>
    %220 = arith.minimumf %216, %218 : vector<16x128xf32>
    %221 = arith.subf %219, %220 : vector<16x128xf32>
    %222 = arith.addf %206, %221 : vector<16x128xf32>
    %c3_161 = arith.constant 3 : index
    %c3_162 = arith.constant 3 : index
    %c0_163 = arith.constant 0 : index
    %223 = vector.load %arg1[%c3_161, %c3_162, %c0_163] : memref<7x22x128xf32, #tpu.memory_space<vmem>>, vector<1x16x128xf32>
    %224 = vector.shape_cast %223 : vector<1x16x128xf32> to vector<16x128xf32>
    %c4_164 = arith.constant 4 : index
    %c3_165 = arith.constant 3 : index
    %c0_166 = arith.constant 0 : index
    %225 = vector.load %arg1[%c4_164, %c3_165, %c0_166] : memref<7x22x128xf32, #tpu.memory_space<vmem>>, vector<1x16x128xf32>
    %226 = vector.shape_cast %225 : vector<1x16x128xf32> to vector<16x128xf32>
    %227 = arith.maximumf %224, %226 : vector<16x128xf32>
    %228 = arith.minimumf %224, %226 : vector<16x128xf32>
    %c5_167 = arith.constant 5 : index
    %c3_168 = arith.constant 3 : index
    %c0_169 = arith.constant 0 : index
    %229 = vector.load %arg1[%c5_167, %c3_168, %c0_169] : memref<7x22x128xf32, #tpu.memory_space<vmem>>, vector<1x16x128xf32>
    %230 = vector.shape_cast %229 : vector<1x16x128xf32> to vector<16x128xf32>
    %231 = arith.maximumf %227, %230 : vector<16x128xf32>
    %232 = arith.minimumf %228, %230 : vector<16x128xf32>
    %c6_170 = arith.constant 6 : index
    %c3_171 = arith.constant 3 : index
    %c0_172 = arith.constant 0 : index
    %233 = vector.load %arg1[%c6_170, %c3_171, %c0_172] : memref<7x22x128xf32, #tpu.memory_space<vmem>>, vector<1x16x128xf32>
    %234 = vector.shape_cast %233 : vector<1x16x128xf32> to vector<16x128xf32>
    %235 = arith.maximumf %231, %234 : vector<16x128xf32>
    %236 = arith.minimumf %232, %234 : vector<16x128xf32>
    %237 = arith.subf %235, %236 : vector<16x128xf32>
    %238 = arith.addf %222, %237 : vector<16x128xf32>
    %c1_173 = arith.constant 1 : index
    %c4_174 = arith.constant 4 : index
    %c0_175 = arith.constant 0 : index
    %239 = vector.load %arg1[%c1_173, %c4_174, %c0_175] : memref<7x22x128xf32, #tpu.memory_space<vmem>>, vector<1x16x128xf32>
    %240 = vector.shape_cast %239 : vector<1x16x128xf32> to vector<16x128xf32>
    %c2_176 = arith.constant 2 : index
    %c4_177 = arith.constant 4 : index
    %c0_178 = arith.constant 0 : index
    %241 = vector.load %arg1[%c2_176, %c4_177, %c0_178] : memref<7x22x128xf32, #tpu.memory_space<vmem>>, vector<1x16x128xf32>
    %242 = vector.shape_cast %241 : vector<1x16x128xf32> to vector<16x128xf32>
    %243 = arith.maximumf %240, %242 : vector<16x128xf32>
    %244 = arith.minimumf %240, %242 : vector<16x128xf32>
    %c3_179 = arith.constant 3 : index
    %c4_180 = arith.constant 4 : index
    %c0_181 = arith.constant 0 : index
    %245 = vector.load %arg1[%c3_179, %c4_180, %c0_181] : memref<7x22x128xf32, #tpu.memory_space<vmem>>, vector<1x16x128xf32>
    %246 = vector.shape_cast %245 : vector<1x16x128xf32> to vector<16x128xf32>
    %247 = arith.maximumf %243, %246 : vector<16x128xf32>
    %248 = arith.minimumf %244, %246 : vector<16x128xf32>
    %c4_182 = arith.constant 4 : index
    %c4_183 = arith.constant 4 : index
    %c0_184 = arith.constant 0 : index
    %249 = vector.load %arg1[%c4_182, %c4_183, %c0_184] : memref<7x22x128xf32, #tpu.memory_space<vmem>>, vector<1x16x128xf32>
    %250 = vector.shape_cast %249 : vector<1x16x128xf32> to vector<16x128xf32>
    %251 = arith.maximumf %247, %250 : vector<16x128xf32>
    %252 = arith.minimumf %248, %250 : vector<16x128xf32>
    %253 = arith.subf %251, %252 : vector<16x128xf32>
    %254 = arith.addf %238, %253 : vector<16x128xf32>
    %c5_185 = arith.constant 5 : index
    %c4_186 = arith.constant 4 : index
    %c0_187 = arith.constant 0 : index
    %255 = vector.load %arg1[%c5_185, %c4_186, %c0_187] : memref<7x22x128xf32, #tpu.memory_space<vmem>>, vector<1x16x128xf32>
    %256 = vector.shape_cast %255 : vector<1x16x128xf32> to vector<16x128xf32>
    %c6_188 = arith.constant 6 : index
    %c4_189 = arith.constant 4 : index
    %c0_190 = arith.constant 0 : index
    %257 = vector.load %arg1[%c6_188, %c4_189, %c0_190] : memref<7x22x128xf32, #tpu.memory_space<vmem>>, vector<1x16x128xf32>
    %258 = vector.shape_cast %257 : vector<1x16x128xf32> to vector<16x128xf32>
    %259 = arith.maximumf %256, %258 : vector<16x128xf32>
    %260 = arith.minimumf %256, %258 : vector<16x128xf32>
    %c1_191 = arith.constant 1 : index
    %c5_192 = arith.constant 5 : index
    %c0_193 = arith.constant 0 : index
    %261 = vector.load %arg1[%c1_191, %c5_192, %c0_193] : memref<7x22x128xf32, #tpu.memory_space<vmem>>, vector<1x16x128xf32>
    %262 = vector.shape_cast %261 : vector<1x16x128xf32> to vector<16x128xf32>
    %263 = arith.maximumf %259, %262 : vector<16x128xf32>
    %264 = arith.minimumf %260, %262 : vector<16x128xf32>
    %c2_194 = arith.constant 2 : index
    %c5_195 = arith.constant 5 : index
    %c0_196 = arith.constant 0 : index
    %265 = vector.load %arg1[%c2_194, %c5_195, %c0_196] : memref<7x22x128xf32, #tpu.memory_space<vmem>>, vector<1x16x128xf32>
    %266 = vector.shape_cast %265 : vector<1x16x128xf32> to vector<16x128xf32>
    %267 = arith.maximumf %263, %266 : vector<16x128xf32>
    %268 = arith.minimumf %264, %266 : vector<16x128xf32>
    %269 = arith.subf %267, %268 : vector<16x128xf32>
    %270 = arith.addf %254, %269 : vector<16x128xf32>
    %c3_197 = arith.constant 3 : index
    %c5_198 = arith.constant 5 : index
    %c0_199 = arith.constant 0 : index
    %271 = vector.load %arg1[%c3_197, %c5_198, %c0_199] : memref<7x22x128xf32, #tpu.memory_space<vmem>>, vector<1x16x128xf32>
    %272 = vector.shape_cast %271 : vector<1x16x128xf32> to vector<16x128xf32>
    %c4_200 = arith.constant 4 : index
    %c5_201 = arith.constant 5 : index
    %c0_202 = arith.constant 0 : index
    %273 = vector.load %arg1[%c4_200, %c5_201, %c0_202] : memref<7x22x128xf32, #tpu.memory_space<vmem>>, vector<1x16x128xf32>
    %274 = vector.shape_cast %273 : vector<1x16x128xf32> to vector<16x128xf32>
    %275 = arith.maximumf %272, %274 : vector<16x128xf32>
    %276 = arith.minimumf %272, %274 : vector<16x128xf32>
    %c5_203 = arith.constant 5 : index
    %c5_204 = arith.constant 5 : index
    %c0_205 = arith.constant 0 : index
    %277 = vector.load %arg1[%c5_203, %c5_204, %c0_205] : memref<7x22x128xf32, #tpu.memory_space<vmem>>, vector<1x16x128xf32>
    %278 = vector.shape_cast %277 : vector<1x16x128xf32> to vector<16x128xf32>
    %279 = arith.maximumf %275, %278 : vector<16x128xf32>
    %280 = arith.minimumf %276, %278 : vector<16x128xf32>
    %c6_206 = arith.constant 6 : index
    %c5_207 = arith.constant 5 : index
    %c0_208 = arith.constant 0 : index
    %281 = vector.load %arg1[%c6_206, %c5_207, %c0_208] : memref<7x22x128xf32, #tpu.memory_space<vmem>>, vector<1x16x128xf32>
    %282 = vector.shape_cast %281 : vector<1x16x128xf32> to vector<16x128xf32>
    %283 = arith.maximumf %279, %282 : vector<16x128xf32>
    %284 = arith.minimumf %280, %282 : vector<16x128xf32>
    %285 = arith.subf %283, %284 : vector<16x128xf32>
    %286 = arith.addf %270, %285 : vector<16x128xf32>
    %c0_209 = arith.constant 0 : index
    %c1_210 = arith.constant 1 : index
    %c0_211 = arith.constant 0 : index
    %287 = vector.load %arg1[%c0_209, %c1_210, %c0_211] : memref<7x22x128xf32, #tpu.memory_space<vmem>>, vector<1x16x128xf32>
    %288 = vector.shape_cast %287 : vector<1x16x128xf32> to vector<16x128xf32>
    %c1_212 = arith.constant 1 : index
    %c1_213 = arith.constant 1 : index
    %c0_214 = arith.constant 0 : index
    %289 = vector.load %arg1[%c1_212, %c1_213, %c0_214] : memref<7x22x128xf32, #tpu.memory_space<vmem>>, vector<1x16x128xf32>
    %290 = vector.shape_cast %289 : vector<1x16x128xf32> to vector<16x128xf32>
    %291 = arith.maximumf %288, %290 : vector<16x128xf32>
    %292 = arith.minimumf %288, %290 : vector<16x128xf32>
    %c2_215 = arith.constant 2 : index
    %c1_216 = arith.constant 1 : index
    %c0_217 = arith.constant 0 : index
    %293 = vector.load %arg1[%c2_215, %c1_216, %c0_217] : memref<7x22x128xf32, #tpu.memory_space<vmem>>, vector<1x16x128xf32>
    %294 = vector.shape_cast %293 : vector<1x16x128xf32> to vector<16x128xf32>
    %295 = arith.maximumf %291, %294 : vector<16x128xf32>
    %296 = arith.minimumf %292, %294 : vector<16x128xf32>
    %c3_218 = arith.constant 3 : index
    %c1_219 = arith.constant 1 : index
    %c0_220 = arith.constant 0 : index
    %297 = vector.load %arg1[%c3_218, %c1_219, %c0_220] : memref<7x22x128xf32, #tpu.memory_space<vmem>>, vector<1x16x128xf32>
    %298 = vector.shape_cast %297 : vector<1x16x128xf32> to vector<16x128xf32>
    %299 = arith.maximumf %295, %298 : vector<16x128xf32>
    %300 = arith.minimumf %296, %298 : vector<16x128xf32>
    %301 = arith.subf %299, %300 : vector<16x128xf32>
    %302 = arith.addf %286, %301 : vector<16x128xf32>
    %c4_221 = arith.constant 4 : index
    %c1_222 = arith.constant 1 : index
    %c0_223 = arith.constant 0 : index
    %303 = vector.load %arg1[%c4_221, %c1_222, %c0_223] : memref<7x22x128xf32, #tpu.memory_space<vmem>>, vector<1x16x128xf32>
    %304 = vector.shape_cast %303 : vector<1x16x128xf32> to vector<16x128xf32>
    %c5_224 = arith.constant 5 : index
    %c1_225 = arith.constant 1 : index
    %c0_226 = arith.constant 0 : index
    %305 = vector.load %arg1[%c5_224, %c1_225, %c0_226] : memref<7x22x128xf32, #tpu.memory_space<vmem>>, vector<1x16x128xf32>
    %306 = vector.shape_cast %305 : vector<1x16x128xf32> to vector<16x128xf32>
    %307 = arith.maximumf %304, %306 : vector<16x128xf32>
    %308 = arith.minimumf %304, %306 : vector<16x128xf32>
    %c0_227 = arith.constant 0 : index
    %c2_228 = arith.constant 2 : index
    %c0_229 = arith.constant 0 : index
    %309 = vector.load %arg1[%c0_227, %c2_228, %c0_229] : memref<7x22x128xf32, #tpu.memory_space<vmem>>, vector<1x16x128xf32>
    %310 = vector.shape_cast %309 : vector<1x16x128xf32> to vector<16x128xf32>
    %311 = arith.maximumf %307, %310 : vector<16x128xf32>
    %312 = arith.minimumf %308, %310 : vector<16x128xf32>
    %c1_230 = arith.constant 1 : index
    %c2_231 = arith.constant 2 : index
    %c0_232 = arith.constant 0 : index
    %313 = vector.load %arg1[%c1_230, %c2_231, %c0_232] : memref<7x22x128xf32, #tpu.memory_space<vmem>>, vector<1x16x128xf32>
    %314 = vector.shape_cast %313 : vector<1x16x128xf32> to vector<16x128xf32>
    %315 = arith.maximumf %311, %314 : vector<16x128xf32>
    %316 = arith.minimumf %312, %314 : vector<16x128xf32>
    %317 = arith.subf %315, %316 : vector<16x128xf32>
    %318 = arith.addf %302, %317 : vector<16x128xf32>
    %c2_233 = arith.constant 2 : index
    %c2_234 = arith.constant 2 : index
    %c0_235 = arith.constant 0 : index
    %319 = vector.load %arg1[%c2_233, %c2_234, %c0_235] : memref<7x22x128xf32, #tpu.memory_space<vmem>>, vector<1x16x128xf32>
    %320 = vector.shape_cast %319 : vector<1x16x128xf32> to vector<16x128xf32>
    %c3_236 = arith.constant 3 : index
    %c2_237 = arith.constant 2 : index
    %c0_238 = arith.constant 0 : index
    %321 = vector.load %arg1[%c3_236, %c2_237, %c0_238] : memref<7x22x128xf32, #tpu.memory_space<vmem>>, vector<1x16x128xf32>
    %322 = vector.shape_cast %321 : vector<1x16x128xf32> to vector<16x128xf32>
    %323 = arith.maximumf %320, %322 : vector<16x128xf32>
    %324 = arith.minimumf %320, %322 : vector<16x128xf32>
    %c4_239 = arith.constant 4 : index
    %c2_240 = arith.constant 2 : index
    %c0_241 = arith.constant 0 : index
    %325 = vector.load %arg1[%c4_239, %c2_240, %c0_241] : memref<7x22x128xf32, #tpu.memory_space<vmem>>, vector<1x16x128xf32>
    %326 = vector.shape_cast %325 : vector<1x16x128xf32> to vector<16x128xf32>
    %327 = arith.maximumf %323, %326 : vector<16x128xf32>
    %328 = arith.minimumf %324, %326 : vector<16x128xf32>
    %c5_242 = arith.constant 5 : index
    %c2_243 = arith.constant 2 : index
    %c0_244 = arith.constant 0 : index
    %329 = vector.load %arg1[%c5_242, %c2_243, %c0_244] : memref<7x22x128xf32, #tpu.memory_space<vmem>>, vector<1x16x128xf32>
    %330 = vector.shape_cast %329 : vector<1x16x128xf32> to vector<16x128xf32>
    %331 = arith.maximumf %327, %330 : vector<16x128xf32>
    %332 = arith.minimumf %328, %330 : vector<16x128xf32>
    %333 = arith.subf %331, %332 : vector<16x128xf32>
    %334 = arith.addf %318, %333 : vector<16x128xf32>
    %c0_245 = arith.constant 0 : index
    %c3_246 = arith.constant 3 : index
    %c0_247 = arith.constant 0 : index
    %335 = vector.load %arg1[%c0_245, %c3_246, %c0_247] : memref<7x22x128xf32, #tpu.memory_space<vmem>>, vector<1x16x128xf32>
    %336 = vector.shape_cast %335 : vector<1x16x128xf32> to vector<16x128xf32>
    %c1_248 = arith.constant 1 : index
    %c3_249 = arith.constant 3 : index
    %c0_250 = arith.constant 0 : index
    %337 = vector.load %arg1[%c1_248, %c3_249, %c0_250] : memref<7x22x128xf32, #tpu.memory_space<vmem>>, vector<1x16x128xf32>
    %338 = vector.shape_cast %337 : vector<1x16x128xf32> to vector<16x128xf32>
    %339 = arith.maximumf %336, %338 : vector<16x128xf32>
    %340 = arith.minimumf %336, %338 : vector<16x128xf32>
    %c2_251 = arith.constant 2 : index
    %c3_252 = arith.constant 3 : index
    %c0_253 = arith.constant 0 : index
    %341 = vector.load %arg1[%c2_251, %c3_252, %c0_253] : memref<7x22x128xf32, #tpu.memory_space<vmem>>, vector<1x16x128xf32>
    %342 = vector.shape_cast %341 : vector<1x16x128xf32> to vector<16x128xf32>
    %343 = arith.maximumf %339, %342 : vector<16x128xf32>
    %344 = arith.minimumf %340, %342 : vector<16x128xf32>
    %c3_254 = arith.constant 3 : index
    %c3_255 = arith.constant 3 : index
    %c0_256 = arith.constant 0 : index
    %345 = vector.load %arg1[%c3_254, %c3_255, %c0_256] : memref<7x22x128xf32, #tpu.memory_space<vmem>>, vector<1x16x128xf32>
    %346 = vector.shape_cast %345 : vector<1x16x128xf32> to vector<16x128xf32>
    %347 = arith.maximumf %343, %346 : vector<16x128xf32>
    %348 = arith.minimumf %344, %346 : vector<16x128xf32>
    %349 = arith.subf %347, %348 : vector<16x128xf32>
    %350 = arith.addf %334, %349 : vector<16x128xf32>
    %c4_257 = arith.constant 4 : index
    %c3_258 = arith.constant 3 : index
    %c0_259 = arith.constant 0 : index
    %351 = vector.load %arg1[%c4_257, %c3_258, %c0_259] : memref<7x22x128xf32, #tpu.memory_space<vmem>>, vector<1x16x128xf32>
    %352 = vector.shape_cast %351 : vector<1x16x128xf32> to vector<16x128xf32>
    %c5_260 = arith.constant 5 : index
    %c3_261 = arith.constant 3 : index
    %c0_262 = arith.constant 0 : index
    %353 = vector.load %arg1[%c5_260, %c3_261, %c0_262] : memref<7x22x128xf32, #tpu.memory_space<vmem>>, vector<1x16x128xf32>
    %354 = vector.shape_cast %353 : vector<1x16x128xf32> to vector<16x128xf32>
    %355 = arith.maximumf %352, %354 : vector<16x128xf32>
    %356 = arith.minimumf %352, %354 : vector<16x128xf32>
    %c0_263 = arith.constant 0 : index
    %c4_264 = arith.constant 4 : index
    %c0_265 = arith.constant 0 : index
    %357 = vector.load %arg1[%c0_263, %c4_264, %c0_265] : memref<7x22x128xf32, #tpu.memory_space<vmem>>, vector<1x16x128xf32>
    %358 = vector.shape_cast %357 : vector<1x16x128xf32> to vector<16x128xf32>
    %359 = arith.maximumf %355, %358 : vector<16x128xf32>
    %360 = arith.minimumf %356, %358 : vector<16x128xf32>
    %c1_266 = arith.constant 1 : index
    %c4_267 = arith.constant 4 : index
    %c0_268 = arith.constant 0 : index
    %361 = vector.load %arg1[%c1_266, %c4_267, %c0_268] : memref<7x22x128xf32, #tpu.memory_space<vmem>>, vector<1x16x128xf32>
    %362 = vector.shape_cast %361 : vector<1x16x128xf32> to vector<16x128xf32>
    %363 = arith.maximumf %359, %362 : vector<16x128xf32>
    %364 = arith.minimumf %360, %362 : vector<16x128xf32>
    %365 = arith.subf %363, %364 : vector<16x128xf32>
    %366 = arith.addf %350, %365 : vector<16x128xf32>
    %c2_269 = arith.constant 2 : index
    %c4_270 = arith.constant 4 : index
    %c0_271 = arith.constant 0 : index
    %367 = vector.load %arg1[%c2_269, %c4_270, %c0_271] : memref<7x22x128xf32, #tpu.memory_space<vmem>>, vector<1x16x128xf32>
    %368 = vector.shape_cast %367 : vector<1x16x128xf32> to vector<16x128xf32>
    %c3_272 = arith.constant 3 : index
    %c4_273 = arith.constant 4 : index
    %c0_274 = arith.constant 0 : index
    %369 = vector.load %arg1[%c3_272, %c4_273, %c0_274] : memref<7x22x128xf32, #tpu.memory_space<vmem>>, vector<1x16x128xf32>
    %370 = vector.shape_cast %369 : vector<1x16x128xf32> to vector<16x128xf32>
    %371 = arith.maximumf %368, %370 : vector<16x128xf32>
    %372 = arith.minimumf %368, %370 : vector<16x128xf32>
    %c4_275 = arith.constant 4 : index
    %c4_276 = arith.constant 4 : index
    %c0_277 = arith.constant 0 : index
    %373 = vector.load %arg1[%c4_275, %c4_276, %c0_277] : memref<7x22x128xf32, #tpu.memory_space<vmem>>, vector<1x16x128xf32>
    %374 = vector.shape_cast %373 : vector<1x16x128xf32> to vector<16x128xf32>
    %375 = arith.maximumf %371, %374 : vector<16x128xf32>
    %376 = arith.minimumf %372, %374 : vector<16x128xf32>
    %c5_278 = arith.constant 5 : index
    %c4_279 = arith.constant 4 : index
    %c0_280 = arith.constant 0 : index
    %377 = vector.load %arg1[%c5_278, %c4_279, %c0_280] : memref<7x22x128xf32, #tpu.memory_space<vmem>>, vector<1x16x128xf32>
    %378 = vector.shape_cast %377 : vector<1x16x128xf32> to vector<16x128xf32>
    %379 = arith.maximumf %375, %378 : vector<16x128xf32>
    %380 = arith.minimumf %376, %378 : vector<16x128xf32>
    %381 = arith.subf %379, %380 : vector<16x128xf32>
    %382 = arith.addf %366, %381 : vector<16x128xf32>
    %c0_281 = arith.constant 0 : index
    %c5_282 = arith.constant 5 : index
    %c0_283 = arith.constant 0 : index
    %383 = vector.load %arg1[%c0_281, %c5_282, %c0_283] : memref<7x22x128xf32, #tpu.memory_space<vmem>>, vector<1x16x128xf32>
    %384 = vector.shape_cast %383 : vector<1x16x128xf32> to vector<16x128xf32>
    %c1_284 = arith.constant 1 : index
    %c5_285 = arith.constant 5 : index
    %c0_286 = arith.constant 0 : index
    %385 = vector.load %arg1[%c1_284, %c5_285, %c0_286] : memref<7x22x128xf32, #tpu.memory_space<vmem>>, vector<1x16x128xf32>
    %386 = vector.shape_cast %385 : vector<1x16x128xf32> to vector<16x128xf32>
    %387 = arith.maximumf %384, %386 : vector<16x128xf32>
    %388 = arith.minimumf %384, %386 : vector<16x128xf32>
    %c2_287 = arith.constant 2 : index
    %c5_288 = arith.constant 5 : index
    %c0_289 = arith.constant 0 : index
    %389 = vector.load %arg1[%c2_287, %c5_288, %c0_289] : memref<7x22x128xf32, #tpu.memory_space<vmem>>, vector<1x16x128xf32>
    %390 = vector.shape_cast %389 : vector<1x16x128xf32> to vector<16x128xf32>
    %391 = arith.maximumf %387, %390 : vector<16x128xf32>
    %392 = arith.minimumf %388, %390 : vector<16x128xf32>
    %c3_290 = arith.constant 3 : index
    %c5_291 = arith.constant 5 : index
    %c0_292 = arith.constant 0 : index
    %393 = vector.load %arg1[%c3_290, %c5_291, %c0_292] : memref<7x22x128xf32, #tpu.memory_space<vmem>>, vector<1x16x128xf32>
    %394 = vector.shape_cast %393 : vector<1x16x128xf32> to vector<16x128xf32>
    %395 = arith.maximumf %391, %394 : vector<16x128xf32>
    %396 = arith.minimumf %392, %394 : vector<16x128xf32>
    %397 = arith.subf %395, %396 : vector<16x128xf32>
    %398 = arith.addf %382, %397 : vector<16x128xf32>
    %c4_293 = arith.constant 4 : index
    %c5_294 = arith.constant 5 : index
    %c0_295 = arith.constant 0 : index
    %399 = vector.load %arg1[%c4_293, %c5_294, %c0_295] : memref<7x22x128xf32, #tpu.memory_space<vmem>>, vector<1x16x128xf32>
    %400 = vector.shape_cast %399 : vector<1x16x128xf32> to vector<16x128xf32>
    %c5_296 = arith.constant 5 : index
    %c5_297 = arith.constant 5 : index
    %c0_298 = arith.constant 0 : index
    %401 = vector.load %arg1[%c5_296, %c5_297, %c0_298] : memref<7x22x128xf32, #tpu.memory_space<vmem>>, vector<1x16x128xf32>
    %402 = vector.shape_cast %401 : vector<1x16x128xf32> to vector<16x128xf32>
    %403 = arith.maximumf %400, %402 : vector<16x128xf32>
    %404 = arith.minimumf %400, %402 : vector<16x128xf32>
    %c0_299 = arith.constant 0 : index
    %c6_300 = arith.constant 6 : index
    %c0_301 = arith.constant 0 : index
    %405 = vector.load %arg1[%c0_299, %c6_300, %c0_301] : memref<7x22x128xf32, #tpu.memory_space<vmem>>, vector<1x16x128xf32>
    %406 = vector.shape_cast %405 : vector<1x16x128xf32> to vector<16x128xf32>
    %407 = arith.maximumf %403, %406 : vector<16x128xf32>
    %408 = arith.minimumf %404, %406 : vector<16x128xf32>
    %c1_302 = arith.constant 1 : index
    %c6_303 = arith.constant 6 : index
    %c0_304 = arith.constant 0 : index
    %409 = vector.load %arg1[%c1_302, %c6_303, %c0_304] : memref<7x22x128xf32, #tpu.memory_space<vmem>>, vector<1x16x128xf32>
    %410 = vector.shape_cast %409 : vector<1x16x128xf32> to vector<16x128xf32>
    %411 = arith.maximumf %407, %410 : vector<16x128xf32>
    %412 = arith.minimumf %408, %410 : vector<16x128xf32>
    %413 = arith.subf %411, %412 : vector<16x128xf32>
    %414 = arith.addf %398, %413 : vector<16x128xf32>
    %c2_305 = arith.constant 2 : index
    %c6_306 = arith.constant 6 : index
    %c0_307 = arith.constant 0 : index
    %415 = vector.load %arg1[%c2_305, %c6_306, %c0_307] : memref<7x22x128xf32, #tpu.memory_space<vmem>>, vector<1x16x128xf32>
    %416 = vector.shape_cast %415 : vector<1x16x128xf32> to vector<16x128xf32>
    %c3_308 = arith.constant 3 : index
    %c6_309 = arith.constant 6 : index
    %c0_310 = arith.constant 0 : index
    %417 = vector.load %arg1[%c3_308, %c6_309, %c0_310] : memref<7x22x128xf32, #tpu.memory_space<vmem>>, vector<1x16x128xf32>
    %418 = vector.shape_cast %417 : vector<1x16x128xf32> to vector<16x128xf32>
    %419 = arith.maximumf %416, %418 : vector<16x128xf32>
    %420 = arith.minimumf %416, %418 : vector<16x128xf32>
    %c4_311 = arith.constant 4 : index
    %c6_312 = arith.constant 6 : index
    %c0_313 = arith.constant 0 : index
    %421 = vector.load %arg1[%c4_311, %c6_312, %c0_313] : memref<7x22x128xf32, #tpu.memory_space<vmem>>, vector<1x16x128xf32>
    %422 = vector.shape_cast %421 : vector<1x16x128xf32> to vector<16x128xf32>
    %423 = arith.maximumf %419, %422 : vector<16x128xf32>
    %424 = arith.minimumf %420, %422 : vector<16x128xf32>
    %c5_314 = arith.constant 5 : index
    %c6_315 = arith.constant 6 : index
    %c0_316 = arith.constant 0 : index
    %425 = vector.load %arg1[%c5_314, %c6_315, %c0_316] : memref<7x22x128xf32, #tpu.memory_space<vmem>>, vector<1x16x128xf32>
    %426 = vector.shape_cast %425 : vector<1x16x128xf32> to vector<16x128xf32>
    %427 = arith.maximumf %423, %426 : vector<16x128xf32>
    %428 = arith.minimumf %424, %426 : vector<16x128xf32>
    %429 = arith.subf %427, %428 : vector<16x128xf32>
    %430 = arith.addf %414, %429 : vector<16x128xf32>
    %c1_317 = arith.constant 1 : index
    %c1_318 = arith.constant 1 : index
    %c0_319 = arith.constant 0 : index
    %431 = vector.load %arg1[%c1_317, %c1_318, %c0_319] : memref<7x22x128xf32, #tpu.memory_space<vmem>>, vector<1x16x128xf32>
    %432 = vector.shape_cast %431 : vector<1x16x128xf32> to vector<16x128xf32>
    %c2_320 = arith.constant 2 : index
    %c1_321 = arith.constant 1 : index
    %c0_322 = arith.constant 0 : index
    %433 = vector.load %arg1[%c2_320, %c1_321, %c0_322] : memref<7x22x128xf32, #tpu.memory_space<vmem>>, vector<1x16x128xf32>
    %434 = vector.shape_cast %433 : vector<1x16x128xf32> to vector<16x128xf32>
    %435 = arith.maximumf %432, %434 : vector<16x128xf32>
    %436 = arith.minimumf %432, %434 : vector<16x128xf32>
    %c3_323 = arith.constant 3 : index
    %c1_324 = arith.constant 1 : index
    %c0_325 = arith.constant 0 : index
    %437 = vector.load %arg1[%c3_323, %c1_324, %c0_325] : memref<7x22x128xf32, #tpu.memory_space<vmem>>, vector<1x16x128xf32>
    %438 = vector.shape_cast %437 : vector<1x16x128xf32> to vector<16x128xf32>
    %439 = arith.maximumf %435, %438 : vector<16x128xf32>
    %440 = arith.minimumf %436, %438 : vector<16x128xf32>
    %c4_326 = arith.constant 4 : index
    %c1_327 = arith.constant 1 : index
    %c0_328 = arith.constant 0 : index
    %441 = vector.load %arg1[%c4_326, %c1_327, %c0_328] : memref<7x22x128xf32, #tpu.memory_space<vmem>>, vector<1x16x128xf32>
    %442 = vector.shape_cast %441 : vector<1x16x128xf32> to vector<16x128xf32>
    %443 = arith.maximumf %439, %442 : vector<16x128xf32>
    %444 = arith.minimumf %440, %442 : vector<16x128xf32>
    %445 = arith.subf %443, %444 : vector<16x128xf32>
    %446 = arith.addf %430, %445 : vector<16x128xf32>
    %c5_329 = arith.constant 5 : index
    %c1_330 = arith.constant 1 : index
    %c0_331 = arith.constant 0 : index
    %447 = vector.load %arg1[%c5_329, %c1_330, %c0_331] : memref<7x22x128xf32, #tpu.memory_space<vmem>>, vector<1x16x128xf32>
    %448 = vector.shape_cast %447 : vector<1x16x128xf32> to vector<16x128xf32>
    %c6_332 = arith.constant 6 : index
    %c1_333 = arith.constant 1 : index
    %c0_334 = arith.constant 0 : index
    %449 = vector.load %arg1[%c6_332, %c1_333, %c0_334] : memref<7x22x128xf32, #tpu.memory_space<vmem>>, vector<1x16x128xf32>
    %450 = vector.shape_cast %449 : vector<1x16x128xf32> to vector<16x128xf32>
    %451 = arith.maximumf %448, %450 : vector<16x128xf32>
    %452 = arith.minimumf %448, %450 : vector<16x128xf32>
    %c1_335 = arith.constant 1 : index
    %c2_336 = arith.constant 2 : index
    %c0_337 = arith.constant 0 : index
    %453 = vector.load %arg1[%c1_335, %c2_336, %c0_337] : memref<7x22x128xf32, #tpu.memory_space<vmem>>, vector<1x16x128xf32>
    %454 = vector.shape_cast %453 : vector<1x16x128xf32> to vector<16x128xf32>
    %455 = arith.maximumf %451, %454 : vector<16x128xf32>
    %456 = arith.minimumf %452, %454 : vector<16x128xf32>
    %c2_338 = arith.constant 2 : index
    %c2_339 = arith.constant 2 : index
    %c0_340 = arith.constant 0 : index
    %457 = vector.load %arg1[%c2_338, %c2_339, %c0_340] : memref<7x22x128xf32, #tpu.memory_space<vmem>>, vector<1x16x128xf32>
    %458 = vector.shape_cast %457 : vector<1x16x128xf32> to vector<16x128xf32>
    %459 = arith.maximumf %455, %458 : vector<16x128xf32>
    %460 = arith.minimumf %456, %458 : vector<16x128xf32>
    %461 = arith.subf %459, %460 : vector<16x128xf32>
    %462 = arith.addf %446, %461 : vector<16x128xf32>
    %c3_341 = arith.constant 3 : index
    %c2_342 = arith.constant 2 : index
    %c0_343 = arith.constant 0 : index
    %463 = vector.load %arg1[%c3_341, %c2_342, %c0_343] : memref<7x22x128xf32, #tpu.memory_space<vmem>>, vector<1x16x128xf32>
    %464 = vector.shape_cast %463 : vector<1x16x128xf32> to vector<16x128xf32>
    %c4_344 = arith.constant 4 : index
    %c2_345 = arith.constant 2 : index
    %c0_346 = arith.constant 0 : index
    %465 = vector.load %arg1[%c4_344, %c2_345, %c0_346] : memref<7x22x128xf32, #tpu.memory_space<vmem>>, vector<1x16x128xf32>
    %466 = vector.shape_cast %465 : vector<1x16x128xf32> to vector<16x128xf32>
    %467 = arith.maximumf %464, %466 : vector<16x128xf32>
    %468 = arith.minimumf %464, %466 : vector<16x128xf32>
    %c5_347 = arith.constant 5 : index
    %c2_348 = arith.constant 2 : index
    %c0_349 = arith.constant 0 : index
    %469 = vector.load %arg1[%c5_347, %c2_348, %c0_349] : memref<7x22x128xf32, #tpu.memory_space<vmem>>, vector<1x16x128xf32>
    %470 = vector.shape_cast %469 : vector<1x16x128xf32> to vector<16x128xf32>
    %471 = arith.maximumf %467, %470 : vector<16x128xf32>
    %472 = arith.minimumf %468, %470 : vector<16x128xf32>
    %c6_350 = arith.constant 6 : index
    %c2_351 = arith.constant 2 : index
    %c0_352 = arith.constant 0 : index
    %473 = vector.load %arg1[%c6_350, %c2_351, %c0_352] : memref<7x22x128xf32, #tpu.memory_space<vmem>>, vector<1x16x128xf32>
    %474 = vector.shape_cast %473 : vector<1x16x128xf32> to vector<16x128xf32>
    %475 = arith.maximumf %471, %474 : vector<16x128xf32>
    %476 = arith.minimumf %472, %474 : vector<16x128xf32>
    %477 = arith.subf %475, %476 : vector<16x128xf32>
    %478 = arith.addf %462, %477 : vector<16x128xf32>
    %c1_353 = arith.constant 1 : index
    %c3_354 = arith.constant 3 : index
    %c0_355 = arith.constant 0 : index
    %479 = vector.load %arg1[%c1_353, %c3_354, %c0_355] : memref<7x22x128xf32, #tpu.memory_space<vmem>>, vector<1x16x128xf32>
    %480 = vector.shape_cast %479 : vector<1x16x128xf32> to vector<16x128xf32>
    %c2_356 = arith.constant 2 : index
    %c3_357 = arith.constant 3 : index
    %c0_358 = arith.constant 0 : index
    %481 = vector.load %arg1[%c2_356, %c3_357, %c0_358] : memref<7x22x128xf32, #tpu.memory_space<vmem>>, vector<1x16x128xf32>
    %482 = vector.shape_cast %481 : vector<1x16x128xf32> to vector<16x128xf32>
    %483 = arith.maximumf %480, %482 : vector<16x128xf32>
    %484 = arith.minimumf %480, %482 : vector<16x128xf32>
    %c3_359 = arith.constant 3 : index
    %c3_360 = arith.constant 3 : index
    %c0_361 = arith.constant 0 : index
    %485 = vector.load %arg1[%c3_359, %c3_360, %c0_361] : memref<7x22x128xf32, #tpu.memory_space<vmem>>, vector<1x16x128xf32>
    %486 = vector.shape_cast %485 : vector<1x16x128xf32> to vector<16x128xf32>
    %487 = arith.maximumf %483, %486 : vector<16x128xf32>
    %488 = arith.minimumf %484, %486 : vector<16x128xf32>
    %c4_362 = arith.constant 4 : index
    %c3_363 = arith.constant 3 : index
    %c0_364 = arith.constant 0 : index
    %489 = vector.load %arg1[%c4_362, %c3_363, %c0_364] : memref<7x22x128xf32, #tpu.memory_space<vmem>>, vector<1x16x128xf32>
    %490 = vector.shape_cast %489 : vector<1x16x128xf32> to vector<16x128xf32>
    %491 = arith.maximumf %487, %490 : vector<16x128xf32>
    %492 = arith.minimumf %488, %490 : vector<16x128xf32>
    %493 = arith.subf %491, %492 : vector<16x128xf32>
    %494 = arith.addf %478, %493 : vector<16x128xf32>
    %c5_365 = arith.constant 5 : index
    %c3_366 = arith.constant 3 : index
    %c0_367 = arith.constant 0 : index
    %495 = vector.load %arg1[%c5_365, %c3_366, %c0_367] : memref<7x22x128xf32, #tpu.memory_space<vmem>>, vector<1x16x128xf32>
    %496 = vector.shape_cast %495 : vector<1x16x128xf32> to vector<16x128xf32>
    %c6_368 = arith.constant 6 : index
    %c3_369 = arith.constant 3 : index
    %c0_370 = arith.constant 0 : index
    %497 = vector.load %arg1[%c6_368, %c3_369, %c0_370] : memref<7x22x128xf32, #tpu.memory_space<vmem>>, vector<1x16x128xf32>
    %498 = vector.shape_cast %497 : vector<1x16x128xf32> to vector<16x128xf32>
    %499 = arith.maximumf %496, %498 : vector<16x128xf32>
    %500 = arith.minimumf %496, %498 : vector<16x128xf32>
    %c1_371 = arith.constant 1 : index
    %c4_372 = arith.constant 4 : index
    %c0_373 = arith.constant 0 : index
    %501 = vector.load %arg1[%c1_371, %c4_372, %c0_373] : memref<7x22x128xf32, #tpu.memory_space<vmem>>, vector<1x16x128xf32>
    %502 = vector.shape_cast %501 : vector<1x16x128xf32> to vector<16x128xf32>
    %503 = arith.maximumf %499, %502 : vector<16x128xf32>
    %504 = arith.minimumf %500, %502 : vector<16x128xf32>
    %c2_374 = arith.constant 2 : index
    %c4_375 = arith.constant 4 : index
    %c0_376 = arith.constant 0 : index
    %505 = vector.load %arg1[%c2_374, %c4_375, %c0_376] : memref<7x22x128xf32, #tpu.memory_space<vmem>>, vector<1x16x128xf32>
    %506 = vector.shape_cast %505 : vector<1x16x128xf32> to vector<16x128xf32>
    %507 = arith.maximumf %503, %506 : vector<16x128xf32>
    %508 = arith.minimumf %504, %506 : vector<16x128xf32>
    %509 = arith.subf %507, %508 : vector<16x128xf32>
    %510 = arith.addf %494, %509 : vector<16x128xf32>
    %c3_377 = arith.constant 3 : index
    %c4_378 = arith.constant 4 : index
    %c0_379 = arith.constant 0 : index
    %511 = vector.load %arg1[%c3_377, %c4_378, %c0_379] : memref<7x22x128xf32, #tpu.memory_space<vmem>>, vector<1x16x128xf32>
    %512 = vector.shape_cast %511 : vector<1x16x128xf32> to vector<16x128xf32>
    %c4_380 = arith.constant 4 : index
    %c4_381 = arith.constant 4 : index
    %c0_382 = arith.constant 0 : index
    %513 = vector.load %arg1[%c4_380, %c4_381, %c0_382] : memref<7x22x128xf32, #tpu.memory_space<vmem>>, vector<1x16x128xf32>
    %514 = vector.shape_cast %513 : vector<1x16x128xf32> to vector<16x128xf32>
    %515 = arith.maximumf %512, %514 : vector<16x128xf32>
    %516 = arith.minimumf %512, %514 : vector<16x128xf32>
    %c5_383 = arith.constant 5 : index
    %c4_384 = arith.constant 4 : index
    %c0_385 = arith.constant 0 : index
    %517 = vector.load %arg1[%c5_383, %c4_384, %c0_385] : memref<7x22x128xf32, #tpu.memory_space<vmem>>, vector<1x16x128xf32>
    %518 = vector.shape_cast %517 : vector<1x16x128xf32> to vector<16x128xf32>
    %519 = arith.maximumf %515, %518 : vector<16x128xf32>
    %520 = arith.minimumf %516, %518 : vector<16x128xf32>
    %c6_386 = arith.constant 6 : index
    %c4_387 = arith.constant 4 : index
    %c0_388 = arith.constant 0 : index
    %521 = vector.load %arg1[%c6_386, %c4_387, %c0_388] : memref<7x22x128xf32, #tpu.memory_space<vmem>>, vector<1x16x128xf32>
    %522 = vector.shape_cast %521 : vector<1x16x128xf32> to vector<16x128xf32>
    %523 = arith.maximumf %519, %522 : vector<16x128xf32>
    %524 = arith.minimumf %520, %522 : vector<16x128xf32>
    %525 = arith.subf %523, %524 : vector<16x128xf32>
    %526 = arith.addf %510, %525 : vector<16x128xf32>
    %c1_389 = arith.constant 1 : index
    %c5_390 = arith.constant 5 : index
    %c0_391 = arith.constant 0 : index
    %527 = vector.load %arg1[%c1_389, %c5_390, %c0_391] : memref<7x22x128xf32, #tpu.memory_space<vmem>>, vector<1x16x128xf32>
    %528 = vector.shape_cast %527 : vector<1x16x128xf32> to vector<16x128xf32>
    %c2_392 = arith.constant 2 : index
    %c5_393 = arith.constant 5 : index
    %c0_394 = arith.constant 0 : index
    %529 = vector.load %arg1[%c2_392, %c5_393, %c0_394] : memref<7x22x128xf32, #tpu.memory_space<vmem>>, vector<1x16x128xf32>
    %530 = vector.shape_cast %529 : vector<1x16x128xf32> to vector<16x128xf32>
    %531 = arith.maximumf %528, %530 : vector<16x128xf32>
    %532 = arith.minimumf %528, %530 : vector<16x128xf32>
    %c3_395 = arith.constant 3 : index
    %c5_396 = arith.constant 5 : index
    %c0_397 = arith.constant 0 : index
    %533 = vector.load %arg1[%c3_395, %c5_396, %c0_397] : memref<7x22x128xf32, #tpu.memory_space<vmem>>, vector<1x16x128xf32>
    %534 = vector.shape_cast %533 : vector<1x16x128xf32> to vector<16x128xf32>
    %535 = arith.maximumf %531, %534 : vector<16x128xf32>
    %536 = arith.minimumf %532, %534 : vector<16x128xf32>
    %c4_398 = arith.constant 4 : index
    %c5_399 = arith.constant 5 : index
    %c0_400 = arith.constant 0 : index
    %537 = vector.load %arg1[%c4_398, %c5_399, %c0_400] : memref<7x22x128xf32, #tpu.memory_space<vmem>>, vector<1x16x128xf32>
    %538 = vector.shape_cast %537 : vector<1x16x128xf32> to vector<16x128xf32>
    %539 = arith.maximumf %535, %538 : vector<16x128xf32>
    %540 = arith.minimumf %536, %538 : vector<16x128xf32>
    %541 = arith.subf %539, %540 : vector<16x128xf32>
    %542 = arith.addf %526, %541 : vector<16x128xf32>
    %c5_401 = arith.constant 5 : index
    %c5_402 = arith.constant 5 : index
    %c0_403 = arith.constant 0 : index
    %543 = vector.load %arg1[%c5_401, %c5_402, %c0_403] : memref<7x22x128xf32, #tpu.memory_space<vmem>>, vector<1x16x128xf32>
    %544 = vector.shape_cast %543 : vector<1x16x128xf32> to vector<16x128xf32>
    %c6_404 = arith.constant 6 : index
    %c5_405 = arith.constant 5 : index
    %c0_406 = arith.constant 0 : index
    %545 = vector.load %arg1[%c6_404, %c5_405, %c0_406] : memref<7x22x128xf32, #tpu.memory_space<vmem>>, vector<1x16x128xf32>
    %546 = vector.shape_cast %545 : vector<1x16x128xf32> to vector<16x128xf32>
    %547 = arith.maximumf %544, %546 : vector<16x128xf32>
    %548 = arith.minimumf %544, %546 : vector<16x128xf32>
    %c1_407 = arith.constant 1 : index
    %c6_408 = arith.constant 6 : index
    %c0_409 = arith.constant 0 : index
    %549 = vector.load %arg1[%c1_407, %c6_408, %c0_409] : memref<7x22x128xf32, #tpu.memory_space<vmem>>, vector<1x16x128xf32>
    %550 = vector.shape_cast %549 : vector<1x16x128xf32> to vector<16x128xf32>
    %551 = arith.maximumf %547, %550 : vector<16x128xf32>
    %552 = arith.minimumf %548, %550 : vector<16x128xf32>
    %c2_410 = arith.constant 2 : index
    %c6_411 = arith.constant 6 : index
    %c0_412 = arith.constant 0 : index
    %553 = vector.load %arg1[%c2_410, %c6_411, %c0_412] : memref<7x22x128xf32, #tpu.memory_space<vmem>>, vector<1x16x128xf32>
    %554 = vector.shape_cast %553 : vector<1x16x128xf32> to vector<16x128xf32>
    %555 = arith.maximumf %551, %554 : vector<16x128xf32>
    %556 = arith.minimumf %552, %554 : vector<16x128xf32>
    %557 = arith.subf %555, %556 : vector<16x128xf32>
    %558 = arith.addf %542, %557 : vector<16x128xf32>
    %c3_413 = arith.constant 3 : index
    %c6_414 = arith.constant 6 : index
    %c0_415 = arith.constant 0 : index
    %559 = vector.load %arg1[%c3_413, %c6_414, %c0_415] : memref<7x22x128xf32, #tpu.memory_space<vmem>>, vector<1x16x128xf32>
    %560 = vector.shape_cast %559 : vector<1x16x128xf32> to vector<16x128xf32>
    %c4_416 = arith.constant 4 : index
    %c6_417 = arith.constant 6 : index
    %c0_418 = arith.constant 0 : index
    %561 = vector.load %arg1[%c4_416, %c6_417, %c0_418] : memref<7x22x128xf32, #tpu.memory_space<vmem>>, vector<1x16x128xf32>
    %562 = vector.shape_cast %561 : vector<1x16x128xf32> to vector<16x128xf32>
    %563 = arith.maximumf %560, %562 : vector<16x128xf32>
    %564 = arith.minimumf %560, %562 : vector<16x128xf32>
    %c5_419 = arith.constant 5 : index
    %c6_420 = arith.constant 6 : index
    %c0_421 = arith.constant 0 : index
    %565 = vector.load %arg1[%c5_419, %c6_420, %c0_421] : memref<7x22x128xf32, #tpu.memory_space<vmem>>, vector<1x16x128xf32>
    %566 = vector.shape_cast %565 : vector<1x16x128xf32> to vector<16x128xf32>
    %567 = arith.maximumf %563, %566 : vector<16x128xf32>
    %568 = arith.minimumf %564, %566 : vector<16x128xf32>
    %c6_422 = arith.constant 6 : index
    %c6_423 = arith.constant 6 : index
    %c0_424 = arith.constant 0 : index
    %569 = vector.load %arg1[%c6_422, %c6_423, %c0_424] : memref<7x22x128xf32, #tpu.memory_space<vmem>>, vector<1x16x128xf32>
    %570 = vector.shape_cast %569 : vector<1x16x128xf32> to vector<16x128xf32>
    %571 = arith.maximumf %567, %570 : vector<16x128xf32>
    %572 = arith.minimumf %568, %570 : vector<16x128xf32>
    %573 = arith.subf %571, %572 : vector<16x128xf32>
    %574 = arith.addf %558, %573 : vector<16x128xf32>
    %cst = arith.constant 3.500000e+00 : f32
    %575 = vector.broadcast %cst : f32 to vector<16x128xf32>
    %576 = arith.mulf %574, %575 : vector<16x128xf32>
    %cst_425 = arith.constant 3.600000e+01 : f32
    %577 = vector.broadcast %cst_425 : f32 to vector<16x128xf32>
    %578 = arith.addf %576, %577 : vector<16x128xf32>
    %579 = math.log %578 : vector<16x128xf32>
    %c0_426 = arith.constant 0 : index
    %c0_427 = arith.constant 0 : index
    %c0_428 = arith.constant 0 : index
    %580 = vector.load %arg1[%c0_426, %c0_427, %c0_428] : memref<7x22x128xf32, #tpu.memory_space<vmem>>, vector<1x16x128xf32>
    %581 = vector.shape_cast %580 : vector<1x16x128xf32> to vector<16x128xf32>
    %c1_429 = arith.constant 1 : index
    %c0_430 = arith.constant 0 : index
    %c0_431 = arith.constant 0 : index
    %582 = vector.load %arg1[%c1_429, %c0_430, %c0_431] : memref<7x22x128xf32, #tpu.memory_space<vmem>>, vector<1x16x128xf32>
    %583 = vector.shape_cast %582 : vector<1x16x128xf32> to vector<16x128xf32>
    %584 = arith.maximumf %581, %583 : vector<16x128xf32>
    %585 = arith.minimumf %581, %583 : vector<16x128xf32>
    %c2_432 = arith.constant 2 : index
    %c0_433 = arith.constant 0 : index
    %c0_434 = arith.constant 0 : index
    %586 = vector.load %arg1[%c2_432, %c0_433, %c0_434] : memref<7x22x128xf32, #tpu.memory_space<vmem>>, vector<1x16x128xf32>
    %587 = vector.shape_cast %586 : vector<1x16x128xf32> to vector<16x128xf32>
    %588 = arith.maximumf %584, %587 : vector<16x128xf32>
    %589 = arith.minimumf %585, %587 : vector<16x128xf32>
    %c3_435 = arith.constant 3 : index
    %c0_436 = arith.constant 0 : index
    %c0_437 = arith.constant 0 : index
    %590 = vector.load %arg1[%c3_435, %c0_436, %c0_437] : memref<7x22x128xf32, #tpu.memory_space<vmem>>, vector<1x16x128xf32>
    %591 = vector.shape_cast %590 : vector<1x16x128xf32> to vector<16x128xf32>
    %592 = arith.maximumf %588, %591 : vector<16x128xf32>
    %593 = arith.minimumf %589, %591 : vector<16x128xf32>
    %c4_438 = arith.constant 4 : index
    %c0_439 = arith.constant 0 : index
    %c0_440 = arith.constant 0 : index
    %594 = vector.load %arg1[%c4_438, %c0_439, %c0_440] : memref<7x22x128xf32, #tpu.memory_space<vmem>>, vector<1x16x128xf32>
    %595 = vector.shape_cast %594 : vector<1x16x128xf32> to vector<16x128xf32>
    %596 = arith.maximumf %592, %595 : vector<16x128xf32>
    %597 = arith.minimumf %593, %595 : vector<16x128xf32>
    %c0_441 = arith.constant 0 : index
    %c1_442 = arith.constant 1 : index
    %c0_443 = arith.constant 0 : index
    %598 = vector.load %arg1[%c0_441, %c1_442, %c0_443] : memref<7x22x128xf32, #tpu.memory_space<vmem>>, vector<1x16x128xf32>
    %599 = vector.shape_cast %598 : vector<1x16x128xf32> to vector<16x128xf32>
    %600 = arith.maximumf %596, %599 : vector<16x128xf32>
    %601 = arith.minimumf %597, %599 : vector<16x128xf32>
    %c1_444 = arith.constant 1 : index
    %c1_445 = arith.constant 1 : index
    %c0_446 = arith.constant 0 : index
    %602 = vector.load %arg1[%c1_444, %c1_445, %c0_446] : memref<7x22x128xf32, #tpu.memory_space<vmem>>, vector<1x16x128xf32>
    %603 = vector.shape_cast %602 : vector<1x16x128xf32> to vector<16x128xf32>
    %604 = arith.maximumf %600, %603 : vector<16x128xf32>
    %605 = arith.minimumf %601, %603 : vector<16x128xf32>
    %c2_447 = arith.constant 2 : index
    %c1_448 = arith.constant 1 : index
    %c0_449 = arith.constant 0 : index
    %606 = vector.load %arg1[%c2_447, %c1_448, %c0_449] : memref<7x22x128xf32, #tpu.memory_space<vmem>>, vector<1x16x128xf32>
    %607 = vector.shape_cast %606 : vector<1x16x128xf32> to vector<16x128xf32>
    %608 = arith.maximumf %604, %607 : vector<16x128xf32>
    %609 = arith.minimumf %605, %607 : vector<16x128xf32>
    %c3_450 = arith.constant 3 : index
    %c1_451 = arith.constant 1 : index
    %c0_452 = arith.constant 0 : index
    %610 = vector.load %arg1[%c3_450, %c1_451, %c0_452] : memref<7x22x128xf32, #tpu.memory_space<vmem>>, vector<1x16x128xf32>
    %611 = vector.shape_cast %610 : vector<1x16x128xf32> to vector<16x128xf32>
    %612 = arith.maximumf %608, %611 : vector<16x128xf32>
    %613 = arith.minimumf %609, %611 : vector<16x128xf32>
    %614 = arith.subf %612, %613 : vector<16x128xf32>
    %c4_453 = arith.constant 4 : index
    %c1_454 = arith.constant 1 : index
    %c0_455 = arith.constant 0 : index
    %615 = vector.load %arg1[%c4_453, %c1_454, %c0_455] : memref<7x22x128xf32, #tpu.memory_space<vmem>>, vector<1x16x128xf32>
    %616 = vector.shape_cast %615 : vector<1x16x128xf32> to vector<16x128xf32>
    %c0_456 = arith.constant 0 : index
    %c2_457 = arith.constant 2 : index
    %c0_458 = arith.constant 0 : index
    %617 = vector.load %arg1[%c0_456, %c2_457, %c0_458] : memref<7x22x128xf32, #tpu.memory_space<vmem>>, vector<1x16x128xf32>
    %618 = vector.shape_cast %617 : vector<1x16x128xf32> to vector<16x128xf32>
    %619 = arith.maximumf %616, %618 : vector<16x128xf32>
    %620 = arith.minimumf %616, %618 : vector<16x128xf32>
    %c1_459 = arith.constant 1 : index
    %c2_460 = arith.constant 2 : index
    %c0_461 = arith.constant 0 : index
    %621 = vector.load %arg1[%c1_459, %c2_460, %c0_461] : memref<7x22x128xf32, #tpu.memory_space<vmem>>, vector<1x16x128xf32>
    %622 = vector.shape_cast %621 : vector<1x16x128xf32> to vector<16x128xf32>
    %623 = arith.maximumf %619, %622 : vector<16x128xf32>
    %624 = arith.minimumf %620, %622 : vector<16x128xf32>
    %c2_462 = arith.constant 2 : index
    %c2_463 = arith.constant 2 : index
    %c0_464 = arith.constant 0 : index
    %625 = vector.load %arg1[%c2_462, %c2_463, %c0_464] : memref<7x22x128xf32, #tpu.memory_space<vmem>>, vector<1x16x128xf32>
    %626 = vector.shape_cast %625 : vector<1x16x128xf32> to vector<16x128xf32>
    %627 = arith.maximumf %623, %626 : vector<16x128xf32>
    %628 = arith.minimumf %624, %626 : vector<16x128xf32>
    %c3_465 = arith.constant 3 : index
    %c2_466 = arith.constant 2 : index
    %c0_467 = arith.constant 0 : index
    %629 = vector.load %arg1[%c3_465, %c2_466, %c0_467] : memref<7x22x128xf32, #tpu.memory_space<vmem>>, vector<1x16x128xf32>
    %630 = vector.shape_cast %629 : vector<1x16x128xf32> to vector<16x128xf32>
    %631 = arith.maximumf %627, %630 : vector<16x128xf32>
    %632 = arith.minimumf %628, %630 : vector<16x128xf32>
    %c4_468 = arith.constant 4 : index
    %c2_469 = arith.constant 2 : index
    %c0_470 = arith.constant 0 : index
    %633 = vector.load %arg1[%c4_468, %c2_469, %c0_470] : memref<7x22x128xf32, #tpu.memory_space<vmem>>, vector<1x16x128xf32>
    %634 = vector.shape_cast %633 : vector<1x16x128xf32> to vector<16x128xf32>
    %635 = arith.maximumf %631, %634 : vector<16x128xf32>
    %636 = arith.minimumf %632, %634 : vector<16x128xf32>
    %c0_471 = arith.constant 0 : index
    %c3_472 = arith.constant 3 : index
    %c0_473 = arith.constant 0 : index
    %637 = vector.load %arg1[%c0_471, %c3_472, %c0_473] : memref<7x22x128xf32, #tpu.memory_space<vmem>>, vector<1x16x128xf32>
    %638 = vector.shape_cast %637 : vector<1x16x128xf32> to vector<16x128xf32>
    %639 = arith.maximumf %635, %638 : vector<16x128xf32>
    %640 = arith.minimumf %636, %638 : vector<16x128xf32>
    %c1_474 = arith.constant 1 : index
    %c3_475 = arith.constant 3 : index
    %c0_476 = arith.constant 0 : index
    %641 = vector.load %arg1[%c1_474, %c3_475, %c0_476] : memref<7x22x128xf32, #tpu.memory_space<vmem>>, vector<1x16x128xf32>
    %642 = vector.shape_cast %641 : vector<1x16x128xf32> to vector<16x128xf32>
    %643 = arith.maximumf %639, %642 : vector<16x128xf32>
    %644 = arith.minimumf %640, %642 : vector<16x128xf32>
    %c2_477 = arith.constant 2 : index
    %c3_478 = arith.constant 3 : index
    %c0_479 = arith.constant 0 : index
    %645 = vector.load %arg1[%c2_477, %c3_478, %c0_479] : memref<7x22x128xf32, #tpu.memory_space<vmem>>, vector<1x16x128xf32>
    %646 = vector.shape_cast %645 : vector<1x16x128xf32> to vector<16x128xf32>
    %647 = arith.maximumf %643, %646 : vector<16x128xf32>
    %648 = arith.minimumf %644, %646 : vector<16x128xf32>
    %649 = arith.subf %647, %648 : vector<16x128xf32>
    %650 = arith.addf %614, %649 : vector<16x128xf32>
    %c3_480 = arith.constant 3 : index
    %c3_481 = arith.constant 3 : index
    %c0_482 = arith.constant 0 : index
    %651 = vector.load %arg1[%c3_480, %c3_481, %c0_482] : memref<7x22x128xf32, #tpu.memory_space<vmem>>, vector<1x16x128xf32>
    %652 = vector.shape_cast %651 : vector<1x16x128xf32> to vector<16x128xf32>
    %c4_483 = arith.constant 4 : index
    %c3_484 = arith.constant 3 : index
    %c0_485 = arith.constant 0 : index
    %653 = vector.load %arg1[%c4_483, %c3_484, %c0_485] : memref<7x22x128xf32, #tpu.memory_space<vmem>>, vector<1x16x128xf32>
    %654 = vector.shape_cast %653 : vector<1x16x128xf32> to vector<16x128xf32>
    %655 = arith.maximumf %652, %654 : vector<16x128xf32>
    %656 = arith.minimumf %652, %654 : vector<16x128xf32>
    %c0_486 = arith.constant 0 : index
    %c4_487 = arith.constant 4 : index
    %c0_488 = arith.constant 0 : index
    %657 = vector.load %arg1[%c0_486, %c4_487, %c0_488] : memref<7x22x128xf32, #tpu.memory_space<vmem>>, vector<1x16x128xf32>
    %658 = vector.shape_cast %657 : vector<1x16x128xf32> to vector<16x128xf32>
    %659 = arith.maximumf %655, %658 : vector<16x128xf32>
    %660 = arith.minimumf %656, %658 : vector<16x128xf32>
    %c1_489 = arith.constant 1 : index
    %c4_490 = arith.constant 4 : index
    %c0_491 = arith.constant 0 : index
    %661 = vector.load %arg1[%c1_489, %c4_490, %c0_491] : memref<7x22x128xf32, #tpu.memory_space<vmem>>, vector<1x16x128xf32>
    %662 = vector.shape_cast %661 : vector<1x16x128xf32> to vector<16x128xf32>
    %663 = arith.maximumf %659, %662 : vector<16x128xf32>
    %664 = arith.minimumf %660, %662 : vector<16x128xf32>
    %c2_492 = arith.constant 2 : index
    %c4_493 = arith.constant 4 : index
    %c0_494 = arith.constant 0 : index
    %665 = vector.load %arg1[%c2_492, %c4_493, %c0_494] : memref<7x22x128xf32, #tpu.memory_space<vmem>>, vector<1x16x128xf32>
    %666 = vector.shape_cast %665 : vector<1x16x128xf32> to vector<16x128xf32>
    %667 = arith.maximumf %663, %666 : vector<16x128xf32>
    %668 = arith.minimumf %664, %666 : vector<16x128xf32>
    %c3_495 = arith.constant 3 : index
    %c4_496 = arith.constant 4 : index
    %c0_497 = arith.constant 0 : index
    %669 = vector.load %arg1[%c3_495, %c4_496, %c0_497] : memref<7x22x128xf32, #tpu.memory_space<vmem>>, vector<1x16x128xf32>
    %670 = vector.shape_cast %669 : vector<1x16x128xf32> to vector<16x128xf32>
    %671 = arith.maximumf %667, %670 : vector<16x128xf32>
    %672 = arith.minimumf %668, %670 : vector<16x128xf32>
    %c4_498 = arith.constant 4 : index
    %c4_499 = arith.constant 4 : index
    %c0_500 = arith.constant 0 : index
    %673 = vector.load %arg1[%c4_498, %c4_499, %c0_500] : memref<7x22x128xf32, #tpu.memory_space<vmem>>, vector<1x16x128xf32>
    %674 = vector.shape_cast %673 : vector<1x16x128xf32> to vector<16x128xf32>
    %675 = arith.maximumf %671, %674 : vector<16x128xf32>
    %676 = arith.minimumf %672, %674 : vector<16x128xf32>
    %c1_501 = arith.constant 1 : index
    %c0_502 = arith.constant 0 : index
    %c0_503 = arith.constant 0 : index
    %677 = vector.load %arg1[%c1_501, %c0_502, %c0_503] : memref<7x22x128xf32, #tpu.memory_space<vmem>>, vector<1x16x128xf32>
    %678 = vector.shape_cast %677 : vector<1x16x128xf32> to vector<16x128xf32>
    %679 = arith.maximumf %675, %678 : vector<16x128xf32>
    %680 = arith.minimumf %676, %678 : vector<16x128xf32>
    %c2_504 = arith.constant 2 : index
    %c0_505 = arith.constant 0 : index
    %c0_506 = arith.constant 0 : index
    %681 = vector.load %arg1[%c2_504, %c0_505, %c0_506] : memref<7x22x128xf32, #tpu.memory_space<vmem>>, vector<1x16x128xf32>
    %682 = vector.shape_cast %681 : vector<1x16x128xf32> to vector<16x128xf32>
    %683 = arith.maximumf %679, %682 : vector<16x128xf32>
    %684 = arith.minimumf %680, %682 : vector<16x128xf32>
    %685 = arith.subf %683, %684 : vector<16x128xf32>
    %686 = arith.addf %650, %685 : vector<16x128xf32>
    %c3_507 = arith.constant 3 : index
    %c0_508 = arith.constant 0 : index
    %c0_509 = arith.constant 0 : index
    %687 = vector.load %arg1[%c3_507, %c0_508, %c0_509] : memref<7x22x128xf32, #tpu.memory_space<vmem>>, vector<1x16x128xf32>
    %688 = vector.shape_cast %687 : vector<1x16x128xf32> to vector<16x128xf32>
    %c4_510 = arith.constant 4 : index
    %c0_511 = arith.constant 0 : index
    %c0_512 = arith.constant 0 : index
    %689 = vector.load %arg1[%c4_510, %c0_511, %c0_512] : memref<7x22x128xf32, #tpu.memory_space<vmem>>, vector<1x16x128xf32>
    %690 = vector.shape_cast %689 : vector<1x16x128xf32> to vector<16x128xf32>
    %691 = arith.maximumf %688, %690 : vector<16x128xf32>
    %692 = arith.minimumf %688, %690 : vector<16x128xf32>
    %c5_513 = arith.constant 5 : index
    %c0_514 = arith.constant 0 : index
    %c0_515 = arith.constant 0 : index
    %693 = vector.load %arg1[%c5_513, %c0_514, %c0_515] : memref<7x22x128xf32, #tpu.memory_space<vmem>>, vector<1x16x128xf32>
    %694 = vector.shape_cast %693 : vector<1x16x128xf32> to vector<16x128xf32>
    %695 = arith.maximumf %691, %694 : vector<16x128xf32>
    %696 = arith.minimumf %692, %694 : vector<16x128xf32>
    %c1_516 = arith.constant 1 : index
    %c1_517 = arith.constant 1 : index
    %c0_518 = arith.constant 0 : index
    %697 = vector.load %arg1[%c1_516, %c1_517, %c0_518] : memref<7x22x128xf32, #tpu.memory_space<vmem>>, vector<1x16x128xf32>
    %698 = vector.shape_cast %697 : vector<1x16x128xf32> to vector<16x128xf32>
    %699 = arith.maximumf %695, %698 : vector<16x128xf32>
    %700 = arith.minimumf %696, %698 : vector<16x128xf32>
    %c2_519 = arith.constant 2 : index
    %c1_520 = arith.constant 1 : index
    %c0_521 = arith.constant 0 : index
    %701 = vector.load %arg1[%c2_519, %c1_520, %c0_521] : memref<7x22x128xf32, #tpu.memory_space<vmem>>, vector<1x16x128xf32>
    %702 = vector.shape_cast %701 : vector<1x16x128xf32> to vector<16x128xf32>
    %703 = arith.maximumf %699, %702 : vector<16x128xf32>
    %704 = arith.minimumf %700, %702 : vector<16x128xf32>
    %c3_522 = arith.constant 3 : index
    %c1_523 = arith.constant 1 : index
    %c0_524 = arith.constant 0 : index
    %705 = vector.load %arg1[%c3_522, %c1_523, %c0_524] : memref<7x22x128xf32, #tpu.memory_space<vmem>>, vector<1x16x128xf32>
    %706 = vector.shape_cast %705 : vector<1x16x128xf32> to vector<16x128xf32>
    %707 = arith.maximumf %703, %706 : vector<16x128xf32>
    %708 = arith.minimumf %704, %706 : vector<16x128xf32>
    %c4_525 = arith.constant 4 : index
    %c1_526 = arith.constant 1 : index
    %c0_527 = arith.constant 0 : index
    %709 = vector.load %arg1[%c4_525, %c1_526, %c0_527] : memref<7x22x128xf32, #tpu.memory_space<vmem>>, vector<1x16x128xf32>
    %710 = vector.shape_cast %709 : vector<1x16x128xf32> to vector<16x128xf32>
    %711 = arith.maximumf %707, %710 : vector<16x128xf32>
    %712 = arith.minimumf %708, %710 : vector<16x128xf32>
    %c5_528 = arith.constant 5 : index
    %c1_529 = arith.constant 1 : index
    %c0_530 = arith.constant 0 : index
    %713 = vector.load %arg1[%c5_528, %c1_529, %c0_530] : memref<7x22x128xf32, #tpu.memory_space<vmem>>, vector<1x16x128xf32>
    %714 = vector.shape_cast %713 : vector<1x16x128xf32> to vector<16x128xf32>
    %715 = arith.maximumf %711, %714 : vector<16x128xf32>
    %716 = arith.minimumf %712, %714 : vector<16x128xf32>
    %c1_531 = arith.constant 1 : index
    %c2_532 = arith.constant 2 : index
    %c0_533 = arith.constant 0 : index
    %717 = vector.load %arg1[%c1_531, %c2_532, %c0_533] : memref<7x22x128xf32, #tpu.memory_space<vmem>>, vector<1x16x128xf32>
    %718 = vector.shape_cast %717 : vector<1x16x128xf32> to vector<16x128xf32>
    %719 = arith.maximumf %715, %718 : vector<16x128xf32>
    %720 = arith.minimumf %716, %718 : vector<16x128xf32>
    %721 = arith.subf %719, %720 : vector<16x128xf32>
    %722 = arith.addf %686, %721 : vector<16x128xf32>
    %c2_534 = arith.constant 2 : index
    %c2_535 = arith.constant 2 : index
    %c0_536 = arith.constant 0 : index
    %723 = vector.load %arg1[%c2_534, %c2_535, %c0_536] : memref<7x22x128xf32, #tpu.memory_space<vmem>>, vector<1x16x128xf32>
    %724 = vector.shape_cast %723 : vector<1x16x128xf32> to vector<16x128xf32>
    %c3_537 = arith.constant 3 : index
    %c2_538 = arith.constant 2 : index
    %c0_539 = arith.constant 0 : index
    %725 = vector.load %arg1[%c3_537, %c2_538, %c0_539] : memref<7x22x128xf32, #tpu.memory_space<vmem>>, vector<1x16x128xf32>
    %726 = vector.shape_cast %725 : vector<1x16x128xf32> to vector<16x128xf32>
    %727 = arith.maximumf %724, %726 : vector<16x128xf32>
    %728 = arith.minimumf %724, %726 : vector<16x128xf32>
    %c4_540 = arith.constant 4 : index
    %c2_541 = arith.constant 2 : index
    %c0_542 = arith.constant 0 : index
    %729 = vector.load %arg1[%c4_540, %c2_541, %c0_542] : memref<7x22x128xf32, #tpu.memory_space<vmem>>, vector<1x16x128xf32>
    %730 = vector.shape_cast %729 : vector<1x16x128xf32> to vector<16x128xf32>
    %731 = arith.maximumf %727, %730 : vector<16x128xf32>
    %732 = arith.minimumf %728, %730 : vector<16x128xf32>
    %c5_543 = arith.constant 5 : index
    %c2_544 = arith.constant 2 : index
    %c0_545 = arith.constant 0 : index
    %733 = vector.load %arg1[%c5_543, %c2_544, %c0_545] : memref<7x22x128xf32, #tpu.memory_space<vmem>>, vector<1x16x128xf32>
    %734 = vector.shape_cast %733 : vector<1x16x128xf32> to vector<16x128xf32>
    %735 = arith.maximumf %731, %734 : vector<16x128xf32>
    %736 = arith.minimumf %732, %734 : vector<16x128xf32>
    %c1_546 = arith.constant 1 : index
    %c3_547 = arith.constant 3 : index
    %c0_548 = arith.constant 0 : index
    %737 = vector.load %arg1[%c1_546, %c3_547, %c0_548] : memref<7x22x128xf32, #tpu.memory_space<vmem>>, vector<1x16x128xf32>
    %738 = vector.shape_cast %737 : vector<1x16x128xf32> to vector<16x128xf32>
    %739 = arith.maximumf %735, %738 : vector<16x128xf32>
    %740 = arith.minimumf %736, %738 : vector<16x128xf32>
    %c2_549 = arith.constant 2 : index
    %c3_550 = arith.constant 3 : index
    %c0_551 = arith.constant 0 : index
    %741 = vector.load %arg1[%c2_549, %c3_550, %c0_551] : memref<7x22x128xf32, #tpu.memory_space<vmem>>, vector<1x16x128xf32>
    %742 = vector.shape_cast %741 : vector<1x16x128xf32> to vector<16x128xf32>
    %743 = arith.maximumf %739, %742 : vector<16x128xf32>
    %744 = arith.minimumf %740, %742 : vector<16x128xf32>
    %c3_552 = arith.constant 3 : index
    %c3_553 = arith.constant 3 : index
    %c0_554 = arith.constant 0 : index
    %745 = vector.load %arg1[%c3_552, %c3_553, %c0_554] : memref<7x22x128xf32, #tpu.memory_space<vmem>>, vector<1x16x128xf32>
    %746 = vector.shape_cast %745 : vector<1x16x128xf32> to vector<16x128xf32>
    %747 = arith.maximumf %743, %746 : vector<16x128xf32>
    %748 = arith.minimumf %744, %746 : vector<16x128xf32>
    %c4_555 = arith.constant 4 : index
    %c3_556 = arith.constant 3 : index
    %c0_557 = arith.constant 0 : index
    %749 = vector.load %arg1[%c4_555, %c3_556, %c0_557] : memref<7x22x128xf32, #tpu.memory_space<vmem>>, vector<1x16x128xf32>
    %750 = vector.shape_cast %749 : vector<1x16x128xf32> to vector<16x128xf32>
    %751 = arith.maximumf %747, %750 : vector<16x128xf32>
    %752 = arith.minimumf %748, %750 : vector<16x128xf32>
    %c5_558 = arith.constant 5 : index
    %c3_559 = arith.constant 3 : index
    %c0_560 = arith.constant 0 : index
    %753 = vector.load %arg1[%c5_558, %c3_559, %c0_560] : memref<7x22x128xf32, #tpu.memory_space<vmem>>, vector<1x16x128xf32>
    %754 = vector.shape_cast %753 : vector<1x16x128xf32> to vector<16x128xf32>
    %755 = arith.maximumf %751, %754 : vector<16x128xf32>
    %756 = arith.minimumf %752, %754 : vector<16x128xf32>
    %757 = arith.subf %755, %756 : vector<16x128xf32>
    %758 = arith.addf %722, %757 : vector<16x128xf32>
    %c1_561 = arith.constant 1 : index
    %c4_562 = arith.constant 4 : index
    %c0_563 = arith.constant 0 : index
    %759 = vector.load %arg1[%c1_561, %c4_562, %c0_563] : memref<7x22x128xf32, #tpu.memory_space<vmem>>, vector<1x16x128xf32>
    %760 = vector.shape_cast %759 : vector<1x16x128xf32> to vector<16x128xf32>
    %c2_564 = arith.constant 2 : index
    %c4_565 = arith.constant 4 : index
    %c0_566 = arith.constant 0 : index
    %761 = vector.load %arg1[%c2_564, %c4_565, %c0_566] : memref<7x22x128xf32, #tpu.memory_space<vmem>>, vector<1x16x128xf32>
    %762 = vector.shape_cast %761 : vector<1x16x128xf32> to vector<16x128xf32>
    %763 = arith.maximumf %760, %762 : vector<16x128xf32>
    %764 = arith.minimumf %760, %762 : vector<16x128xf32>
    %c3_567 = arith.constant 3 : index
    %c4_568 = arith.constant 4 : index
    %c0_569 = arith.constant 0 : index
    %765 = vector.load %arg1[%c3_567, %c4_568, %c0_569] : memref<7x22x128xf32, #tpu.memory_space<vmem>>, vector<1x16x128xf32>
    %766 = vector.shape_cast %765 : vector<1x16x128xf32> to vector<16x128xf32>
    %767 = arith.maximumf %763, %766 : vector<16x128xf32>
    %768 = arith.minimumf %764, %766 : vector<16x128xf32>
    %c4_570 = arith.constant 4 : index
    %c4_571 = arith.constant 4 : index
    %c0_572 = arith.constant 0 : index
    %769 = vector.load %arg1[%c4_570, %c4_571, %c0_572] : memref<7x22x128xf32, #tpu.memory_space<vmem>>, vector<1x16x128xf32>
    %770 = vector.shape_cast %769 : vector<1x16x128xf32> to vector<16x128xf32>
    %771 = arith.maximumf %767, %770 : vector<16x128xf32>
    %772 = arith.minimumf %768, %770 : vector<16x128xf32>
    %c5_573 = arith.constant 5 : index
    %c4_574 = arith.constant 4 : index
    %c0_575 = arith.constant 0 : index
    %773 = vector.load %arg1[%c5_573, %c4_574, %c0_575] : memref<7x22x128xf32, #tpu.memory_space<vmem>>, vector<1x16x128xf32>
    %774 = vector.shape_cast %773 : vector<1x16x128xf32> to vector<16x128xf32>
    %775 = arith.maximumf %771, %774 : vector<16x128xf32>
    %776 = arith.minimumf %772, %774 : vector<16x128xf32>
    %c2_576 = arith.constant 2 : index
    %c0_577 = arith.constant 0 : index
    %c0_578 = arith.constant 0 : index
    %777 = vector.load %arg1[%c2_576, %c0_577, %c0_578] : memref<7x22x128xf32, #tpu.memory_space<vmem>>, vector<1x16x128xf32>
    %778 = vector.shape_cast %777 : vector<1x16x128xf32> to vector<16x128xf32>
    %779 = arith.maximumf %775, %778 : vector<16x128xf32>
    %780 = arith.minimumf %776, %778 : vector<16x128xf32>
    %c3_579 = arith.constant 3 : index
    %c0_580 = arith.constant 0 : index
    %c0_581 = arith.constant 0 : index
    %781 = vector.load %arg1[%c3_579, %c0_580, %c0_581] : memref<7x22x128xf32, #tpu.memory_space<vmem>>, vector<1x16x128xf32>
    %782 = vector.shape_cast %781 : vector<1x16x128xf32> to vector<16x128xf32>
    %783 = arith.maximumf %779, %782 : vector<16x128xf32>
    %784 = arith.minimumf %780, %782 : vector<16x128xf32>
    %c4_582 = arith.constant 4 : index
    %c0_583 = arith.constant 0 : index
    %c0_584 = arith.constant 0 : index
    %785 = vector.load %arg1[%c4_582, %c0_583, %c0_584] : memref<7x22x128xf32, #tpu.memory_space<vmem>>, vector<1x16x128xf32>
    %786 = vector.shape_cast %785 : vector<1x16x128xf32> to vector<16x128xf32>
    %787 = arith.maximumf %783, %786 : vector<16x128xf32>
    %788 = arith.minimumf %784, %786 : vector<16x128xf32>
    %c5_585 = arith.constant 5 : index
    %c0_586 = arith.constant 0 : index
    %c0_587 = arith.constant 0 : index
    %789 = vector.load %arg1[%c5_585, %c0_586, %c0_587] : memref<7x22x128xf32, #tpu.memory_space<vmem>>, vector<1x16x128xf32>
    %790 = vector.shape_cast %789 : vector<1x16x128xf32> to vector<16x128xf32>
    %791 = arith.maximumf %787, %790 : vector<16x128xf32>
    %792 = arith.minimumf %788, %790 : vector<16x128xf32>
    %793 = arith.subf %791, %792 : vector<16x128xf32>
    %794 = arith.addf %758, %793 : vector<16x128xf32>
    %c6_588 = arith.constant 6 : index
    %c0_589 = arith.constant 0 : index
    %c0_590 = arith.constant 0 : index
    %795 = vector.load %arg1[%c6_588, %c0_589, %c0_590] : memref<7x22x128xf32, #tpu.memory_space<vmem>>, vector<1x16x128xf32>
    %796 = vector.shape_cast %795 : vector<1x16x128xf32> to vector<16x128xf32>
    %c2_591 = arith.constant 2 : index
    %c1_592 = arith.constant 1 : index
    %c0_593 = arith.constant 0 : index
    %797 = vector.load %arg1[%c2_591, %c1_592, %c0_593] : memref<7x22x128xf32, #tpu.memory_space<vmem>>, vector<1x16x128xf32>
    %798 = vector.shape_cast %797 : vector<1x16x128xf32> to vector<16x128xf32>
    %799 = arith.maximumf %796, %798 : vector<16x128xf32>
    %800 = arith.minimumf %796, %798 : vector<16x128xf32>
    %c3_594 = arith.constant 3 : index
    %c1_595 = arith.constant 1 : index
    %c0_596 = arith.constant 0 : index
    %801 = vector.load %arg1[%c3_594, %c1_595, %c0_596] : memref<7x22x128xf32, #tpu.memory_space<vmem>>, vector<1x16x128xf32>
    %802 = vector.shape_cast %801 : vector<1x16x128xf32> to vector<16x128xf32>
    %803 = arith.maximumf %799, %802 : vector<16x128xf32>
    %804 = arith.minimumf %800, %802 : vector<16x128xf32>
    %c4_597 = arith.constant 4 : index
    %c1_598 = arith.constant 1 : index
    %c0_599 = arith.constant 0 : index
    %805 = vector.load %arg1[%c4_597, %c1_598, %c0_599] : memref<7x22x128xf32, #tpu.memory_space<vmem>>, vector<1x16x128xf32>
    %806 = vector.shape_cast %805 : vector<1x16x128xf32> to vector<16x128xf32>
    %807 = arith.maximumf %803, %806 : vector<16x128xf32>
    %808 = arith.minimumf %804, %806 : vector<16x128xf32>
    %c5_600 = arith.constant 5 : index
    %c1_601 = arith.constant 1 : index
    %c0_602 = arith.constant 0 : index
    %809 = vector.load %arg1[%c5_600, %c1_601, %c0_602] : memref<7x22x128xf32, #tpu.memory_space<vmem>>, vector<1x16x128xf32>
    %810 = vector.shape_cast %809 : vector<1x16x128xf32> to vector<16x128xf32>
    %811 = arith.maximumf %807, %810 : vector<16x128xf32>
    %812 = arith.minimumf %808, %810 : vector<16x128xf32>
    %c6_603 = arith.constant 6 : index
    %c1_604 = arith.constant 1 : index
    %c0_605 = arith.constant 0 : index
    %813 = vector.load %arg1[%c6_603, %c1_604, %c0_605] : memref<7x22x128xf32, #tpu.memory_space<vmem>>, vector<1x16x128xf32>
    %814 = vector.shape_cast %813 : vector<1x16x128xf32> to vector<16x128xf32>
    %815 = arith.maximumf %811, %814 : vector<16x128xf32>
    %816 = arith.minimumf %812, %814 : vector<16x128xf32>
    %c2_606 = arith.constant 2 : index
    %c2_607 = arith.constant 2 : index
    %c0_608 = arith.constant 0 : index
    %817 = vector.load %arg1[%c2_606, %c2_607, %c0_608] : memref<7x22x128xf32, #tpu.memory_space<vmem>>, vector<1x16x128xf32>
    %818 = vector.shape_cast %817 : vector<1x16x128xf32> to vector<16x128xf32>
    %819 = arith.maximumf %815, %818 : vector<16x128xf32>
    %820 = arith.minimumf %816, %818 : vector<16x128xf32>
    %c3_609 = arith.constant 3 : index
    %c2_610 = arith.constant 2 : index
    %c0_611 = arith.constant 0 : index
    %821 = vector.load %arg1[%c3_609, %c2_610, %c0_611] : memref<7x22x128xf32, #tpu.memory_space<vmem>>, vector<1x16x128xf32>
    %822 = vector.shape_cast %821 : vector<1x16x128xf32> to vector<16x128xf32>
    %823 = arith.maximumf %819, %822 : vector<16x128xf32>
    %824 = arith.minimumf %820, %822 : vector<16x128xf32>
    %c4_612 = arith.constant 4 : index
    %c2_613 = arith.constant 2 : index
    %c0_614 = arith.constant 0 : index
    %825 = vector.load %arg1[%c4_612, %c2_613, %c0_614] : memref<7x22x128xf32, #tpu.memory_space<vmem>>, vector<1x16x128xf32>
    %826 = vector.shape_cast %825 : vector<1x16x128xf32> to vector<16x128xf32>
    %827 = arith.maximumf %823, %826 : vector<16x128xf32>
    %828 = arith.minimumf %824, %826 : vector<16x128xf32>
    %829 = arith.subf %827, %828 : vector<16x128xf32>
    %830 = arith.addf %794, %829 : vector<16x128xf32>
    %c5_615 = arith.constant 5 : index
    %c2_616 = arith.constant 2 : index
    %c0_617 = arith.constant 0 : index
    %831 = vector.load %arg1[%c5_615, %c2_616, %c0_617] : memref<7x22x128xf32, #tpu.memory_space<vmem>>, vector<1x16x128xf32>
    %832 = vector.shape_cast %831 : vector<1x16x128xf32> to vector<16x128xf32>
    %c6_618 = arith.constant 6 : index
    %c2_619 = arith.constant 2 : index
    %c0_620 = arith.constant 0 : index
    %833 = vector.load %arg1[%c6_618, %c2_619, %c0_620] : memref<7x22x128xf32, #tpu.memory_space<vmem>>, vector<1x16x128xf32>
    %834 = vector.shape_cast %833 : vector<1x16x128xf32> to vector<16x128xf32>
    %835 = arith.maximumf %832, %834 : vector<16x128xf32>
    %836 = arith.minimumf %832, %834 : vector<16x128xf32>
    %c2_621 = arith.constant 2 : index
    %c3_622 = arith.constant 3 : index
    %c0_623 = arith.constant 0 : index
    %837 = vector.load %arg1[%c2_621, %c3_622, %c0_623] : memref<7x22x128xf32, #tpu.memory_space<vmem>>, vector<1x16x128xf32>
    %838 = vector.shape_cast %837 : vector<1x16x128xf32> to vector<16x128xf32>
    %839 = arith.maximumf %835, %838 : vector<16x128xf32>
    %840 = arith.minimumf %836, %838 : vector<16x128xf32>
    %c3_624 = arith.constant 3 : index
    %c3_625 = arith.constant 3 : index
    %c0_626 = arith.constant 0 : index
    %841 = vector.load %arg1[%c3_624, %c3_625, %c0_626] : memref<7x22x128xf32, #tpu.memory_space<vmem>>, vector<1x16x128xf32>
    %842 = vector.shape_cast %841 : vector<1x16x128xf32> to vector<16x128xf32>
    %843 = arith.maximumf %839, %842 : vector<16x128xf32>
    %844 = arith.minimumf %840, %842 : vector<16x128xf32>
    %c4_627 = arith.constant 4 : index
    %c3_628 = arith.constant 3 : index
    %c0_629 = arith.constant 0 : index
    %845 = vector.load %arg1[%c4_627, %c3_628, %c0_629] : memref<7x22x128xf32, #tpu.memory_space<vmem>>, vector<1x16x128xf32>
    %846 = vector.shape_cast %845 : vector<1x16x128xf32> to vector<16x128xf32>
    %847 = arith.maximumf %843, %846 : vector<16x128xf32>
    %848 = arith.minimumf %844, %846 : vector<16x128xf32>
    %c5_630 = arith.constant 5 : index
    %c3_631 = arith.constant 3 : index
    %c0_632 = arith.constant 0 : index
    %849 = vector.load %arg1[%c5_630, %c3_631, %c0_632] : memref<7x22x128xf32, #tpu.memory_space<vmem>>, vector<1x16x128xf32>
    %850 = vector.shape_cast %849 : vector<1x16x128xf32> to vector<16x128xf32>
    %851 = arith.maximumf %847, %850 : vector<16x128xf32>
    %852 = arith.minimumf %848, %850 : vector<16x128xf32>
    %c6_633 = arith.constant 6 : index
    %c3_634 = arith.constant 3 : index
    %c0_635 = arith.constant 0 : index
    %853 = vector.load %arg1[%c6_633, %c3_634, %c0_635] : memref<7x22x128xf32, #tpu.memory_space<vmem>>, vector<1x16x128xf32>
    %854 = vector.shape_cast %853 : vector<1x16x128xf32> to vector<16x128xf32>
    %855 = arith.maximumf %851, %854 : vector<16x128xf32>
    %856 = arith.minimumf %852, %854 : vector<16x128xf32>
    %c2_636 = arith.constant 2 : index
    %c4_637 = arith.constant 4 : index
    %c0_638 = arith.constant 0 : index
    %857 = vector.load %arg1[%c2_636, %c4_637, %c0_638] : memref<7x22x128xf32, #tpu.memory_space<vmem>>, vector<1x16x128xf32>
    %858 = vector.shape_cast %857 : vector<1x16x128xf32> to vector<16x128xf32>
    %859 = arith.maximumf %855, %858 : vector<16x128xf32>
    %860 = arith.minimumf %856, %858 : vector<16x128xf32>
    %c3_639 = arith.constant 3 : index
    %c4_640 = arith.constant 4 : index
    %c0_641 = arith.constant 0 : index
    %861 = vector.load %arg1[%c3_639, %c4_640, %c0_641] : memref<7x22x128xf32, #tpu.memory_space<vmem>>, vector<1x16x128xf32>
    %862 = vector.shape_cast %861 : vector<1x16x128xf32> to vector<16x128xf32>
    %863 = arith.maximumf %859, %862 : vector<16x128xf32>
    %864 = arith.minimumf %860, %862 : vector<16x128xf32>
    %865 = arith.subf %863, %864 : vector<16x128xf32>
    %866 = arith.addf %830, %865 : vector<16x128xf32>
    %c4_642 = arith.constant 4 : index
    %c4_643 = arith.constant 4 : index
    %c0_644 = arith.constant 0 : index
    %867 = vector.load %arg1[%c4_642, %c4_643, %c0_644] : memref<7x22x128xf32, #tpu.memory_space<vmem>>, vector<1x16x128xf32>
    %868 = vector.shape_cast %867 : vector<1x16x128xf32> to vector<16x128xf32>
    %c5_645 = arith.constant 5 : index
    %c4_646 = arith.constant 4 : index
    %c0_647 = arith.constant 0 : index
    %869 = vector.load %arg1[%c5_645, %c4_646, %c0_647] : memref<7x22x128xf32, #tpu.memory_space<vmem>>, vector<1x16x128xf32>
    %870 = vector.shape_cast %869 : vector<1x16x128xf32> to vector<16x128xf32>
    %871 = arith.maximumf %868, %870 : vector<16x128xf32>
    %872 = arith.minimumf %868, %870 : vector<16x128xf32>
    %c6_648 = arith.constant 6 : index
    %c4_649 = arith.constant 4 : index
    %c0_650 = arith.constant 0 : index
    %873 = vector.load %arg1[%c6_648, %c4_649, %c0_650] : memref<7x22x128xf32, #tpu.memory_space<vmem>>, vector<1x16x128xf32>
    %874 = vector.shape_cast %873 : vector<1x16x128xf32> to vector<16x128xf32>
    %875 = arith.maximumf %871, %874 : vector<16x128xf32>
    %876 = arith.minimumf %872, %874 : vector<16x128xf32>
    %c0_651 = arith.constant 0 : index
    %c1_652 = arith.constant 1 : index
    %c0_653 = arith.constant 0 : index
    %877 = vector.load %arg1[%c0_651, %c1_652, %c0_653] : memref<7x22x128xf32, #tpu.memory_space<vmem>>, vector<1x16x128xf32>
    %878 = vector.shape_cast %877 : vector<1x16x128xf32> to vector<16x128xf32>
    %879 = arith.maximumf %875, %878 : vector<16x128xf32>
    %880 = arith.minimumf %876, %878 : vector<16x128xf32>
    %c1_654 = arith.constant 1 : index
    %c1_655 = arith.constant 1 : index
    %c0_656 = arith.constant 0 : index
    %881 = vector.load %arg1[%c1_654, %c1_655, %c0_656] : memref<7x22x128xf32, #tpu.memory_space<vmem>>, vector<1x16x128xf32>
    %882 = vector.shape_cast %881 : vector<1x16x128xf32> to vector<16x128xf32>
    %883 = arith.maximumf %879, %882 : vector<16x128xf32>
    %884 = arith.minimumf %880, %882 : vector<16x128xf32>
    %c2_657 = arith.constant 2 : index
    %c1_658 = arith.constant 1 : index
    %c0_659 = arith.constant 0 : index
    %885 = vector.load %arg1[%c2_657, %c1_658, %c0_659] : memref<7x22x128xf32, #tpu.memory_space<vmem>>, vector<1x16x128xf32>
    %886 = vector.shape_cast %885 : vector<1x16x128xf32> to vector<16x128xf32>
    %887 = arith.maximumf %883, %886 : vector<16x128xf32>
    %888 = arith.minimumf %884, %886 : vector<16x128xf32>
    %c3_660 = arith.constant 3 : index
    %c1_661 = arith.constant 1 : index
    %c0_662 = arith.constant 0 : index
    %889 = vector.load %arg1[%c3_660, %c1_661, %c0_662] : memref<7x22x128xf32, #tpu.memory_space<vmem>>, vector<1x16x128xf32>
    %890 = vector.shape_cast %889 : vector<1x16x128xf32> to vector<16x128xf32>
    %891 = arith.maximumf %887, %890 : vector<16x128xf32>
    %892 = arith.minimumf %888, %890 : vector<16x128xf32>
    %c4_663 = arith.constant 4 : index
    %c1_664 = arith.constant 1 : index
    %c0_665 = arith.constant 0 : index
    %893 = vector.load %arg1[%c4_663, %c1_664, %c0_665] : memref<7x22x128xf32, #tpu.memory_space<vmem>>, vector<1x16x128xf32>
    %894 = vector.shape_cast %893 : vector<1x16x128xf32> to vector<16x128xf32>
    %895 = arith.maximumf %891, %894 : vector<16x128xf32>
    %896 = arith.minimumf %892, %894 : vector<16x128xf32>
    %c0_666 = arith.constant 0 : index
    %c2_667 = arith.constant 2 : index
    %c0_668 = arith.constant 0 : index
    %897 = vector.load %arg1[%c0_666, %c2_667, %c0_668] : memref<7x22x128xf32, #tpu.memory_space<vmem>>, vector<1x16x128xf32>
    %898 = vector.shape_cast %897 : vector<1x16x128xf32> to vector<16x128xf32>
    %899 = arith.maximumf %895, %898 : vector<16x128xf32>
    %900 = arith.minimumf %896, %898 : vector<16x128xf32>
    %901 = arith.subf %899, %900 : vector<16x128xf32>
    %902 = arith.addf %866, %901 : vector<16x128xf32>
    %c1_669 = arith.constant 1 : index
    %c2_670 = arith.constant 2 : index
    %c0_671 = arith.constant 0 : index
    %903 = vector.load %arg1[%c1_669, %c2_670, %c0_671] : memref<7x22x128xf32, #tpu.memory_space<vmem>>, vector<1x16x128xf32>
    %904 = vector.shape_cast %903 : vector<1x16x128xf32> to vector<16x128xf32>
    %c2_672 = arith.constant 2 : index
    %c2_673 = arith.constant 2 : index
    %c0_674 = arith.constant 0 : index
    %905 = vector.load %arg1[%c2_672, %c2_673, %c0_674] : memref<7x22x128xf32, #tpu.memory_space<vmem>>, vector<1x16x128xf32>
    %906 = vector.shape_cast %905 : vector<1x16x128xf32> to vector<16x128xf32>
    %907 = arith.maximumf %904, %906 : vector<16x128xf32>
    %908 = arith.minimumf %904, %906 : vector<16x128xf32>
    %c3_675 = arith.constant 3 : index
    %c2_676 = arith.constant 2 : index
    %c0_677 = arith.constant 0 : index
    %909 = vector.load %arg1[%c3_675, %c2_676, %c0_677] : memref<7x22x128xf32, #tpu.memory_space<vmem>>, vector<1x16x128xf32>
    %910 = vector.shape_cast %909 : vector<1x16x128xf32> to vector<16x128xf32>
    %911 = arith.maximumf %907, %910 : vector<16x128xf32>
    %912 = arith.minimumf %908, %910 : vector<16x128xf32>
    %c4_678 = arith.constant 4 : index
    %c2_679 = arith.constant 2 : index
    %c0_680 = arith.constant 0 : index
    %913 = vector.load %arg1[%c4_678, %c2_679, %c0_680] : memref<7x22x128xf32, #tpu.memory_space<vmem>>, vector<1x16x128xf32>
    %914 = vector.shape_cast %913 : vector<1x16x128xf32> to vector<16x128xf32>
    %915 = arith.maximumf %911, %914 : vector<16x128xf32>
    %916 = arith.minimumf %912, %914 : vector<16x128xf32>
    %c0_681 = arith.constant 0 : index
    %c3_682 = arith.constant 3 : index
    %c0_683 = arith.constant 0 : index
    %917 = vector.load %arg1[%c0_681, %c3_682, %c0_683] : memref<7x22x128xf32, #tpu.memory_space<vmem>>, vector<1x16x128xf32>
    %918 = vector.shape_cast %917 : vector<1x16x128xf32> to vector<16x128xf32>
    %919 = arith.maximumf %915, %918 : vector<16x128xf32>
    %920 = arith.minimumf %916, %918 : vector<16x128xf32>
    %c1_684 = arith.constant 1 : index
    %c3_685 = arith.constant 3 : index
    %c0_686 = arith.constant 0 : index
    %921 = vector.load %arg1[%c1_684, %c3_685, %c0_686] : memref<7x22x128xf32, #tpu.memory_space<vmem>>, vector<1x16x128xf32>
    %922 = vector.shape_cast %921 : vector<1x16x128xf32> to vector<16x128xf32>
    %923 = arith.maximumf %919, %922 : vector<16x128xf32>
    %924 = arith.minimumf %920, %922 : vector<16x128xf32>
    %c2_687 = arith.constant 2 : index
    %c3_688 = arith.constant 3 : index
    %c0_689 = arith.constant 0 : index
    %925 = vector.load %arg1[%c2_687, %c3_688, %c0_689] : memref<7x22x128xf32, #tpu.memory_space<vmem>>, vector<1x16x128xf32>
    %926 = vector.shape_cast %925 : vector<1x16x128xf32> to vector<16x128xf32>
    %927 = arith.maximumf %923, %926 : vector<16x128xf32>
    %928 = arith.minimumf %924, %926 : vector<16x128xf32>
    %c3_690 = arith.constant 3 : index
    %c3_691 = arith.constant 3 : index
    %c0_692 = arith.constant 0 : index
    %929 = vector.load %arg1[%c3_690, %c3_691, %c0_692] : memref<7x22x128xf32, #tpu.memory_space<vmem>>, vector<1x16x128xf32>
    %930 = vector.shape_cast %929 : vector<1x16x128xf32> to vector<16x128xf32>
    %931 = arith.maximumf %927, %930 : vector<16x128xf32>
    %932 = arith.minimumf %928, %930 : vector<16x128xf32>
    %c4_693 = arith.constant 4 : index
    %c3_694 = arith.constant 3 : index
    %c0_695 = arith.constant 0 : index
    %933 = vector.load %arg1[%c4_693, %c3_694, %c0_695] : memref<7x22x128xf32, #tpu.memory_space<vmem>>, vector<1x16x128xf32>
    %934 = vector.shape_cast %933 : vector<1x16x128xf32> to vector<16x128xf32>
    %935 = arith.maximumf %931, %934 : vector<16x128xf32>
    %936 = arith.minimumf %932, %934 : vector<16x128xf32>
    %937 = arith.subf %935, %936 : vector<16x128xf32>
    %938 = arith.addf %902, %937 : vector<16x128xf32>
    %c0_696 = arith.constant 0 : index
    %c4_697 = arith.constant 4 : index
    %c0_698 = arith.constant 0 : index
    %939 = vector.load %arg1[%c0_696, %c4_697, %c0_698] : memref<7x22x128xf32, #tpu.memory_space<vmem>>, vector<1x16x128xf32>
    %940 = vector.shape_cast %939 : vector<1x16x128xf32> to vector<16x128xf32>
    %c1_699 = arith.constant 1 : index
    %c4_700 = arith.constant 4 : index
    %c0_701 = arith.constant 0 : index
    %941 = vector.load %arg1[%c1_699, %c4_700, %c0_701] : memref<7x22x128xf32, #tpu.memory_space<vmem>>, vector<1x16x128xf32>
    %942 = vector.shape_cast %941 : vector<1x16x128xf32> to vector<16x128xf32>
    %943 = arith.maximumf %940, %942 : vector<16x128xf32>
    %944 = arith.minimumf %940, %942 : vector<16x128xf32>
    %c2_702 = arith.constant 2 : index
    %c4_703 = arith.constant 4 : index
    %c0_704 = arith.constant 0 : index
    %945 = vector.load %arg1[%c2_702, %c4_703, %c0_704] : memref<7x22x128xf32, #tpu.memory_space<vmem>>, vector<1x16x128xf32>
    %946 = vector.shape_cast %945 : vector<1x16x128xf32> to vector<16x128xf32>
    %947 = arith.maximumf %943, %946 : vector<16x128xf32>
    %948 = arith.minimumf %944, %946 : vector<16x128xf32>
    %c3_705 = arith.constant 3 : index
    %c4_706 = arith.constant 4 : index
    %c0_707 = arith.constant 0 : index
    %949 = vector.load %arg1[%c3_705, %c4_706, %c0_707] : memref<7x22x128xf32, #tpu.memory_space<vmem>>, vector<1x16x128xf32>
    %950 = vector.shape_cast %949 : vector<1x16x128xf32> to vector<16x128xf32>
    %951 = arith.maximumf %947, %950 : vector<16x128xf32>
    %952 = arith.minimumf %948, %950 : vector<16x128xf32>
    %c4_708 = arith.constant 4 : index
    %c4_709 = arith.constant 4 : index
    %c0_710 = arith.constant 0 : index
    %953 = vector.load %arg1[%c4_708, %c4_709, %c0_710] : memref<7x22x128xf32, #tpu.memory_space<vmem>>, vector<1x16x128xf32>
    %954 = vector.shape_cast %953 : vector<1x16x128xf32> to vector<16x128xf32>
    %955 = arith.maximumf %951, %954 : vector<16x128xf32>
    %956 = arith.minimumf %952, %954 : vector<16x128xf32>
    %c0_711 = arith.constant 0 : index
    %c5_712 = arith.constant 5 : index
    %c0_713 = arith.constant 0 : index
    %957 = vector.load %arg1[%c0_711, %c5_712, %c0_713] : memref<7x22x128xf32, #tpu.memory_space<vmem>>, vector<1x16x128xf32>
    %958 = vector.shape_cast %957 : vector<1x16x128xf32> to vector<16x128xf32>
    %959 = arith.maximumf %955, %958 : vector<16x128xf32>
    %960 = arith.minimumf %956, %958 : vector<16x128xf32>
    %c1_714 = arith.constant 1 : index
    %c5_715 = arith.constant 5 : index
    %c0_716 = arith.constant 0 : index
    %961 = vector.load %arg1[%c1_714, %c5_715, %c0_716] : memref<7x22x128xf32, #tpu.memory_space<vmem>>, vector<1x16x128xf32>
    %962 = vector.shape_cast %961 : vector<1x16x128xf32> to vector<16x128xf32>
    %963 = arith.maximumf %959, %962 : vector<16x128xf32>
    %964 = arith.minimumf %960, %962 : vector<16x128xf32>
    %c2_717 = arith.constant 2 : index
    %c5_718 = arith.constant 5 : index
    %c0_719 = arith.constant 0 : index
    %965 = vector.load %arg1[%c2_717, %c5_718, %c0_719] : memref<7x22x128xf32, #tpu.memory_space<vmem>>, vector<1x16x128xf32>
    %966 = vector.shape_cast %965 : vector<1x16x128xf32> to vector<16x128xf32>
    %967 = arith.maximumf %963, %966 : vector<16x128xf32>
    %968 = arith.minimumf %964, %966 : vector<16x128xf32>
    %c3_720 = arith.constant 3 : index
    %c5_721 = arith.constant 5 : index
    %c0_722 = arith.constant 0 : index
    %969 = vector.load %arg1[%c3_720, %c5_721, %c0_722] : memref<7x22x128xf32, #tpu.memory_space<vmem>>, vector<1x16x128xf32>
    %970 = vector.shape_cast %969 : vector<1x16x128xf32> to vector<16x128xf32>
    %971 = arith.maximumf %967, %970 : vector<16x128xf32>
    %972 = arith.minimumf %968, %970 : vector<16x128xf32>
    %973 = arith.subf %971, %972 : vector<16x128xf32>
    %974 = arith.addf %938, %973 : vector<16x128xf32>
    %c4_723 = arith.constant 4 : index
    %c5_724 = arith.constant 5 : index
    %c0_725 = arith.constant 0 : index
    %975 = vector.load %arg1[%c4_723, %c5_724, %c0_725] : memref<7x22x128xf32, #tpu.memory_space<vmem>>, vector<1x16x128xf32>
    %976 = vector.shape_cast %975 : vector<1x16x128xf32> to vector<16x128xf32>
    %c1_726 = arith.constant 1 : index
    %c1_727 = arith.constant 1 : index
    %c0_728 = arith.constant 0 : index
    %977 = vector.load %arg1[%c1_726, %c1_727, %c0_728] : memref<7x22x128xf32, #tpu.memory_space<vmem>>, vector<1x16x128xf32>
    %978 = vector.shape_cast %977 : vector<1x16x128xf32> to vector<16x128xf32>
    %979 = arith.maximumf %976, %978 : vector<16x128xf32>
    %980 = arith.minimumf %976, %978 : vector<16x128xf32>
    %c2_729 = arith.constant 2 : index
    %c1_730 = arith.constant 1 : index
    %c0_731 = arith.constant 0 : index
    %981 = vector.load %arg1[%c2_729, %c1_730, %c0_731] : memref<7x22x128xf32, #tpu.memory_space<vmem>>, vector<1x16x128xf32>
    %982 = vector.shape_cast %981 : vector<1x16x128xf32> to vector<16x128xf32>
    %983 = arith.maximumf %979, %982 : vector<16x128xf32>
    %984 = arith.minimumf %980, %982 : vector<16x128xf32>
    %c3_732 = arith.constant 3 : index
    %c1_733 = arith.constant 1 : index
    %c0_734 = arith.constant 0 : index
    %985 = vector.load %arg1[%c3_732, %c1_733, %c0_734] : memref<7x22x128xf32, #tpu.memory_space<vmem>>, vector<1x16x128xf32>
    %986 = vector.shape_cast %985 : vector<1x16x128xf32> to vector<16x128xf32>
    %987 = arith.maximumf %983, %986 : vector<16x128xf32>
    %988 = arith.minimumf %984, %986 : vector<16x128xf32>
    %c4_735 = arith.constant 4 : index
    %c1_736 = arith.constant 1 : index
    %c0_737 = arith.constant 0 : index
    %989 = vector.load %arg1[%c4_735, %c1_736, %c0_737] : memref<7x22x128xf32, #tpu.memory_space<vmem>>, vector<1x16x128xf32>
    %990 = vector.shape_cast %989 : vector<1x16x128xf32> to vector<16x128xf32>
    %991 = arith.maximumf %987, %990 : vector<16x128xf32>
    %992 = arith.minimumf %988, %990 : vector<16x128xf32>
    %c5_738 = arith.constant 5 : index
    %c1_739 = arith.constant 1 : index
    %c0_740 = arith.constant 0 : index
    %993 = vector.load %arg1[%c5_738, %c1_739, %c0_740] : memref<7x22x128xf32, #tpu.memory_space<vmem>>, vector<1x16x128xf32>
    %994 = vector.shape_cast %993 : vector<1x16x128xf32> to vector<16x128xf32>
    %995 = arith.maximumf %991, %994 : vector<16x128xf32>
    %996 = arith.minimumf %992, %994 : vector<16x128xf32>
    %c1_741 = arith.constant 1 : index
    %c2_742 = arith.constant 2 : index
    %c0_743 = arith.constant 0 : index
    %997 = vector.load %arg1[%c1_741, %c2_742, %c0_743] : memref<7x22x128xf32, #tpu.memory_space<vmem>>, vector<1x16x128xf32>
    %998 = vector.shape_cast %997 : vector<1x16x128xf32> to vector<16x128xf32>
    %999 = arith.maximumf %995, %998 : vector<16x128xf32>
    %1000 = arith.minimumf %996, %998 : vector<16x128xf32>
    %c2_744 = arith.constant 2 : index
    %c2_745 = arith.constant 2 : index
    %c0_746 = arith.constant 0 : index
    %1001 = vector.load %arg1[%c2_744, %c2_745, %c0_746] : memref<7x22x128xf32, #tpu.memory_space<vmem>>, vector<1x16x128xf32>
    %1002 = vector.shape_cast %1001 : vector<1x16x128xf32> to vector<16x128xf32>
    %1003 = arith.maximumf %999, %1002 : vector<16x128xf32>
    %1004 = arith.minimumf %1000, %1002 : vector<16x128xf32>
    %c3_747 = arith.constant 3 : index
    %c2_748 = arith.constant 2 : index
    %c0_749 = arith.constant 0 : index
    %1005 = vector.load %arg1[%c3_747, %c2_748, %c0_749] : memref<7x22x128xf32, #tpu.memory_space<vmem>>, vector<1x16x128xf32>
    %1006 = vector.shape_cast %1005 : vector<1x16x128xf32> to vector<16x128xf32>
    %1007 = arith.maximumf %1003, %1006 : vector<16x128xf32>
    %1008 = arith.minimumf %1004, %1006 : vector<16x128xf32>
    %1009 = arith.subf %1007, %1008 : vector<16x128xf32>
    %1010 = arith.addf %974, %1009 : vector<16x128xf32>
    %c4_750 = arith.constant 4 : index
    %c2_751 = arith.constant 2 : index
    %c0_752 = arith.constant 0 : index
    %1011 = vector.load %arg1[%c4_750, %c2_751, %c0_752] : memref<7x22x128xf32, #tpu.memory_space<vmem>>, vector<1x16x128xf32>
    %1012 = vector.shape_cast %1011 : vector<1x16x128xf32> to vector<16x128xf32>
    %c5_753 = arith.constant 5 : index
    %c2_754 = arith.constant 2 : index
    %c0_755 = arith.constant 0 : index
    %1013 = vector.load %arg1[%c5_753, %c2_754, %c0_755] : memref<7x22x128xf32, #tpu.memory_space<vmem>>, vector<1x16x128xf32>
    %1014 = vector.shape_cast %1013 : vector<1x16x128xf32> to vector<16x128xf32>
    %1015 = arith.maximumf %1012, %1014 : vector<16x128xf32>
    %1016 = arith.minimumf %1012, %1014 : vector<16x128xf32>
    %c1_756 = arith.constant 1 : index
    %c3_757 = arith.constant 3 : index
    %c0_758 = arith.constant 0 : index
    %1017 = vector.load %arg1[%c1_756, %c3_757, %c0_758] : memref<7x22x128xf32, #tpu.memory_space<vmem>>, vector<1x16x128xf32>
    %1018 = vector.shape_cast %1017 : vector<1x16x128xf32> to vector<16x128xf32>
    %1019 = arith.maximumf %1015, %1018 : vector<16x128xf32>
    %1020 = arith.minimumf %1016, %1018 : vector<16x128xf32>
    %c2_759 = arith.constant 2 : index
    %c3_760 = arith.constant 3 : index
    %c0_761 = arith.constant 0 : index
    %1021 = vector.load %arg1[%c2_759, %c3_760, %c0_761] : memref<7x22x128xf32, #tpu.memory_space<vmem>>, vector<1x16x128xf32>
    %1022 = vector.shape_cast %1021 : vector<1x16x128xf32> to vector<16x128xf32>
    %1023 = arith.maximumf %1019, %1022 : vector<16x128xf32>
    %1024 = arith.minimumf %1020, %1022 : vector<16x128xf32>
    %c3_762 = arith.constant 3 : index
    %c3_763 = arith.constant 3 : index
    %c0_764 = arith.constant 0 : index
    %1025 = vector.load %arg1[%c3_762, %c3_763, %c0_764] : memref<7x22x128xf32, #tpu.memory_space<vmem>>, vector<1x16x128xf32>
    %1026 = vector.shape_cast %1025 : vector<1x16x128xf32> to vector<16x128xf32>
    %1027 = arith.maximumf %1023, %1026 : vector<16x128xf32>
    %1028 = arith.minimumf %1024, %1026 : vector<16x128xf32>
    %c4_765 = arith.constant 4 : index
    %c3_766 = arith.constant 3 : index
    %c0_767 = arith.constant 0 : index
    %1029 = vector.load %arg1[%c4_765, %c3_766, %c0_767] : memref<7x22x128xf32, #tpu.memory_space<vmem>>, vector<1x16x128xf32>
    %1030 = vector.shape_cast %1029 : vector<1x16x128xf32> to vector<16x128xf32>
    %1031 = arith.maximumf %1027, %1030 : vector<16x128xf32>
    %1032 = arith.minimumf %1028, %1030 : vector<16x128xf32>
    %c5_768 = arith.constant 5 : index
    %c3_769 = arith.constant 3 : index
    %c0_770 = arith.constant 0 : index
    %1033 = vector.load %arg1[%c5_768, %c3_769, %c0_770] : memref<7x22x128xf32, #tpu.memory_space<vmem>>, vector<1x16x128xf32>
    %1034 = vector.shape_cast %1033 : vector<1x16x128xf32> to vector<16x128xf32>
    %1035 = arith.maximumf %1031, %1034 : vector<16x128xf32>
    %1036 = arith.minimumf %1032, %1034 : vector<16x128xf32>
    %c1_771 = arith.constant 1 : index
    %c4_772 = arith.constant 4 : index
    %c0_773 = arith.constant 0 : index
    %1037 = vector.load %arg1[%c1_771, %c4_772, %c0_773] : memref<7x22x128xf32, #tpu.memory_space<vmem>>, vector<1x16x128xf32>
    %1038 = vector.shape_cast %1037 : vector<1x16x128xf32> to vector<16x128xf32>
    %1039 = arith.maximumf %1035, %1038 : vector<16x128xf32>
    %1040 = arith.minimumf %1036, %1038 : vector<16x128xf32>
    %c2_774 = arith.constant 2 : index
    %c4_775 = arith.constant 4 : index
    %c0_776 = arith.constant 0 : index
    %1041 = vector.load %arg1[%c2_774, %c4_775, %c0_776] : memref<7x22x128xf32, #tpu.memory_space<vmem>>, vector<1x16x128xf32>
    %1042 = vector.shape_cast %1041 : vector<1x16x128xf32> to vector<16x128xf32>
    %1043 = arith.maximumf %1039, %1042 : vector<16x128xf32>
    %1044 = arith.minimumf %1040, %1042 : vector<16x128xf32>
    %1045 = arith.subf %1043, %1044 : vector<16x128xf32>
    %1046 = arith.addf %1010, %1045 : vector<16x128xf32>
    %c3_777 = arith.constant 3 : index
    %c4_778 = arith.constant 4 : index
    %c0_779 = arith.constant 0 : index
    %1047 = vector.load %arg1[%c3_777, %c4_778, %c0_779] : memref<7x22x128xf32, #tpu.memory_space<vmem>>, vector<1x16x128xf32>
    %1048 = vector.shape_cast %1047 : vector<1x16x128xf32> to vector<16x128xf32>
    %c4_780 = arith.constant 4 : index
    %c4_781 = arith.constant 4 : index
    %c0_782 = arith.constant 0 : index
    %1049 = vector.load %arg1[%c4_780, %c4_781, %c0_782] : memref<7x22x128xf32, #tpu.memory_space<vmem>>, vector<1x16x128xf32>
    %1050 = vector.shape_cast %1049 : vector<1x16x128xf32> to vector<16x128xf32>
    %1051 = arith.maximumf %1048, %1050 : vector<16x128xf32>
    %1052 = arith.minimumf %1048, %1050 : vector<16x128xf32>
    %c5_783 = arith.constant 5 : index
    %c4_784 = arith.constant 4 : index
    %c0_785 = arith.constant 0 : index
    %1053 = vector.load %arg1[%c5_783, %c4_784, %c0_785] : memref<7x22x128xf32, #tpu.memory_space<vmem>>, vector<1x16x128xf32>
    %1054 = vector.shape_cast %1053 : vector<1x16x128xf32> to vector<16x128xf32>
    %1055 = arith.maximumf %1051, %1054 : vector<16x128xf32>
    %1056 = arith.minimumf %1052, %1054 : vector<16x128xf32>
    %c1_786 = arith.constant 1 : index
    %c5_787 = arith.constant 5 : index
    %c0_788 = arith.constant 0 : index
    %1057 = vector.load %arg1[%c1_786, %c5_787, %c0_788] : memref<7x22x128xf32, #tpu.memory_space<vmem>>, vector<1x16x128xf32>
    %1058 = vector.shape_cast %1057 : vector<1x16x128xf32> to vector<16x128xf32>
    %1059 = arith.maximumf %1055, %1058 : vector<16x128xf32>
    %1060 = arith.minimumf %1056, %1058 : vector<16x128xf32>
    %c2_789 = arith.constant 2 : index
    %c5_790 = arith.constant 5 : index
    %c0_791 = arith.constant 0 : index
    %1061 = vector.load %arg1[%c2_789, %c5_790, %c0_791] : memref<7x22x128xf32, #tpu.memory_space<vmem>>, vector<1x16x128xf32>
    %1062 = vector.shape_cast %1061 : vector<1x16x128xf32> to vector<16x128xf32>
    %1063 = arith.maximumf %1059, %1062 : vector<16x128xf32>
    %1064 = arith.minimumf %1060, %1062 : vector<16x128xf32>
    %c3_792 = arith.constant 3 : index
    %c5_793 = arith.constant 5 : index
    %c0_794 = arith.constant 0 : index
    %1065 = vector.load %arg1[%c3_792, %c5_793, %c0_794] : memref<7x22x128xf32, #tpu.memory_space<vmem>>, vector<1x16x128xf32>
    %1066 = vector.shape_cast %1065 : vector<1x16x128xf32> to vector<16x128xf32>
    %1067 = arith.maximumf %1063, %1066 : vector<16x128xf32>
    %1068 = arith.minimumf %1064, %1066 : vector<16x128xf32>
    %c4_795 = arith.constant 4 : index
    %c5_796 = arith.constant 5 : index
    %c0_797 = arith.constant 0 : index
    %1069 = vector.load %arg1[%c4_795, %c5_796, %c0_797] : memref<7x22x128xf32, #tpu.memory_space<vmem>>, vector<1x16x128xf32>
    %1070 = vector.shape_cast %1069 : vector<1x16x128xf32> to vector<16x128xf32>
    %1071 = arith.maximumf %1067, %1070 : vector<16x128xf32>
    %1072 = arith.minimumf %1068, %1070 : vector<16x128xf32>
    %c5_798 = arith.constant 5 : index
    %c5_799 = arith.constant 5 : index
    %c0_800 = arith.constant 0 : index
    %1073 = vector.load %arg1[%c5_798, %c5_799, %c0_800] : memref<7x22x128xf32, #tpu.memory_space<vmem>>, vector<1x16x128xf32>
    %1074 = vector.shape_cast %1073 : vector<1x16x128xf32> to vector<16x128xf32>
    %1075 = arith.maximumf %1071, %1074 : vector<16x128xf32>
    %1076 = arith.minimumf %1072, %1074 : vector<16x128xf32>
    %c2_801 = arith.constant 2 : index
    %c1_802 = arith.constant 1 : index
    %c0_803 = arith.constant 0 : index
    %1077 = vector.load %arg1[%c2_801, %c1_802, %c0_803] : memref<7x22x128xf32, #tpu.memory_space<vmem>>, vector<1x16x128xf32>
    %1078 = vector.shape_cast %1077 : vector<1x16x128xf32> to vector<16x128xf32>
    %1079 = arith.maximumf %1075, %1078 : vector<16x128xf32>
    %1080 = arith.minimumf %1076, %1078 : vector<16x128xf32>
    %1081 = arith.subf %1079, %1080 : vector<16x128xf32>
    %1082 = arith.addf %1046, %1081 : vector<16x128xf32>
    %c3_804 = arith.constant 3 : index
    %c1_805 = arith.constant 1 : index
    %c0_806 = arith.constant 0 : index
    %1083 = vector.load %arg1[%c3_804, %c1_805, %c0_806] : memref<7x22x128xf32, #tpu.memory_space<vmem>>, vector<1x16x128xf32>
    %1084 = vector.shape_cast %1083 : vector<1x16x128xf32> to vector<16x128xf32>
    %c4_807 = arith.constant 4 : index
    %c1_808 = arith.constant 1 : index
    %c0_809 = arith.constant 0 : index
    %1085 = vector.load %arg1[%c4_807, %c1_808, %c0_809] : memref<7x22x128xf32, #tpu.memory_space<vmem>>, vector<1x16x128xf32>
    %1086 = vector.shape_cast %1085 : vector<1x16x128xf32> to vector<16x128xf32>
    %1087 = arith.maximumf %1084, %1086 : vector<16x128xf32>
    %1088 = arith.minimumf %1084, %1086 : vector<16x128xf32>
    %c5_810 = arith.constant 5 : index
    %c1_811 = arith.constant 1 : index
    %c0_812 = arith.constant 0 : index
    %1089 = vector.load %arg1[%c5_810, %c1_811, %c0_812] : memref<7x22x128xf32, #tpu.memory_space<vmem>>, vector<1x16x128xf32>
    %1090 = vector.shape_cast %1089 : vector<1x16x128xf32> to vector<16x128xf32>
    %1091 = arith.maximumf %1087, %1090 : vector<16x128xf32>
    %1092 = arith.minimumf %1088, %1090 : vector<16x128xf32>
    %c6_813 = arith.constant 6 : index
    %c1_814 = arith.constant 1 : index
    %c0_815 = arith.constant 0 : index
    %1093 = vector.load %arg1[%c6_813, %c1_814, %c0_815] : memref<7x22x128xf32, #tpu.memory_space<vmem>>, vector<1x16x128xf32>
    %1094 = vector.shape_cast %1093 : vector<1x16x128xf32> to vector<16x128xf32>
    %1095 = arith.maximumf %1091, %1094 : vector<16x128xf32>
    %1096 = arith.minimumf %1092, %1094 : vector<16x128xf32>
    %c2_816 = arith.constant 2 : index
    %c2_817 = arith.constant 2 : index
    %c0_818 = arith.constant 0 : index
    %1097 = vector.load %arg1[%c2_816, %c2_817, %c0_818] : memref<7x22x128xf32, #tpu.memory_space<vmem>>, vector<1x16x128xf32>
    %1098 = vector.shape_cast %1097 : vector<1x16x128xf32> to vector<16x128xf32>
    %1099 = arith.maximumf %1095, %1098 : vector<16x128xf32>
    %1100 = arith.minimumf %1096, %1098 : vector<16x128xf32>
    %c3_819 = arith.constant 3 : index
    %c2_820 = arith.constant 2 : index
    %c0_821 = arith.constant 0 : index
    %1101 = vector.load %arg1[%c3_819, %c2_820, %c0_821] : memref<7x22x128xf32, #tpu.memory_space<vmem>>, vector<1x16x128xf32>
    %1102 = vector.shape_cast %1101 : vector<1x16x128xf32> to vector<16x128xf32>
    %1103 = arith.maximumf %1099, %1102 : vector<16x128xf32>
    %1104 = arith.minimumf %1100, %1102 : vector<16x128xf32>
    %c4_822 = arith.constant 4 : index
    %c2_823 = arith.constant 2 : index
    %c0_824 = arith.constant 0 : index
    %1105 = vector.load %arg1[%c4_822, %c2_823, %c0_824] : memref<7x22x128xf32, #tpu.memory_space<vmem>>, vector<1x16x128xf32>
    %1106 = vector.shape_cast %1105 : vector<1x16x128xf32> to vector<16x128xf32>
    %1107 = arith.maximumf %1103, %1106 : vector<16x128xf32>
    %1108 = arith.minimumf %1104, %1106 : vector<16x128xf32>
    %c5_825 = arith.constant 5 : index
    %c2_826 = arith.constant 2 : index
    %c0_827 = arith.constant 0 : index
    %1109 = vector.load %arg1[%c5_825, %c2_826, %c0_827] : memref<7x22x128xf32, #tpu.memory_space<vmem>>, vector<1x16x128xf32>
    %1110 = vector.shape_cast %1109 : vector<1x16x128xf32> to vector<16x128xf32>
    %1111 = arith.maximumf %1107, %1110 : vector<16x128xf32>
    %1112 = arith.minimumf %1108, %1110 : vector<16x128xf32>
    %c6_828 = arith.constant 6 : index
    %c2_829 = arith.constant 2 : index
    %c0_830 = arith.constant 0 : index
    %1113 = vector.load %arg1[%c6_828, %c2_829, %c0_830] : memref<7x22x128xf32, #tpu.memory_space<vmem>>, vector<1x16x128xf32>
    %1114 = vector.shape_cast %1113 : vector<1x16x128xf32> to vector<16x128xf32>
    %1115 = arith.maximumf %1111, %1114 : vector<16x128xf32>
    %1116 = arith.minimumf %1112, %1114 : vector<16x128xf32>
    %1117 = arith.subf %1115, %1116 : vector<16x128xf32>
    %1118 = arith.addf %1082, %1117 : vector<16x128xf32>
    %c2_831 = arith.constant 2 : index
    %c3_832 = arith.constant 3 : index
    %c0_833 = arith.constant 0 : index
    %1119 = vector.load %arg1[%c2_831, %c3_832, %c0_833] : memref<7x22x128xf32, #tpu.memory_space<vmem>>, vector<1x16x128xf32>
    %1120 = vector.shape_cast %1119 : vector<1x16x128xf32> to vector<16x128xf32>
    %c3_834 = arith.constant 3 : index
    %c3_835 = arith.constant 3 : index
    %c0_836 = arith.constant 0 : index
    %1121 = vector.load %arg1[%c3_834, %c3_835, %c0_836] : memref<7x22x128xf32, #tpu.memory_space<vmem>>, vector<1x16x128xf32>
    %1122 = vector.shape_cast %1121 : vector<1x16x128xf32> to vector<16x128xf32>
    %1123 = arith.maximumf %1120, %1122 : vector<16x128xf32>
    %1124 = arith.minimumf %1120, %1122 : vector<16x128xf32>
    %c4_837 = arith.constant 4 : index
    %c3_838 = arith.constant 3 : index
    %c0_839 = arith.constant 0 : index
    %1125 = vector.load %arg1[%c4_837, %c3_838, %c0_839] : memref<7x22x128xf32, #tpu.memory_space<vmem>>, vector<1x16x128xf32>
    %1126 = vector.shape_cast %1125 : vector<1x16x128xf32> to vector<16x128xf32>
    %1127 = arith.maximumf %1123, %1126 : vector<16x128xf32>
    %1128 = arith.minimumf %1124, %1126 : vector<16x128xf32>
    %c5_840 = arith.constant 5 : index
    %c3_841 = arith.constant 3 : index
    %c0_842 = arith.constant 0 : index
    %1129 = vector.load %arg1[%c5_840, %c3_841, %c0_842] : memref<7x22x128xf32, #tpu.memory_space<vmem>>, vector<1x16x128xf32>
    %1130 = vector.shape_cast %1129 : vector<1x16x128xf32> to vector<16x128xf32>
    %1131 = arith.maximumf %1127, %1130 : vector<16x128xf32>
    %1132 = arith.minimumf %1128, %1130 : vector<16x128xf32>
    %c6_843 = arith.constant 6 : index
    %c3_844 = arith.constant 3 : index
    %c0_845 = arith.constant 0 : index
    %1133 = vector.load %arg1[%c6_843, %c3_844, %c0_845] : memref<7x22x128xf32, #tpu.memory_space<vmem>>, vector<1x16x128xf32>
    %1134 = vector.shape_cast %1133 : vector<1x16x128xf32> to vector<16x128xf32>
    %1135 = arith.maximumf %1131, %1134 : vector<16x128xf32>
    %1136 = arith.minimumf %1132, %1134 : vector<16x128xf32>
    %c2_846 = arith.constant 2 : index
    %c4_847 = arith.constant 4 : index
    %c0_848 = arith.constant 0 : index
    %1137 = vector.load %arg1[%c2_846, %c4_847, %c0_848] : memref<7x22x128xf32, #tpu.memory_space<vmem>>, vector<1x16x128xf32>
    %1138 = vector.shape_cast %1137 : vector<1x16x128xf32> to vector<16x128xf32>
    %1139 = arith.maximumf %1135, %1138 : vector<16x128xf32>
    %1140 = arith.minimumf %1136, %1138 : vector<16x128xf32>
    %c3_849 = arith.constant 3 : index
    %c4_850 = arith.constant 4 : index
    %c0_851 = arith.constant 0 : index
    %1141 = vector.load %arg1[%c3_849, %c4_850, %c0_851] : memref<7x22x128xf32, #tpu.memory_space<vmem>>, vector<1x16x128xf32>
    %1142 = vector.shape_cast %1141 : vector<1x16x128xf32> to vector<16x128xf32>
    %1143 = arith.maximumf %1139, %1142 : vector<16x128xf32>
    %1144 = arith.minimumf %1140, %1142 : vector<16x128xf32>
    %c4_852 = arith.constant 4 : index
    %c4_853 = arith.constant 4 : index
    %c0_854 = arith.constant 0 : index
    %1145 = vector.load %arg1[%c4_852, %c4_853, %c0_854] : memref<7x22x128xf32, #tpu.memory_space<vmem>>, vector<1x16x128xf32>
    %1146 = vector.shape_cast %1145 : vector<1x16x128xf32> to vector<16x128xf32>
    %1147 = arith.maximumf %1143, %1146 : vector<16x128xf32>
    %1148 = arith.minimumf %1144, %1146 : vector<16x128xf32>
    %c5_855 = arith.constant 5 : index
    %c4_856 = arith.constant 4 : index
    %c0_857 = arith.constant 0 : index
    %1149 = vector.load %arg1[%c5_855, %c4_856, %c0_857] : memref<7x22x128xf32, #tpu.memory_space<vmem>>, vector<1x16x128xf32>
    %1150 = vector.shape_cast %1149 : vector<1x16x128xf32> to vector<16x128xf32>
    %1151 = arith.maximumf %1147, %1150 : vector<16x128xf32>
    %1152 = arith.minimumf %1148, %1150 : vector<16x128xf32>
    %1153 = arith.subf %1151, %1152 : vector<16x128xf32>
    %1154 = arith.addf %1118, %1153 : vector<16x128xf32>
    %c6_858 = arith.constant 6 : index
    %c4_859 = arith.constant 4 : index
    %c0_860 = arith.constant 0 : index
    %1155 = vector.load %arg1[%c6_858, %c4_859, %c0_860] : memref<7x22x128xf32, #tpu.memory_space<vmem>>, vector<1x16x128xf32>
    %1156 = vector.shape_cast %1155 : vector<1x16x128xf32> to vector<16x128xf32>
    %c2_861 = arith.constant 2 : index
    %c5_862 = arith.constant 5 : index
    %c0_863 = arith.constant 0 : index
    %1157 = vector.load %arg1[%c2_861, %c5_862, %c0_863] : memref<7x22x128xf32, #tpu.memory_space<vmem>>, vector<1x16x128xf32>
    %1158 = vector.shape_cast %1157 : vector<1x16x128xf32> to vector<16x128xf32>
    %1159 = arith.maximumf %1156, %1158 : vector<16x128xf32>
    %1160 = arith.minimumf %1156, %1158 : vector<16x128xf32>
    %c3_864 = arith.constant 3 : index
    %c5_865 = arith.constant 5 : index
    %c0_866 = arith.constant 0 : index
    %1161 = vector.load %arg1[%c3_864, %c5_865, %c0_866] : memref<7x22x128xf32, #tpu.memory_space<vmem>>, vector<1x16x128xf32>
    %1162 = vector.shape_cast %1161 : vector<1x16x128xf32> to vector<16x128xf32>
    %1163 = arith.maximumf %1159, %1162 : vector<16x128xf32>
    %1164 = arith.minimumf %1160, %1162 : vector<16x128xf32>
    %c4_867 = arith.constant 4 : index
    %c5_868 = arith.constant 5 : index
    %c0_869 = arith.constant 0 : index
    %1165 = vector.load %arg1[%c4_867, %c5_868, %c0_869] : memref<7x22x128xf32, #tpu.memory_space<vmem>>, vector<1x16x128xf32>
    %1166 = vector.shape_cast %1165 : vector<1x16x128xf32> to vector<16x128xf32>
    %1167 = arith.maximumf %1163, %1166 : vector<16x128xf32>
    %1168 = arith.minimumf %1164, %1166 : vector<16x128xf32>
    %c5_870 = arith.constant 5 : index
    %c5_871 = arith.constant 5 : index
    %c0_872 = arith.constant 0 : index
    %1169 = vector.load %arg1[%c5_870, %c5_871, %c0_872] : memref<7x22x128xf32, #tpu.memory_space<vmem>>, vector<1x16x128xf32>
    %1170 = vector.shape_cast %1169 : vector<1x16x128xf32> to vector<16x128xf32>
    %1171 = arith.maximumf %1167, %1170 : vector<16x128xf32>
    %1172 = arith.minimumf %1168, %1170 : vector<16x128xf32>
    %c6_873 = arith.constant 6 : index
    %c5_874 = arith.constant 5 : index
    %c0_875 = arith.constant 0 : index
    %1173 = vector.load %arg1[%c6_873, %c5_874, %c0_875] : memref<7x22x128xf32, #tpu.memory_space<vmem>>, vector<1x16x128xf32>
    %1174 = vector.shape_cast %1173 : vector<1x16x128xf32> to vector<16x128xf32>
    %1175 = arith.maximumf %1171, %1174 : vector<16x128xf32>
    %1176 = arith.minimumf %1172, %1174 : vector<16x128xf32>
    %c0_876 = arith.constant 0 : index
    %c2_877 = arith.constant 2 : index
    %c0_878 = arith.constant 0 : index
    %1177 = vector.load %arg1[%c0_876, %c2_877, %c0_878] : memref<7x22x128xf32, #tpu.memory_space<vmem>>, vector<1x16x128xf32>
    %1178 = vector.shape_cast %1177 : vector<1x16x128xf32> to vector<16x128xf32>
    %1179 = arith.maximumf %1175, %1178 : vector<16x128xf32>
    %1180 = arith.minimumf %1176, %1178 : vector<16x128xf32>
    %c1_879 = arith.constant 1 : index
    %c2_880 = arith.constant 2 : index
    %c0_881 = arith.constant 0 : index
    %1181 = vector.load %arg1[%c1_879, %c2_880, %c0_881] : memref<7x22x128xf32, #tpu.memory_space<vmem>>, vector<1x16x128xf32>
    %1182 = vector.shape_cast %1181 : vector<1x16x128xf32> to vector<16x128xf32>
    %1183 = arith.maximumf %1179, %1182 : vector<16x128xf32>
    %1184 = arith.minimumf %1180, %1182 : vector<16x128xf32>
    %c2_882 = arith.constant 2 : index
    %c2_883 = arith.constant 2 : index
    %c0_884 = arith.constant 0 : index
    %1185 = vector.load %arg1[%c2_882, %c2_883, %c0_884] : memref<7x22x128xf32, #tpu.memory_space<vmem>>, vector<1x16x128xf32>
    %1186 = vector.shape_cast %1185 : vector<1x16x128xf32> to vector<16x128xf32>
    %1187 = arith.maximumf %1183, %1186 : vector<16x128xf32>
    %1188 = arith.minimumf %1184, %1186 : vector<16x128xf32>
    %1189 = arith.subf %1187, %1188 : vector<16x128xf32>
    %1190 = arith.addf %1154, %1189 : vector<16x128xf32>
    %c3_885 = arith.constant 3 : index
    %c2_886 = arith.constant 2 : index
    %c0_887 = arith.constant 0 : index
    %1191 = vector.load %arg1[%c3_885, %c2_886, %c0_887] : memref<7x22x128xf32, #tpu.memory_space<vmem>>, vector<1x16x128xf32>
    %1192 = vector.shape_cast %1191 : vector<1x16x128xf32> to vector<16x128xf32>
    %c4_888 = arith.constant 4 : index
    %c2_889 = arith.constant 2 : index
    %c0_890 = arith.constant 0 : index
    %1193 = vector.load %arg1[%c4_888, %c2_889, %c0_890] : memref<7x22x128xf32, #tpu.memory_space<vmem>>, vector<1x16x128xf32>
    %1194 = vector.shape_cast %1193 : vector<1x16x128xf32> to vector<16x128xf32>
    %1195 = arith.maximumf %1192, %1194 : vector<16x128xf32>
    %1196 = arith.minimumf %1192, %1194 : vector<16x128xf32>
    %c0_891 = arith.constant 0 : index
    %c3_892 = arith.constant 3 : index
    %c0_893 = arith.constant 0 : index
    %1197 = vector.load %arg1[%c0_891, %c3_892, %c0_893] : memref<7x22x128xf32, #tpu.memory_space<vmem>>, vector<1x16x128xf32>
    %1198 = vector.shape_cast %1197 : vector<1x16x128xf32> to vector<16x128xf32>
    %1199 = arith.maximumf %1195, %1198 : vector<16x128xf32>
    %1200 = arith.minimumf %1196, %1198 : vector<16x128xf32>
    %c1_894 = arith.constant 1 : index
    %c3_895 = arith.constant 3 : index
    %c0_896 = arith.constant 0 : index
    %1201 = vector.load %arg1[%c1_894, %c3_895, %c0_896] : memref<7x22x128xf32, #tpu.memory_space<vmem>>, vector<1x16x128xf32>
    %1202 = vector.shape_cast %1201 : vector<1x16x128xf32> to vector<16x128xf32>
    %1203 = arith.maximumf %1199, %1202 : vector<16x128xf32>
    %1204 = arith.minimumf %1200, %1202 : vector<16x128xf32>
    %c2_897 = arith.constant 2 : index
    %c3_898 = arith.constant 3 : index
    %c0_899 = arith.constant 0 : index
    %1205 = vector.load %arg1[%c2_897, %c3_898, %c0_899] : memref<7x22x128xf32, #tpu.memory_space<vmem>>, vector<1x16x128xf32>
    %1206 = vector.shape_cast %1205 : vector<1x16x128xf32> to vector<16x128xf32>
    %1207 = arith.maximumf %1203, %1206 : vector<16x128xf32>
    %1208 = arith.minimumf %1204, %1206 : vector<16x128xf32>
    %c3_900 = arith.constant 3 : index
    %c3_901 = arith.constant 3 : index
    %c0_902 = arith.constant 0 : index
    %1209 = vector.load %arg1[%c3_900, %c3_901, %c0_902] : memref<7x22x128xf32, #tpu.memory_space<vmem>>, vector<1x16x128xf32>
    %1210 = vector.shape_cast %1209 : vector<1x16x128xf32> to vector<16x128xf32>
    %1211 = arith.maximumf %1207, %1210 : vector<16x128xf32>
    %1212 = arith.minimumf %1208, %1210 : vector<16x128xf32>
    %c4_903 = arith.constant 4 : index
    %c3_904 = arith.constant 3 : index
    %c0_905 = arith.constant 0 : index
    %1213 = vector.load %arg1[%c4_903, %c3_904, %c0_905] : memref<7x22x128xf32, #tpu.memory_space<vmem>>, vector<1x16x128xf32>
    %1214 = vector.shape_cast %1213 : vector<1x16x128xf32> to vector<16x128xf32>
    %1215 = arith.maximumf %1211, %1214 : vector<16x128xf32>
    %1216 = arith.minimumf %1212, %1214 : vector<16x128xf32>
    %c0_906 = arith.constant 0 : index
    %c4_907 = arith.constant 4 : index
    %c0_908 = arith.constant 0 : index
    %1217 = vector.load %arg1[%c0_906, %c4_907, %c0_908] : memref<7x22x128xf32, #tpu.memory_space<vmem>>, vector<1x16x128xf32>
    %1218 = vector.shape_cast %1217 : vector<1x16x128xf32> to vector<16x128xf32>
    %1219 = arith.maximumf %1215, %1218 : vector<16x128xf32>
    %1220 = arith.minimumf %1216, %1218 : vector<16x128xf32>
    %c1_909 = arith.constant 1 : index
    %c4_910 = arith.constant 4 : index
    %c0_911 = arith.constant 0 : index
    %1221 = vector.load %arg1[%c1_909, %c4_910, %c0_911] : memref<7x22x128xf32, #tpu.memory_space<vmem>>, vector<1x16x128xf32>
    %1222 = vector.shape_cast %1221 : vector<1x16x128xf32> to vector<16x128xf32>
    %1223 = arith.maximumf %1219, %1222 : vector<16x128xf32>
    %1224 = arith.minimumf %1220, %1222 : vector<16x128xf32>
    %1225 = arith.subf %1223, %1224 : vector<16x128xf32>
    %1226 = arith.addf %1190, %1225 : vector<16x128xf32>
    %c2_912 = arith.constant 2 : index
    %c4_913 = arith.constant 4 : index
    %c0_914 = arith.constant 0 : index
    %1227 = vector.load %arg1[%c2_912, %c4_913, %c0_914] : memref<7x22x128xf32, #tpu.memory_space<vmem>>, vector<1x16x128xf32>
    %1228 = vector.shape_cast %1227 : vector<1x16x128xf32> to vector<16x128xf32>
    %c3_915 = arith.constant 3 : index
    %c4_916 = arith.constant 4 : index
    %c0_917 = arith.constant 0 : index
    %1229 = vector.load %arg1[%c3_915, %c4_916, %c0_917] : memref<7x22x128xf32, #tpu.memory_space<vmem>>, vector<1x16x128xf32>
    %1230 = vector.shape_cast %1229 : vector<1x16x128xf32> to vector<16x128xf32>
    %1231 = arith.maximumf %1228, %1230 : vector<16x128xf32>
    %1232 = arith.minimumf %1228, %1230 : vector<16x128xf32>
    %c4_918 = arith.constant 4 : index
    %c4_919 = arith.constant 4 : index
    %c0_920 = arith.constant 0 : index
    %1233 = vector.load %arg1[%c4_918, %c4_919, %c0_920] : memref<7x22x128xf32, #tpu.memory_space<vmem>>, vector<1x16x128xf32>
    %1234 = vector.shape_cast %1233 : vector<1x16x128xf32> to vector<16x128xf32>
    %1235 = arith.maximumf %1231, %1234 : vector<16x128xf32>
    %1236 = arith.minimumf %1232, %1234 : vector<16x128xf32>
    %c0_921 = arith.constant 0 : index
    %c5_922 = arith.constant 5 : index
    %c0_923 = arith.constant 0 : index
    %1237 = vector.load %arg1[%c0_921, %c5_922, %c0_923] : memref<7x22x128xf32, #tpu.memory_space<vmem>>, vector<1x16x128xf32>
    %1238 = vector.shape_cast %1237 : vector<1x16x128xf32> to vector<16x128xf32>
    %1239 = arith.maximumf %1235, %1238 : vector<16x128xf32>
    %1240 = arith.minimumf %1236, %1238 : vector<16x128xf32>
    %c1_924 = arith.constant 1 : index
    %c5_925 = arith.constant 5 : index
    %c0_926 = arith.constant 0 : index
    %1241 = vector.load %arg1[%c1_924, %c5_925, %c0_926] : memref<7x22x128xf32, #tpu.memory_space<vmem>>, vector<1x16x128xf32>
    %1242 = vector.shape_cast %1241 : vector<1x16x128xf32> to vector<16x128xf32>
    %1243 = arith.maximumf %1239, %1242 : vector<16x128xf32>
    %1244 = arith.minimumf %1240, %1242 : vector<16x128xf32>
    %c2_927 = arith.constant 2 : index
    %c5_928 = arith.constant 5 : index
    %c0_929 = arith.constant 0 : index
    %1245 = vector.load %arg1[%c2_927, %c5_928, %c0_929] : memref<7x22x128xf32, #tpu.memory_space<vmem>>, vector<1x16x128xf32>
    %1246 = vector.shape_cast %1245 : vector<1x16x128xf32> to vector<16x128xf32>
    %1247 = arith.maximumf %1243, %1246 : vector<16x128xf32>
    %1248 = arith.minimumf %1244, %1246 : vector<16x128xf32>
    %c3_930 = arith.constant 3 : index
    %c5_931 = arith.constant 5 : index
    %c0_932 = arith.constant 0 : index
    %1249 = vector.load %arg1[%c3_930, %c5_931, %c0_932] : memref<7x22x128xf32, #tpu.memory_space<vmem>>, vector<1x16x128xf32>
    %1250 = vector.shape_cast %1249 : vector<1x16x128xf32> to vector<16x128xf32>
    %1251 = arith.maximumf %1247, %1250 : vector<16x128xf32>
    %1252 = arith.minimumf %1248, %1250 : vector<16x128xf32>
    %c4_933 = arith.constant 4 : index
    %c5_934 = arith.constant 5 : index
    %c0_935 = arith.constant 0 : index
    %1253 = vector.load %arg1[%c4_933, %c5_934, %c0_935] : memref<7x22x128xf32, #tpu.memory_space<vmem>>, vector<1x16x128xf32>
    %1254 = vector.shape_cast %1253 : vector<1x16x128xf32> to vector<16x128xf32>
    %1255 = arith.maximumf %1251, %1254 : vector<16x128xf32>
    %1256 = arith.minimumf %1252, %1254 : vector<16x128xf32>
    %c0_936 = arith.constant 0 : index
    %c6_937 = arith.constant 6 : index
    %c0_938 = arith.constant 0 : index
    %1257 = vector.load %arg1[%c0_936, %c6_937, %c0_938] : memref<7x22x128xf32, #tpu.memory_space<vmem>>, vector<1x16x128xf32>
    %1258 = vector.shape_cast %1257 : vector<1x16x128xf32> to vector<16x128xf32>
    %1259 = arith.maximumf %1255, %1258 : vector<16x128xf32>
    %1260 = arith.minimumf %1256, %1258 : vector<16x128xf32>
    %1261 = arith.subf %1259, %1260 : vector<16x128xf32>
    %1262 = arith.addf %1226, %1261 : vector<16x128xf32>
    %c1_939 = arith.constant 1 : index
    %c6_940 = arith.constant 6 : index
    %c0_941 = arith.constant 0 : index
    %1263 = vector.load %arg1[%c1_939, %c6_940, %c0_941] : memref<7x22x128xf32, #tpu.memory_space<vmem>>, vector<1x16x128xf32>
    %1264 = vector.shape_cast %1263 : vector<1x16x128xf32> to vector<16x128xf32>
    %c2_942 = arith.constant 2 : index
    %c6_943 = arith.constant 6 : index
    %c0_944 = arith.constant 0 : index
    %1265 = vector.load %arg1[%c2_942, %c6_943, %c0_944] : memref<7x22x128xf32, #tpu.memory_space<vmem>>, vector<1x16x128xf32>
    %1266 = vector.shape_cast %1265 : vector<1x16x128xf32> to vector<16x128xf32>
    %1267 = arith.maximumf %1264, %1266 : vector<16x128xf32>
    %1268 = arith.minimumf %1264, %1266 : vector<16x128xf32>
    %c3_945 = arith.constant 3 : index
    %c6_946 = arith.constant 6 : index
    %c0_947 = arith.constant 0 : index
    %1269 = vector.load %arg1[%c3_945, %c6_946, %c0_947] : memref<7x22x128xf32, #tpu.memory_space<vmem>>, vector<1x16x128xf32>
    %1270 = vector.shape_cast %1269 : vector<1x16x128xf32> to vector<16x128xf32>
    %1271 = arith.maximumf %1267, %1270 : vector<16x128xf32>
    %1272 = arith.minimumf %1268, %1270 : vector<16x128xf32>
    %c4_948 = arith.constant 4 : index
    %c6_949 = arith.constant 6 : index
    %c0_950 = arith.constant 0 : index
    %1273 = vector.load %arg1[%c4_948, %c6_949, %c0_950] : memref<7x22x128xf32, #tpu.memory_space<vmem>>, vector<1x16x128xf32>
    %1274 = vector.shape_cast %1273 : vector<1x16x128xf32> to vector<16x128xf32>
    %1275 = arith.maximumf %1271, %1274 : vector<16x128xf32>
    %1276 = arith.minimumf %1272, %1274 : vector<16x128xf32>
    %c1_951 = arith.constant 1 : index
    %c2_952 = arith.constant 2 : index
    %c0_953 = arith.constant 0 : index
    %1277 = vector.load %arg1[%c1_951, %c2_952, %c0_953] : memref<7x22x128xf32, #tpu.memory_space<vmem>>, vector<1x16x128xf32>
    %1278 = vector.shape_cast %1277 : vector<1x16x128xf32> to vector<16x128xf32>
    %1279 = arith.maximumf %1275, %1278 : vector<16x128xf32>
    %1280 = arith.minimumf %1276, %1278 : vector<16x128xf32>
    %c2_954 = arith.constant 2 : index
    %c2_955 = arith.constant 2 : index
    %c0_956 = arith.constant 0 : index
    %1281 = vector.load %arg1[%c2_954, %c2_955, %c0_956] : memref<7x22x128xf32, #tpu.memory_space<vmem>>, vector<1x16x128xf32>
    %1282 = vector.shape_cast %1281 : vector<1x16x128xf32> to vector<16x128xf32>
    %1283 = arith.maximumf %1279, %1282 : vector<16x128xf32>
    %1284 = arith.minimumf %1280, %1282 : vector<16x128xf32>
    %c3_957 = arith.constant 3 : index
    %c2_958 = arith.constant 2 : index
    %c0_959 = arith.constant 0 : index
    %1285 = vector.load %arg1[%c3_957, %c2_958, %c0_959] : memref<7x22x128xf32, #tpu.memory_space<vmem>>, vector<1x16x128xf32>
    %1286 = vector.shape_cast %1285 : vector<1x16x128xf32> to vector<16x128xf32>
    %1287 = arith.maximumf %1283, %1286 : vector<16x128xf32>
    %1288 = arith.minimumf %1284, %1286 : vector<16x128xf32>
    %c4_960 = arith.constant 4 : index
    %c2_961 = arith.constant 2 : index
    %c0_962 = arith.constant 0 : index
    %1289 = vector.load %arg1[%c4_960, %c2_961, %c0_962] : memref<7x22x128xf32, #tpu.memory_space<vmem>>, vector<1x16x128xf32>
    %1290 = vector.shape_cast %1289 : vector<1x16x128xf32> to vector<16x128xf32>
    %1291 = arith.maximumf %1287, %1290 : vector<16x128xf32>
    %1292 = arith.minimumf %1288, %1290 : vector<16x128xf32>
    %c5_963 = arith.constant 5 : index
    %c2_964 = arith.constant 2 : index
    %c0_965 = arith.constant 0 : index
    %1293 = vector.load %arg1[%c5_963, %c2_964, %c0_965] : memref<7x22x128xf32, #tpu.memory_space<vmem>>, vector<1x16x128xf32>
    %1294 = vector.shape_cast %1293 : vector<1x16x128xf32> to vector<16x128xf32>
    %1295 = arith.maximumf %1291, %1294 : vector<16x128xf32>
    %1296 = arith.minimumf %1292, %1294 : vector<16x128xf32>
    %1297 = arith.subf %1295, %1296 : vector<16x128xf32>
    %1298 = arith.addf %1262, %1297 : vector<16x128xf32>
    %c1_966 = arith.constant 1 : index
    %c3_967 = arith.constant 3 : index
    %c0_968 = arith.constant 0 : index
    %1299 = vector.load %arg1[%c1_966, %c3_967, %c0_968] : memref<7x22x128xf32, #tpu.memory_space<vmem>>, vector<1x16x128xf32>
    %1300 = vector.shape_cast %1299 : vector<1x16x128xf32> to vector<16x128xf32>
    %c2_969 = arith.constant 2 : index
    %c3_970 = arith.constant 3 : index
    %c0_971 = arith.constant 0 : index
    %1301 = vector.load %arg1[%c2_969, %c3_970, %c0_971] : memref<7x22x128xf32, #tpu.memory_space<vmem>>, vector<1x16x128xf32>
    %1302 = vector.shape_cast %1301 : vector<1x16x128xf32> to vector<16x128xf32>
    %1303 = arith.maximumf %1300, %1302 : vector<16x128xf32>
    %1304 = arith.minimumf %1300, %1302 : vector<16x128xf32>
    %c3_972 = arith.constant 3 : index
    %c3_973 = arith.constant 3 : index
    %c0_974 = arith.constant 0 : index
    %1305 = vector.load %arg1[%c3_972, %c3_973, %c0_974] : memref<7x22x128xf32, #tpu.memory_space<vmem>>, vector<1x16x128xf32>
    %1306 = vector.shape_cast %1305 : vector<1x16x128xf32> to vector<16x128xf32>
    %1307 = arith.maximumf %1303, %1306 : vector<16x128xf32>
    %1308 = arith.minimumf %1304, %1306 : vector<16x128xf32>
    %c4_975 = arith.constant 4 : index
    %c3_976 = arith.constant 3 : index
    %c0_977 = arith.constant 0 : index
    %1309 = vector.load %arg1[%c4_975, %c3_976, %c0_977] : memref<7x22x128xf32, #tpu.memory_space<vmem>>, vector<1x16x128xf32>
    %1310 = vector.shape_cast %1309 : vector<1x16x128xf32> to vector<16x128xf32>
    %1311 = arith.maximumf %1307, %1310 : vector<16x128xf32>
    %1312 = arith.minimumf %1308, %1310 : vector<16x128xf32>
    %c5_978 = arith.constant 5 : index
    %c3_979 = arith.constant 3 : index
    %c0_980 = arith.constant 0 : index
    %1313 = vector.load %arg1[%c5_978, %c3_979, %c0_980] : memref<7x22x128xf32, #tpu.memory_space<vmem>>, vector<1x16x128xf32>
    %1314 = vector.shape_cast %1313 : vector<1x16x128xf32> to vector<16x128xf32>
    %1315 = arith.maximumf %1311, %1314 : vector<16x128xf32>
    %1316 = arith.minimumf %1312, %1314 : vector<16x128xf32>
    %c1_981 = arith.constant 1 : index
    %c4_982 = arith.constant 4 : index
    %c0_983 = arith.constant 0 : index
    %1317 = vector.load %arg1[%c1_981, %c4_982, %c0_983] : memref<7x22x128xf32, #tpu.memory_space<vmem>>, vector<1x16x128xf32>
    %1318 = vector.shape_cast %1317 : vector<1x16x128xf32> to vector<16x128xf32>
    %1319 = arith.maximumf %1315, %1318 : vector<16x128xf32>
    %1320 = arith.minimumf %1316, %1318 : vector<16x128xf32>
    %c2_984 = arith.constant 2 : index
    %c4_985 = arith.constant 4 : index
    %c0_986 = arith.constant 0 : index
    %1321 = vector.load %arg1[%c2_984, %c4_985, %c0_986] : memref<7x22x128xf32, #tpu.memory_space<vmem>>, vector<1x16x128xf32>
    %1322 = vector.shape_cast %1321 : vector<1x16x128xf32> to vector<16x128xf32>
    %1323 = arith.maximumf %1319, %1322 : vector<16x128xf32>
    %1324 = arith.minimumf %1320, %1322 : vector<16x128xf32>
    %c3_987 = arith.constant 3 : index
    %c4_988 = arith.constant 4 : index
    %c0_989 = arith.constant 0 : index
    %1325 = vector.load %arg1[%c3_987, %c4_988, %c0_989] : memref<7x22x128xf32, #tpu.memory_space<vmem>>, vector<1x16x128xf32>
    %1326 = vector.shape_cast %1325 : vector<1x16x128xf32> to vector<16x128xf32>
    %1327 = arith.maximumf %1323, %1326 : vector<16x128xf32>
    %1328 = arith.minimumf %1324, %1326 : vector<16x128xf32>
    %c4_990 = arith.constant 4 : index
    %c4_991 = arith.constant 4 : index
    %c0_992 = arith.constant 0 : index
    %1329 = vector.load %arg1[%c4_990, %c4_991, %c0_992] : memref<7x22x128xf32, #tpu.memory_space<vmem>>, vector<1x16x128xf32>
    %1330 = vector.shape_cast %1329 : vector<1x16x128xf32> to vector<16x128xf32>
    %1331 = arith.maximumf %1327, %1330 : vector<16x128xf32>
    %1332 = arith.minimumf %1328, %1330 : vector<16x128xf32>
    %1333 = arith.subf %1331, %1332 : vector<16x128xf32>
    %1334 = arith.addf %1298, %1333 : vector<16x128xf32>
    %c5_993 = arith.constant 5 : index
    %c4_994 = arith.constant 4 : index
    %c0_995 = arith.constant 0 : index
    %1335 = vector.load %arg1[%c5_993, %c4_994, %c0_995] : memref<7x22x128xf32, #tpu.memory_space<vmem>>, vector<1x16x128xf32>
    %1336 = vector.shape_cast %1335 : vector<1x16x128xf32> to vector<16x128xf32>
    %c1_996 = arith.constant 1 : index
    %c5_997 = arith.constant 5 : index
    %c0_998 = arith.constant 0 : index
    %1337 = vector.load %arg1[%c1_996, %c5_997, %c0_998] : memref<7x22x128xf32, #tpu.memory_space<vmem>>, vector<1x16x128xf32>
    %1338 = vector.shape_cast %1337 : vector<1x16x128xf32> to vector<16x128xf32>
    %1339 = arith.maximumf %1336, %1338 : vector<16x128xf32>
    %1340 = arith.minimumf %1336, %1338 : vector<16x128xf32>
    %c2_999 = arith.constant 2 : index
    %c5_1000 = arith.constant 5 : index
    %c0_1001 = arith.constant 0 : index
    %1341 = vector.load %arg1[%c2_999, %c5_1000, %c0_1001] : memref<7x22x128xf32, #tpu.memory_space<vmem>>, vector<1x16x128xf32>
    %1342 = vector.shape_cast %1341 : vector<1x16x128xf32> to vector<16x128xf32>
    %1343 = arith.maximumf %1339, %1342 : vector<16x128xf32>
    %1344 = arith.minimumf %1340, %1342 : vector<16x128xf32>
    %c3_1002 = arith.constant 3 : index
    %c5_1003 = arith.constant 5 : index
    %c0_1004 = arith.constant 0 : index
    %1345 = vector.load %arg1[%c3_1002, %c5_1003, %c0_1004] : memref<7x22x128xf32, #tpu.memory_space<vmem>>, vector<1x16x128xf32>
    %1346 = vector.shape_cast %1345 : vector<1x16x128xf32> to vector<16x128xf32>
    %1347 = arith.maximumf %1343, %1346 : vector<16x128xf32>
    %1348 = arith.minimumf %1344, %1346 : vector<16x128xf32>
    %c4_1005 = arith.constant 4 : index
    %c5_1006 = arith.constant 5 : index
    %c0_1007 = arith.constant 0 : index
    %1349 = vector.load %arg1[%c4_1005, %c5_1006, %c0_1007] : memref<7x22x128xf32, #tpu.memory_space<vmem>>, vector<1x16x128xf32>
    %1350 = vector.shape_cast %1349 : vector<1x16x128xf32> to vector<16x128xf32>
    %1351 = arith.maximumf %1347, %1350 : vector<16x128xf32>
    %1352 = arith.minimumf %1348, %1350 : vector<16x128xf32>
    %c5_1008 = arith.constant 5 : index
    %c5_1009 = arith.constant 5 : index
    %c0_1010 = arith.constant 0 : index
    %1353 = vector.load %arg1[%c5_1008, %c5_1009, %c0_1010] : memref<7x22x128xf32, #tpu.memory_space<vmem>>, vector<1x16x128xf32>
    %1354 = vector.shape_cast %1353 : vector<1x16x128xf32> to vector<16x128xf32>
    %1355 = arith.maximumf %1351, %1354 : vector<16x128xf32>
    %1356 = arith.minimumf %1352, %1354 : vector<16x128xf32>
    %c1_1011 = arith.constant 1 : index
    %c6_1012 = arith.constant 6 : index
    %c0_1013 = arith.constant 0 : index
    %1357 = vector.load %arg1[%c1_1011, %c6_1012, %c0_1013] : memref<7x22x128xf32, #tpu.memory_space<vmem>>, vector<1x16x128xf32>
    %1358 = vector.shape_cast %1357 : vector<1x16x128xf32> to vector<16x128xf32>
    %1359 = arith.maximumf %1355, %1358 : vector<16x128xf32>
    %1360 = arith.minimumf %1356, %1358 : vector<16x128xf32>
    %c2_1014 = arith.constant 2 : index
    %c6_1015 = arith.constant 6 : index
    %c0_1016 = arith.constant 0 : index
    %1361 = vector.load %arg1[%c2_1014, %c6_1015, %c0_1016] : memref<7x22x128xf32, #tpu.memory_space<vmem>>, vector<1x16x128xf32>
    %1362 = vector.shape_cast %1361 : vector<1x16x128xf32> to vector<16x128xf32>
    %1363 = arith.maximumf %1359, %1362 : vector<16x128xf32>
    %1364 = arith.minimumf %1360, %1362 : vector<16x128xf32>
    %c3_1017 = arith.constant 3 : index
    %c6_1018 = arith.constant 6 : index
    %c0_1019 = arith.constant 0 : index
    %1365 = vector.load %arg1[%c3_1017, %c6_1018, %c0_1019] : memref<7x22x128xf32, #tpu.memory_space<vmem>>, vector<1x16x128xf32>
    %1366 = vector.shape_cast %1365 : vector<1x16x128xf32> to vector<16x128xf32>
    %1367 = arith.maximumf %1363, %1366 : vector<16x128xf32>
    %1368 = arith.minimumf %1364, %1366 : vector<16x128xf32>
    %1369 = arith.subf %1367, %1368 : vector<16x128xf32>
    %1370 = arith.addf %1334, %1369 : vector<16x128xf32>
    %c4_1020 = arith.constant 4 : index
    %c6_1021 = arith.constant 6 : index
    %c0_1022 = arith.constant 0 : index
    %1371 = vector.load %arg1[%c4_1020, %c6_1021, %c0_1022] : memref<7x22x128xf32, #tpu.memory_space<vmem>>, vector<1x16x128xf32>
    %1372 = vector.shape_cast %1371 : vector<1x16x128xf32> to vector<16x128xf32>
    %c5_1023 = arith.constant 5 : index
    %c6_1024 = arith.constant 6 : index
    %c0_1025 = arith.constant 0 : index
    %1373 = vector.load %arg1[%c5_1023, %c6_1024, %c0_1025] : memref<7x22x128xf32, #tpu.memory_space<vmem>>, vector<1x16x128xf32>
    %1374 = vector.shape_cast %1373 : vector<1x16x128xf32> to vector<16x128xf32>
    %1375 = arith.maximumf %1372, %1374 : vector<16x128xf32>
    %1376 = arith.minimumf %1372, %1374 : vector<16x128xf32>
    %c2_1026 = arith.constant 2 : index
    %c2_1027 = arith.constant 2 : index
    %c0_1028 = arith.constant 0 : index
    %1377 = vector.load %arg1[%c2_1026, %c2_1027, %c0_1028] : memref<7x22x128xf32, #tpu.memory_space<vmem>>, vector<1x16x128xf32>
    %1378 = vector.shape_cast %1377 : vector<1x16x128xf32> to vector<16x128xf32>
    %1379 = arith.maximumf %1375, %1378 : vector<16x128xf32>
    %1380 = arith.minimumf %1376, %1378 : vector<16x128xf32>
    %c3_1029 = arith.constant 3 : index
    %c2_1030 = arith.constant 2 : index
    %c0_1031 = arith.constant 0 : index
    %1381 = vector.load %arg1[%c3_1029, %c2_1030, %c0_1031] : memref<7x22x128xf32, #tpu.memory_space<vmem>>, vector<1x16x128xf32>
    %1382 = vector.shape_cast %1381 : vector<1x16x128xf32> to vector<16x128xf32>
    %1383 = arith.maximumf %1379, %1382 : vector<16x128xf32>
    %1384 = arith.minimumf %1380, %1382 : vector<16x128xf32>
    %c4_1032 = arith.constant 4 : index
    %c2_1033 = arith.constant 2 : index
    %c0_1034 = arith.constant 0 : index
    %1385 = vector.load %arg1[%c4_1032, %c2_1033, %c0_1034] : memref<7x22x128xf32, #tpu.memory_space<vmem>>, vector<1x16x128xf32>
    %1386 = vector.shape_cast %1385 : vector<1x16x128xf32> to vector<16x128xf32>
    %1387 = arith.maximumf %1383, %1386 : vector<16x128xf32>
    %1388 = arith.minimumf %1384, %1386 : vector<16x128xf32>
    %c5_1035 = arith.constant 5 : index
    %c2_1036 = arith.constant 2 : index
    %c0_1037 = arith.constant 0 : index
    %1389 = vector.load %arg1[%c5_1035, %c2_1036, %c0_1037] : memref<7x22x128xf32, #tpu.memory_space<vmem>>, vector<1x16x128xf32>
    %1390 = vector.shape_cast %1389 : vector<1x16x128xf32> to vector<16x128xf32>
    %1391 = arith.maximumf %1387, %1390 : vector<16x128xf32>
    %1392 = arith.minimumf %1388, %1390 : vector<16x128xf32>
    %c6_1038 = arith.constant 6 : index
    %c2_1039 = arith.constant 2 : index
    %c0_1040 = arith.constant 0 : index
    %1393 = vector.load %arg1[%c6_1038, %c2_1039, %c0_1040] : memref<7x22x128xf32, #tpu.memory_space<vmem>>, vector<1x16x128xf32>
    %1394 = vector.shape_cast %1393 : vector<1x16x128xf32> to vector<16x128xf32>
    %1395 = arith.maximumf %1391, %1394 : vector<16x128xf32>
    %1396 = arith.minimumf %1392, %1394 : vector<16x128xf32>
    %c2_1041 = arith.constant 2 : index
    %c3_1042 = arith.constant 3 : index
    %c0_1043 = arith.constant 0 : index
    %1397 = vector.load %arg1[%c2_1041, %c3_1042, %c0_1043] : memref<7x22x128xf32, #tpu.memory_space<vmem>>, vector<1x16x128xf32>
    %1398 = vector.shape_cast %1397 : vector<1x16x128xf32> to vector<16x128xf32>
    %1399 = arith.maximumf %1395, %1398 : vector<16x128xf32>
    %1400 = arith.minimumf %1396, %1398 : vector<16x128xf32>
    %c3_1044 = arith.constant 3 : index
    %c3_1045 = arith.constant 3 : index
    %c0_1046 = arith.constant 0 : index
    %1401 = vector.load %arg1[%c3_1044, %c3_1045, %c0_1046] : memref<7x22x128xf32, #tpu.memory_space<vmem>>, vector<1x16x128xf32>
    %1402 = vector.shape_cast %1401 : vector<1x16x128xf32> to vector<16x128xf32>
    %1403 = arith.maximumf %1399, %1402 : vector<16x128xf32>
    %1404 = arith.minimumf %1400, %1402 : vector<16x128xf32>
    %1405 = arith.subf %1403, %1404 : vector<16x128xf32>
    %1406 = arith.addf %1370, %1405 : vector<16x128xf32>
    %c4_1047 = arith.constant 4 : index
    %c3_1048 = arith.constant 3 : index
    %c0_1049 = arith.constant 0 : index
    %1407 = vector.load %arg1[%c4_1047, %c3_1048, %c0_1049] : memref<7x22x128xf32, #tpu.memory_space<vmem>>, vector<1x16x128xf32>
    %1408 = vector.shape_cast %1407 : vector<1x16x128xf32> to vector<16x128xf32>
    %c5_1050 = arith.constant 5 : index
    %c3_1051 = arith.constant 3 : index
    %c0_1052 = arith.constant 0 : index
    %1409 = vector.load %arg1[%c5_1050, %c3_1051, %c0_1052] : memref<7x22x128xf32, #tpu.memory_space<vmem>>, vector<1x16x128xf32>
    %1410 = vector.shape_cast %1409 : vector<1x16x128xf32> to vector<16x128xf32>
    %1411 = arith.maximumf %1408, %1410 : vector<16x128xf32>
    %1412 = arith.minimumf %1408, %1410 : vector<16x128xf32>
    %c6_1053 = arith.constant 6 : index
    %c3_1054 = arith.constant 3 : index
    %c0_1055 = arith.constant 0 : index
    %1413 = vector.load %arg1[%c6_1053, %c3_1054, %c0_1055] : memref<7x22x128xf32, #tpu.memory_space<vmem>>, vector<1x16x128xf32>
    %1414 = vector.shape_cast %1413 : vector<1x16x128xf32> to vector<16x128xf32>
    %1415 = arith.maximumf %1411, %1414 : vector<16x128xf32>
    %1416 = arith.minimumf %1412, %1414 : vector<16x128xf32>
    %c2_1056 = arith.constant 2 : index
    %c4_1057 = arith.constant 4 : index
    %c0_1058 = arith.constant 0 : index
    %1417 = vector.load %arg1[%c2_1056, %c4_1057, %c0_1058] : memref<7x22x128xf32, #tpu.memory_space<vmem>>, vector<1x16x128xf32>
    %1418 = vector.shape_cast %1417 : vector<1x16x128xf32> to vector<16x128xf32>
    %1419 = arith.maximumf %1415, %1418 : vector<16x128xf32>
    %1420 = arith.minimumf %1416, %1418 : vector<16x128xf32>
    %c3_1059 = arith.constant 3 : index
    %c4_1060 = arith.constant 4 : index
    %c0_1061 = arith.constant 0 : index
    %1421 = vector.load %arg1[%c3_1059, %c4_1060, %c0_1061] : memref<7x22x128xf32, #tpu.memory_space<vmem>>, vector<1x16x128xf32>
    %1422 = vector.shape_cast %1421 : vector<1x16x128xf32> to vector<16x128xf32>
    %1423 = arith.maximumf %1419, %1422 : vector<16x128xf32>
    %1424 = arith.minimumf %1420, %1422 : vector<16x128xf32>
    %c4_1062 = arith.constant 4 : index
    %c4_1063 = arith.constant 4 : index
    %c0_1064 = arith.constant 0 : index
    %1425 = vector.load %arg1[%c4_1062, %c4_1063, %c0_1064] : memref<7x22x128xf32, #tpu.memory_space<vmem>>, vector<1x16x128xf32>
    %1426 = vector.shape_cast %1425 : vector<1x16x128xf32> to vector<16x128xf32>
    %1427 = arith.maximumf %1423, %1426 : vector<16x128xf32>
    %1428 = arith.minimumf %1424, %1426 : vector<16x128xf32>
    %c5_1065 = arith.constant 5 : index
    %c4_1066 = arith.constant 4 : index
    %c0_1067 = arith.constant 0 : index
    %1429 = vector.load %arg1[%c5_1065, %c4_1066, %c0_1067] : memref<7x22x128xf32, #tpu.memory_space<vmem>>, vector<1x16x128xf32>
    %1430 = vector.shape_cast %1429 : vector<1x16x128xf32> to vector<16x128xf32>
    %1431 = arith.maximumf %1427, %1430 : vector<16x128xf32>
    %1432 = arith.minimumf %1428, %1430 : vector<16x128xf32>
    %c6_1068 = arith.constant 6 : index
    %c4_1069 = arith.constant 4 : index
    %c0_1070 = arith.constant 0 : index
    %1433 = vector.load %arg1[%c6_1068, %c4_1069, %c0_1070] : memref<7x22x128xf32, #tpu.memory_space<vmem>>, vector<1x16x128xf32>
    %1434 = vector.shape_cast %1433 : vector<1x16x128xf32> to vector<16x128xf32>
    %1435 = arith.maximumf %1431, %1434 : vector<16x128xf32>
    %1436 = arith.minimumf %1432, %1434 : vector<16x128xf32>
    %c2_1071 = arith.constant 2 : index
    %c5_1072 = arith.constant 5 : index
    %c0_1073 = arith.constant 0 : index
    %1437 = vector.load %arg1[%c2_1071, %c5_1072, %c0_1073] : memref<7x22x128xf32, #tpu.memory_space<vmem>>, vector<1x16x128xf32>
    %1438 = vector.shape_cast %1437 : vector<1x16x128xf32> to vector<16x128xf32>
    %1439 = arith.maximumf %1435, %1438 : vector<16x128xf32>
    %1440 = arith.minimumf %1436, %1438 : vector<16x128xf32>
    %1441 = arith.subf %1439, %1440 : vector<16x128xf32>
    %1442 = arith.addf %1406, %1441 : vector<16x128xf32>
    %c3_1074 = arith.constant 3 : index
    %c5_1075 = arith.constant 5 : index
    %c0_1076 = arith.constant 0 : index
    %1443 = vector.load %arg1[%c3_1074, %c5_1075, %c0_1076] : memref<7x22x128xf32, #tpu.memory_space<vmem>>, vector<1x16x128xf32>
    %1444 = vector.shape_cast %1443 : vector<1x16x128xf32> to vector<16x128xf32>
    %c4_1077 = arith.constant 4 : index
    %c5_1078 = arith.constant 5 : index
    %c0_1079 = arith.constant 0 : index
    %1445 = vector.load %arg1[%c4_1077, %c5_1078, %c0_1079] : memref<7x22x128xf32, #tpu.memory_space<vmem>>, vector<1x16x128xf32>
    %1446 = vector.shape_cast %1445 : vector<1x16x128xf32> to vector<16x128xf32>
    %1447 = arith.maximumf %1444, %1446 : vector<16x128xf32>
    %1448 = arith.minimumf %1444, %1446 : vector<16x128xf32>
    %c5_1080 = arith.constant 5 : index
    %c5_1081 = arith.constant 5 : index
    %c0_1082 = arith.constant 0 : index
    %1449 = vector.load %arg1[%c5_1080, %c5_1081, %c0_1082] : memref<7x22x128xf32, #tpu.memory_space<vmem>>, vector<1x16x128xf32>
    %1450 = vector.shape_cast %1449 : vector<1x16x128xf32> to vector<16x128xf32>
    %1451 = arith.maximumf %1447, %1450 : vector<16x128xf32>
    %1452 = arith.minimumf %1448, %1450 : vector<16x128xf32>
    %c6_1083 = arith.constant 6 : index
    %c5_1084 = arith.constant 5 : index
    %c0_1085 = arith.constant 0 : index
    %1453 = vector.load %arg1[%c6_1083, %c5_1084, %c0_1085] : memref<7x22x128xf32, #tpu.memory_space<vmem>>, vector<1x16x128xf32>
    %1454 = vector.shape_cast %1453 : vector<1x16x128xf32> to vector<16x128xf32>
    %1455 = arith.maximumf %1451, %1454 : vector<16x128xf32>
    %1456 = arith.minimumf %1452, %1454 : vector<16x128xf32>
    %c2_1086 = arith.constant 2 : index
    %c6_1087 = arith.constant 6 : index
    %c0_1088 = arith.constant 0 : index
    %1457 = vector.load %arg1[%c2_1086, %c6_1087, %c0_1088] : memref<7x22x128xf32, #tpu.memory_space<vmem>>, vector<1x16x128xf32>
    %1458 = vector.shape_cast %1457 : vector<1x16x128xf32> to vector<16x128xf32>
    %1459 = arith.maximumf %1455, %1458 : vector<16x128xf32>
    %1460 = arith.minimumf %1456, %1458 : vector<16x128xf32>
    %c3_1089 = arith.constant 3 : index
    %c6_1090 = arith.constant 6 : index
    %c0_1091 = arith.constant 0 : index
    %1461 = vector.load %arg1[%c3_1089, %c6_1090, %c0_1091] : memref<7x22x128xf32, #tpu.memory_space<vmem>>, vector<1x16x128xf32>
    %1462 = vector.shape_cast %1461 : vector<1x16x128xf32> to vector<16x128xf32>
    %1463 = arith.maximumf %1459, %1462 : vector<16x128xf32>
    %1464 = arith.minimumf %1460, %1462 : vector<16x128xf32>
    %c4_1092 = arith.constant 4 : index
    %c6_1093 = arith.constant 6 : index
    %c0_1094 = arith.constant 0 : index
    %1465 = vector.load %arg1[%c4_1092, %c6_1093, %c0_1094] : memref<7x22x128xf32, #tpu.memory_space<vmem>>, vector<1x16x128xf32>
    %1466 = vector.shape_cast %1465 : vector<1x16x128xf32> to vector<16x128xf32>
    %1467 = arith.maximumf %1463, %1466 : vector<16x128xf32>
    %1468 = arith.minimumf %1464, %1466 : vector<16x128xf32>
    %c5_1095 = arith.constant 5 : index
    %c6_1096 = arith.constant 6 : index
    %c0_1097 = arith.constant 0 : index
    %1469 = vector.load %arg1[%c5_1095, %c6_1096, %c0_1097] : memref<7x22x128xf32, #tpu.memory_space<vmem>>, vector<1x16x128xf32>
    %1470 = vector.shape_cast %1469 : vector<1x16x128xf32> to vector<16x128xf32>
    %1471 = arith.maximumf %1467, %1470 : vector<16x128xf32>
    %1472 = arith.minimumf %1468, %1470 : vector<16x128xf32>
    %c6_1098 = arith.constant 6 : index
    %c6_1099 = arith.constant 6 : index
    %c0_1100 = arith.constant 0 : index
    %1473 = vector.load %arg1[%c6_1098, %c6_1099, %c0_1100] : memref<7x22x128xf32, #tpu.memory_space<vmem>>, vector<1x16x128xf32>
    %1474 = vector.shape_cast %1473 : vector<1x16x128xf32> to vector<16x128xf32>
    %1475 = arith.maximumf %1471, %1474 : vector<16x128xf32>
    %1476 = arith.minimumf %1472, %1474 : vector<16x128xf32>
    %1477 = arith.subf %1475, %1476 : vector<16x128xf32>
    %1478 = arith.addf %1442, %1477 : vector<16x128xf32>
    %cst_1101 = arith.constant 2.33333325 : f32
    %1479 = vector.broadcast %cst_1101 : f32 to vector<16x128xf32>
    %1480 = arith.mulf %1478, %1479 : vector<16x128xf32>
    %cst_1102 = arith.constant 2.500000e+01 : f32
    %1481 = vector.broadcast %cst_1102 : f32 to vector<16x128xf32>
    %1482 = arith.addf %1480, %1481 : vector<16x128xf32>
    %1483 = math.log %1482 : vector<16x128xf32>
    %1484 = arith.addf %579, %1483 : vector<16x128xf32>
    %cst_1103 = arith.constant 5.000000e-01 : f32
    %1485 = vector.broadcast %cst_1103 : f32 to vector<16x128xf32>
    %1486 = arith.mulf %1484, %1485 : vector<16x128xf32>
    %c3_1104 = arith.constant 3 : index
    %c3_1105 = arith.constant 3 : index
    %c0_1106 = arith.constant 0 : index
    %1487 = vector.load %arg1[%c3_1104, %c3_1105, %c0_1106] : memref<7x22x128xf32, #tpu.memory_space<vmem>>, vector<1x16x128xf32>
    %1488 = vector.shape_cast %1487 : vector<1x16x128xf32> to vector<16x128xf32>
    %1489 = arith.addf %1486, %1488 : vector<16x128xf32>
    %c0_1107 = arith.constant 0 : index
    %c0_1108 = arith.constant 0 : index
    %1490 = vector.load %arg2[%c0_1107, %c0_1108] : memref<128x128xf32, #tpu.memory_space<vmem>>, vector<128x128xf32>
    %cst_1109 = arith.constant dense<0.000000e+00> : vector<16x128xf32>
    %1491 = tpu.matmul %1489, %1490, %cst_1109 {dimension_numbers = #tpu.dot_dimension_numbers<[1], [0], [0], [1], [0, 0, 1, 1], [], []>, precision = #tpu.contract_precision<fp32>} : vector<16x128xf32>, vector<128x128xf32>, vector<16x128xf32> -> vector<16x128xf32>
    %c0_1110 = arith.constant 0 : index
    %c0_1111 = arith.constant 0 : index
    %1492 = vector.load %arg3[%c0_1110, %c0_1111] : memref<1x128xf32, #tpu.memory_space<vmem>>, vector<1x128xf32>
    %1493 = vector.broadcast %1492 : vector<1x128xf32> to vector<16x128xf32>
    %1494 = arith.addf %1491, %1493 : vector<16x128xf32>
    %c0_1112 = arith.constant 0 : index
    %c0_1113 = arith.constant 0 : index
    %1495 = vector.load %arg4[%c0_1112, %c0_1113] : memref<16x128xf32, #tpu.memory_space<vmem>>, vector<16x128xf32>
    tpu.vector_store %arg4[%c0_1112, %c0_1113], %1494 {strides = array<i32>} : memref<16x128xf32, #tpu.memory_space<vmem>>, vector<16x128xf32>,
    return
  }
  func.func @transform_0(%arg0: i32) -> (i32, i32, i32) {
    %c0_i32 = arith.constant 0 : i32
    %c0_i32_0 = arith.constant 0 : i32
    %c0_i32_1 = arith.constant 0 : i32
    %c0_i32_2 = arith.constant 0 : i32
    return %c0_i32, %c0_i32_0, %c0_i32_1 : i32, i32, i32
  }
  func.func @transform_1(%arg0: i32) -> (i32, i32) {
    %c0_i32 = arith.constant 0 : i32
    %c0_i32_0 = arith.constant 0 : i32
    %c0_i32_1 = arith.constant 0 : i32
    return %c0_i32, %c0_i32_0 : i32, i32
  }
  func.func @transform_2(%arg0: i32) -> (i32, i32) {
    %c0_i32 = arith.constant 0 : i32
    %c0_i32_0 = arith.constant 0 : i32
    %c0_i32_1 = arith.constant 0 : i32
    return %c0_i32, %c0_i32_0 : i32, i32
  }
  func.func @transform_3(%arg0: i32) -> (i32, i32) {
    %c0_i32 = arith.constant 0 : i32
    %c0_i32_0 = arith.constant 0 : i32
    %c0_i32_1 = arith.constant 0 : i32
    return %c0_i32, %c0_i32_0 : i32, i32
  }
}

</mosaic_0001>

<llo_original>
// kernel: tile.5
$region0: #{tile.5}
  %s0 = inlined_call_operand.vmem [shape: f32[4,16], index: 0, kind: input, shape index: {}]
  %s1 = inlined_call_operand.vmem [shape: f32[64], index: 1, kind: output, shape index: {}]
  $region1: #{tile.5} parent=0
    #allocation0 [shape = 'u8[4096]{0}', space=vmem, size = 0x1000, scoped, tag = 'scoped mem for output reshape']
    #allocation1 [shape = 'u8[4096]{0}', space=vmem, size = 0x1000, scoped, tag = 'scoped mem for input reshape']
    %s3 = sshllo.u32 0, 4
    %v4 = vld [vmem:[%s0] sm:%s3]
    %5 = vst [vmem:[#allocation1] sm:%s3] %v4
    %v6 = vld [vmem:[#allocation1] sm:$0x1]
    %vm7 = vcmask 130048
    %8 = vst.msk [vmem:[#allocation0] sm:$0x1] %vm7, %v6
    %s9 = scalar_lea.vmem [#allocation1], 3
    %v10 = vld [vmem:[%s9] sm:$0x1]
    %11 = vrot.lane.b32.xlu0 %v10, 48
    %v12 = vpop.permute.xlu0 %11
    %vm13 = vcmask 523648
    %14 = vst.msk [vmem:[#allocation0] sm:$0x1] %vm13, %v12
    %s15 = scalar_lea.vmem [#allocation1], 2
    %v16 = vld [vmem:[%s15] sm:$0x1]
    %17 = vrot.lane.b32.xlu0 %v16, 32
    %v18 = vpop.permute.xlu0 %17
    %vm19 = vcmask 392448
    %20 = vst.msk [vmem:[#allocation0] sm:$0x1] %vm19, %v18
    %s21 = scalar_lea.vmem [#allocation1], 1
    %v22 = vld [vmem:[%s21] sm:$0x1]
    %23 = vrot.lane.b32.xlu0 %v22, 16
    %v24 = vpop.permute.xlu0 %23
    %vm25 = vcmask 261248
    %26 = vst.msk [vmem:[#allocation0] sm:$0x1] %vm25, %v24
    %s28 = sshllo.u32 0, 1
    %v30 = vld [vmem:[#allocation0] sm:%s28]
    %s31 = sshllo.u32 0, 1
    %32 = vst [vmem:[%s1] sm:%s31] %v30

// kernel: tile.6
$region0: #{tile.6}
  #allocation0 [shape = 's32[1]{0}', space=sflag, size = 0x4, scoped, tag = 'scoped memory for tile.6']
  %s0 = inlined_call_operand.vmem [shape: f32[64], index: 0, kind: input, shape index: {}]
  %s1 = inlined_call_operand.vmem [shape: f32[2,64], index: 1, kind: output, shape index: {}]
  // Predicated region
  $region2: #{tile.6} parent=0 // pred_check
    _
  $region3: #{tile.6} parent=0 // pred_check_branch
    %3 = sbr.rel (0) target = $region5
  $region4: #{tile.6} parent=0 // pred_region
    _
  $region5: #{tile.6} parent=0 // pred_fallthru
    _
  %v4 = vld [vmem:[%s0] ss:$0 sm:$0xff]
  %5 = vst [vmem:[%s1] sm:$0x3] %v4

// kernel: tile.7
$region0: #{tile.7}
  %s0 = inlined_call_operand.vmem [shape: f32[2,64], index: 0, kind: input, shape index: {}]
  %s1 = inlined_call_operand.vmem [shape: f32[1,128], index: 1, kind: output, shape index: {}]
  $region1: #{tile.7} parent=0
    #allocation0 [shape = 'u8[4096]{0}', space=vmem, size = 0x1000, scoped, tag = 'scoped mem for output reshape']
    #allocation1 [shape = 'u8[4096]{0}', space=vmem, size = 0x1000, scoped, tag = 'scoped mem for input reshape']
    %s3 = sshllo.u32 0, 2
    %v4 = vld [vmem:[%s0] sm:%s3]
    %5 = vst [vmem:[#allocation1] sm:%s3] %v4
    %v6 = vld [vmem:[#allocation1] sm:$0x1]
    %vm7 = vcmask 523264
    %8 = vst.msk [vmem:[#allocation0] sm:$0x1] %vm7, %v6
    %s9 = scalar_lea.vmem [#allocation1], 1
    %v10 = vld [vmem:[%s9] sm:$0x1]
    %11 = vrot.lane.b32.xlu0 %v10, 64
    %v12 = vpop.permute.xlu0 %11
    %vm13 = vcmask 1048064
    %14 = vst.msk [vmem:[#allocation0] sm:$0x1] %vm13, %v12
    %s16 = sshllo.u32 0, 1
    %v18 = vld [vmem:[#allocation0] sm:%s16]
    %s19 = sshllo.u32 0, 1
    %20 = vst [vmem:[%s1] sm:%s19] %v18

// kernel: frat_piror_forward.1
$region0: #{frat_piror_forward.1}
  #allocation0 [shape = 'u32[]', space=smem, size = 0x4, offset = 0x4, fixed_abs, tag = 'smem constant byte address 0x4 - core index']
  #allocation1 [shape = 'u32[144,128]{1,0:T(1,128)}', space=vmem, size = 0x12000, scoped, tag = 'internal scratch']
  %s0 = inlined_call_operand.vmem [shape: f32[7,22,128], index: 0, kind: input, shape index: {}]
  %s1 = inlined_call_operand.vmem [shape: f32[128,128], index: 1, kind: input, shape index: {}]
  %s2 = inlined_call_operand.vmem [shape: f32[1,128], index: 2, kind: input, shape index: {}]
  %s3 = inlined_call_operand.vmem [shape: f32[16,128], index: 3, kind: output, shape index: {}]
  %s4 = sld [smem:[#allocation0]]
  $region22: #{frat_piror_forward.1} parent=0
    _
  %s6 = ssub.s32 1, %s4
  %s7 = scalar_select 0, %s6, %s4
  // Predicated region
  $region2: #{frat_piror_forward.1} parent=0 // pred_check
    _
  $region3: #{frat_piror_forward.1} parent=0 // pred_check_branch
    %9 = sbr.rel (0) target = $region5
  $region4: #{frat_piror_forward.1} parent=0 // pred_region
    _
  $region5: #{frat_piror_forward.1} parent=0 // pred_fallthru
    _
  // Predicated region
  $region6: #{frat_piror_forward.1} parent=0 // pred_check
    _
  $region7: #{frat_piror_forward.1} parent=0 // pred_check_branch
    %11 = sbr.rel (0) target = $region9
  $region8: #{frat_piror_forward.1} parent=0 // pred_region
    _
  $region9: #{frat_piror_forward.1} parent=0 // pred_fallthru
    _
  // Predicated region
  $region10: #{frat_piror_forward.1} parent=0 // pred_check
    _
  $region11: #{frat_piror_forward.1} parent=0 // pred_check_branch
    %13 = sbr.rel (0) target = $region13
  $region12: #{frat_piror_forward.1} parent=0 // pred_region
    _
  $region13: #{frat_piror_forward.1} parent=0 // pred_fallthru
    _
  %v14 = vld [vmem:[%s0] sm:$0xff]
  %v15 = vld [vmem:[%s0 + $0x8] sm:$0xff]
  %s16 = scalar_lea.vmem %s0, 24
  %v17 = vld [vmem:[%s16] sm:$0xff]
  %v18 = vld [vmem:[%s16 + $0x8] sm:$0xff]
  %v19 = vmax.f32 %v14, %v17
  %v20 = vmax.f32 %v15, %v18
  %v21 = vmin.f32 %v14, %v17
  %v22 = vmin.f32 %v15, %v18
  %s23 = scalar_lea.vmem %s0, 48
  %v24 = vld [vmem:[%s23] sm:$0xff]
  %v25 = vld [vmem:[%s23 + $0x8] sm:$0xff]
  %v26 = vmax.f32 %v19, %v24
  %v27 = vmax.f32 %v20, %v25
  %v28 = vmin.f32 %v21, %v24
  %v29 = vmin.f32 %v22, %v25
  %s30 = scalar_lea.vmem %s0, 72
  %v31 = vld [vmem:[%s30] sm:$0xff]
  %v32 = vld [vmem:[%s30 + $0x8] sm:$0xff]
  %v33 = vmax.f32 %v26, %v31
  %v34 = vmax.f32 %v27, %v32
  %v35 = vmin.f32 %v28, %v31
  %v36 = vmin.f32 %v29, %v32
  %v37 = vsub.f32 %v33, %v35
  %v38 = vsub.f32 %v34, %v36
  %s39 = scalar_lea.vmem %s0, 96
  %v40 = vld [vmem:[%s39] sm:$0xff]
  %v41 = vld [vmem:[%s39 + $0x8] sm:$0xff]
  %s42 = scalar_lea.vmem %s0, 120
  %v43 = vld [vmem:[%s42] sm:$0xff]
  %v44 = vld [vmem:[%s42 + $0x8] sm:$0xff]
  %v45 = vmax.f32 %v40, %v43
  %v46 = vmax.f32 %v41, %v44
  %v47 = vmin.f32 %v40, %v43
  %v48 = vmin.f32 %v41, %v44
  %v49 = vld [vmem:[%s0 + $0x1] sm:$0xff]
  %v50 = vld [vmem:[%s0 + $0x9] sm:$0xff]
  %v51 = vmax.f32 %v45, %v49
  %v52 = vmax.f32 %v46, %v50
  %v53 = vmin.f32 %v47, %v49
  %v54 = vmin.f32 %v48, %v50
  %v55 = vld [vmem:[%s16 + $0x1] sm:$0xff]
  %v56 = vld [vmem:[%s16 + $0x9] sm:$0xff]
  %v57 = vmax.f32 %v51, %v55
  %v58 = vmax.f32 %v52, %v56
  %v59 = vmin.f32 %v53, %v55
  %v60 = vmin.f32 %v54, %v56
  %v61 = vsub.f32 %v57, %v59
  %v62 = vsub.f32 %v58, %v60
  %v63 = vadd.f32 %v37, %v61
  %v64 = vadd.f32 %v38, %v62
  %v65 = vld [vmem:[%s23 + $0x1] sm:$0xff]
  %v66 = vld [vmem:[%s23 + $0x9] sm:$0xff]
  %v67 = vld [vmem:[%s30 + $0x1] sm:$0xff]
  %v68 = vld [vmem:[%s30 + $0x9] sm:$0xff]
  %v69 = vmax.f32 %v65, %v67
  %v70 = vmax.f32 %v66, %v68
  %v71 = vmin.f32 %v65, %v67
  %v72 = vmin.f32 %v66, %v68
  %v73 = vld [vmem:[%s39 + $0x1] sm:$0xff]
  %v74 = vld [vmem:[%s39 + $0x9] sm:$0xff]
  %v75 = vmax.f32 %v69, %v73
  %v76 = vmax.f32 %v70, %v74
  %v77 = vmin.f32 %v71, %v73
  %v78 = vmin.f32 %v72, %v74
  %v79 = vld [vmem:[%s42 + $0x1] sm:$0xff]
  %v80 = vld [vmem:[%s42 + $0x9] sm:$0xff]
  %v81 = vmax.f32 %v75, %v79
  %v82 = vmax.f32 %v76, %v80
  %v83 = vmin.f32 %v77, %v79
  %v84 = vmin.f32 %v78, %v80
  %v85 = vsub.f32 %v81, %v83
  %v86 = vsub.f32 %v82, %v84
  %v87 = vadd.f32 %v63, %v85
  %v88 = vadd.f32 %v64, %v86
  %v89 = vld [vmem:[%s0 + $0x2] sm:$0xff]
  %v90 = vld [vmem:[%s0 + $0xa] sm:$0xff]
  %v91 = vld [vmem:[%s16 + $0x2] sm:$0xff]
  %v92 = vld [vmem:[%s16 + $0xa] sm:$0xff]
  %v93 = vmax.f32 %v89, %v91
  %v94 = vmax.f32 %v90, %v92
  %v95 = vmin.f32 %v89, %v91
  %v96 = vmin.f32 %v90, %v92
  %v97 = vld [vmem:[%s23 + $0x2] sm:$0xff]
  %v98 = vld [vmem:[%s23 + $0xa] sm:$0xff]
  %v99 = vmax.f32 %v93, %v97
  %v100 = vmax.f32 %v94, %v98
  %v101 = vmin.f32 %v95, %v97
  %v102 = vmin.f32 %v96, %v98
  %v103 = vld [vmem:[%s30 + $0x2] sm:$0xff]
  %v104 = vld [vmem:[%s30 + $0xa] sm:$0xff]
  %v105 = vmax.f32 %v99, %v103
  %v106 = vmax.f32 %v100, %v104
  %v107 = vmin.f32 %v101, %v103
  %v108 = vmin.f32 %v102, %v104
  %v109 = vsub.f32 %v105, %v107
  %v110 = vsub.f32 %v106, %v108
  %v111 = vadd.f32 %v87, %v109
  %v112 = vadd.f32 %v88, %v110
  %v113 = vld [vmem:[%s39 + $0x2] sm:$0xff]
  %v114 = vld [vmem:[%s39 + $0xa] sm:$0xff]
  %v115 = vld [vmem:[%s42 + $0x2] sm:$0xff]
  %v116 = vld [vmem:[%s42 + $0xa] sm:$0xff]
  %v117 = vmax.f32 %v113, %v115
  %v118 = vmax.f32 %v114, %v116
  %v119 = vmin.f32 %v113, %v115
  %v120 = vmin.f32 %v114, %v116
  %v121 = vld [vmem:[%s0 + $0x3] sm:$0xff]
  %v122 = vld [vmem:[%s0 + $0xb] sm:$0xff]
  %v123 = vmax.f32 %v117, %v121
  %v124 = vmax.f32 %v118, %v122
  %v125 = vmin.f32 %v119, %v121
  %v126 = vmin.f32 %v120, %v122
  %v127 = vld [vmem:[%s16 + $0x3] sm:$0xff]
  %v128 = vld [vmem:[%s16 + $0xb] sm:$0xff]
  %v129 = vmax.f32 %v123, %v127
  %v130 = vmax.f32 %v124, %v128
  %v131 = vmin.f32 %v125, %v127
  %v132 = vmin.f32 %v126, %v128
  %v133 = vsub.f32 %v129, %v131
  %v134 = vsub.f32 %v130, %v132
  %v135 = vadd.f32 %v111, %v133
  %v136 = vadd.f32 %v112, %v134
  %v137 = vld [vmem:[%s23 + $0x3] sm:$0xff]
  %v138 = vld [vmem:[%s23 + $0xb] sm:$0xff]
  %v139 = vld [vmem:[%s30 + $0x3] sm:$0xff]
  %v140 = vld [vmem:[%s30 + $0xb] sm:$0xff]
  %v141 = vmax.f32 %v137, %v139
  %v142 = vmax.f32 %v138, %v140
  %v143 = vmin.f32 %v137, %v139
  %v144 = vmin.f32 %v138, %v140
  %v145 = vld [vmem:[%s39 + $0x3] sm:$0xff]
  %v146 = vld [vmem:[%s39 + $0xb] sm:$0xff]
  %v147 = vmax.f32 %v141, %v145
  %v148 = vmax.f32 %v142, %v146
  %v149 = vmin.f32 %v143, %v145
  %v150 = vmin.f32 %v144, %v146
  %v151 = vld [vmem:[%s42 + $0x3] sm:$0xff]
  %v152 = vld [vmem:[%s42 + $0xb] sm:$0xff]
  %v153 = vmax.f32 %v147, %v151
  %v154 = vmax.f32 %v148, %v152
  %v155 = vmin.f32 %v149, %v151
  %v156 = vmin.f32 %v150, %v152
  %v157 = vsub.f32 %v153, %v155
  %v158 = vsub.f32 %v154, %v156
  %v159 = vadd.f32 %v135, %v157
  %v160 = vadd.f32 %v136, %v158
  %v161 = vld [vmem:[%s0 + $0x4] sm:$0xff]
  %v162 = vld [vmem:[%s0 + $0xc] sm:$0xff]
  %v163 = vld [vmem:[%s16 + $0x4] sm:$0xff]
  %v164 = vld [vmem:[%s16 + $0xc] sm:$0xff]
  %v165 = vmax.f32 %v161, %v163
  %v166 = vmax.f32 %v162, %v164
  %v167 = vmin.f32 %v161, %v163
  %v168 = vmin.f32 %v162, %v164
  %v169 = vld [vmem:[%s23 + $0x4] sm:$0xff]
  %v170 = vld [vmem:[%s23 + $0xc] sm:$0xff]
  %v171 = vmax.f32 %v165, %v169
  %v172 = vmax.f32 %v166, %v170
  %v173 = vmin.f32 %v167, %v169
  %v174 = vmin.f32 %v168, %v170
  %v175 = vld [vmem:[%s30 + $0x4] sm:$0xff]
  %v176 = vld [vmem:[%s30 + $0xc] sm:$0xff]
  %v177 = vmax.f32 %v171, %v175
  %v178 = vmax.f32 %v172, %v176
  %v179 = vmin.f32 %v173, %v175
  %v180 = vmin.f32 %v174, %v176
  %v181 = vsub.f32 %v177, %v179
  %v182 = vsub.f32 %v178, %v180
  %v183 = vadd.f32 %v159, %v181
  %v184 = vadd.f32 %v160, %v182
  %v185 = vld [vmem:[%s39 + $0x4] sm:$0xff]
  %v186 = vld [vmem:[%s39 + $0xc] sm:$0xff]
  %v187 = vld [vmem:[%s42 + $0x4] sm:$0xff]
  %v188 = vld [vmem:[%s42 + $0xc] sm:$0xff]
  %v189 = vmax.f32 %v185, %v187
  %v190 = vmax.f32 %v186, %v188
  %v191 = vmin.f32 %v185, %v187
  %v192 = vmin.f32 %v186, %v188
  %v193 = vld [vmem:[%s0 + $0x5] sm:$0xff]
  %v194 = vld [vmem:[%s0 + $0xd] sm:$0xff]
  %v195 = vmax.f32 %v189, %v193
  %v196 = vmax.f32 %v190, %v194
  %v197 = vmin.f32 %v191, %v193
  %v198 = vmin.f32 %v192, %v194
  %v199 = vld [vmem:[%s16 + $0x5] sm:$0xff]
  %v200 = vld [vmem:[%s16 + $0xd] sm:$0xff]
  %v201 = vmax.f32 %v195, %v199
  %v202 = vmax.f32 %v196, %v200
  %v203 = vmin.f32 %v197, %v199
  %v204 = vmin.f32 %v198, %v200
  %v205 = vsub.f32 %v201, %v203
  %v206 = vsub.f32 %v202, %v204
  %v207 = vadd.f32 %v183, %v205
  %v208 = vadd.f32 %v184, %v206
  %v209 = vld [vmem:[%s23 + $0x5] sm:$0xff]
  %v210 = vld [vmem:[%s23 + $0xd] sm:$0xff]
  %v211 = vld [vmem:[%s30 + $0x5] sm:$0xff]
  %v212 = vld [vmem:[%s30 + $0xd] sm:$0xff]
  %v213 = vmax.f32 %v209, %v211
  %v214 = vmax.f32 %v210, %v212
  %v215 = vmin.f32 %v209, %v211
  %v216 = vmin.f32 %v210, %v212
  %v217 = vld [vmem:[%s39 + $0x5] sm:$0xff]
  %v218 = vld [vmem:[%s39 + $0xd] sm:$0xff]
  %v219 = vmax.f32 %v213, %v217
  %v220 = vmax.f32 %v214, %v218
  %v221 = vmin.f32 %v215, %v217
  %v222 = vmin.f32 %v216, %v218
  %v223 = vld [vmem:[%s42 + $0x5] sm:$0xff]
  %v224 = vld [vmem:[%s42 + $0xd] sm:$0xff]
  %v225 = vmax.f32 %v219, %v223
  %v226 = vmax.f32 %v220, %v224
  %v227 = vmin.f32 %v221, %v223
  %v228 = vmin.f32 %v222, %v224
  %v229 = vsub.f32 %v225, %v227
  %v230 = vsub.f32 %v226, %v228
  %v231 = vadd.f32 %v207, %v229
  %v232 = vadd.f32 %v208, %v230
  %v233 = vmax.f32 %v17, %v24
  %v234 = vmax.f32 %v18, %v25
  %v235 = vmin.f32 %v17, %v24
  %v236 = vmin.f32 %v18, %v25
  %v237 = vmax.f32 %v233, %v31
  %v238 = vmax.f32 %v234, %v32
  %v239 = vmin.f32 %v235, %v31
  %v240 = vmin.f32 %v236, %v32
  %v241 = vmax.f32 %v237, %v40
  %v242 = vmax.f32 %v238, %v41
  %v243 = vmin.f32 %v239, %v40
  %v244 = vmin.f32 %v240, %v41
  %v245 = vsub.f32 %v241, %v243
  %v246 = vsub.f32 %v242, %v244
  %v247 = vadd.f32 %v231, %v245
  %v248 = vadd.f32 %v232, %v246
  %s249 = scalar_lea.vmem %s0, 144
  %v250 = vld [vmem:[%s249] sm:$0xff]
  %v251 = vld [vmem:[%s249 + $0x8] sm:$0xff]
  %v252 = vmax.f32 %v43, %v250
  %v253 = vmax.f32 %v44, %v251
  %v254 = vmin.f32 %v43, %v250
  %v255 = vmin.f32 %v44, %v251
  %v256 = vmax.f32 %v252, %v55
  %v257 = vmax.f32 %v253, %v56
  %v258 = vmin.f32 %v254, %v55
  %v259 = vmin.f32 %v255, %v56
  %v260 = vmax.f32 %v256, %v65
  %v261 = vmax.f32 %v257, %v66
  %v262 = vmin.f32 %v258, %v65
  %v263 = vmin.f32 %v259, %v66
  %v264 = vsub.f32 %v260, %v262
  %v265 = vsub.f32 %v261, %v263
  %v266 = vadd.f32 %v247, %v264
  %v267 = vadd.f32 %v248, %v265
  %v268 = vmax.f32 %v67, %v73
  %v269 = vmax.f32 %v68, %v74
  %v270 = vmin.f32 %v67, %v73
  %v271 = vmin.f32 %v68, %v74
  %v272 = vmax.f32 %v268, %v79
  %v273 = vmax.f32 %v269, %v80
  %v274 = vmin.f32 %v270, %v79
  %v275 = vmin.f32 %v271, %v80
  %v276 = vld [vmem:[%s249 + $0x1] sm:$0xff]
  %v277 = vld [vmem:[%s249 + $0x9] sm:$0xff]
  %v278 = vmax.f32 %v272, %v276
  %v279 = vmax.f32 %v273, %v277
  %v280 = vmin.f32 %v274, %v276
  %v281 = vmin.f32 %v275, %v277
  %v282 = vsub.f32 %v278, %v280
  %v283 = vsub.f32 %v279, %v281
  %v284 = vadd.f32 %v266, %v282
  %v285 = vadd.f32 %v267, %v283
  %v286 = vmax.f32 %v91, %v97
  %v287 = vmax.f32 %v92, %v98
  %v288 = vmin.f32 %v91, %v97
  %v289 = vmin.f32 %v92, %v98
  %v290 = vmax.f32 %v286, %v103
  %v291 = vmax.f32 %v287, %v104
  %v292 = vmin.f32 %v288, %v103
  %v293 = vmin.f32 %v289, %v104
  %v294 = vmax.f32 %v290, %v113
  %v295 = vmax.f32 %v291, %v114
  %v296 = vmin.f32 %v292, %v113
  %v297 = vmin.f32 %v293, %v114
  %v298 = vsub.f32 %v294, %v296
  %v299 = vsub.f32 %v295, %v297
  %v300 = vadd.f32 %v284, %v298
  %v301 = vadd.f32 %v285, %v299
  %v302 = vld [vmem:[%s249 + $0x2] sm:$0xff]
  %v303 = vld [vmem:[%s249 + $0xa] sm:$0xff]
  %v304 = vmax.f32 %v115, %v302
  %v305 = vmax.f32 %v116, %v303
  %v306 = vmin.f32 %v115, %v302
  %v307 = vmin.f32 %v116, %v303
  %v308 = vmax.f32 %v304, %v127
  %v309 = vmax.f32 %v305, %v128
  %v310 = vmin.f32 %v306, %v127
  %v311 = vmin.f32 %v307, %v128
  %v312 = vmax.f32 %v308, %v137
  %v313 = vmax.f32 %v309, %v138
  %v314 = vmin.f32 %v310, %v137
  %v315 = vmin.f32 %v311, %v138
  %v316 = vsub.f32 %v312, %v314
  %v317 = vsub.f32 %v313, %v315
  %v318 = vadd.f32 %v300, %v316
  %v319 = vadd.f32 %v301, %v317
  %v320 = vmax.f32 %v139, %v145
  %v321 = vmax.f32 %v140, %v146
  %v322 = vmin.f32 %v139, %v145
  %v323 = vmin.f32 %v140, %v146
  %v324 = vmax.f32 %v320, %v151
  %v325 = vmax.f32 %v321, %v152
  %v326 = vmin.f32 %v322, %v151
  %v327 = vmin.f32 %v323, %v152
  %v328 = vld [vmem:[%s249 + $0x3] sm:$0xff]
  %v329 = vld [vmem:[%s249 + $0xb] sm:$0xff]
  %v330 = vmax.f32 %v324, %v328
  %v331 = vmax.f32 %v325, %v329
  %v332 = vmin.f32 %v326, %v328
  %v333 = vmin.f32 %v327, %v329
  %v334 = vsub.f32 %v330, %v332
  %v335 = vsub.f32 %v331, %v333
  %v336 = vadd.f32 %v318, %v334
  %v337 = vadd.f32 %v319, %v335
  %v338 = vmax.f32 %v163, %v169
  %v339 = vmax.f32 %v164, %v170
  %v340 = vmin.f32 %v163, %v169
  %v341 = vmin.f32 %v164, %v170
  %v342 = vmax.f32 %v338, %v175
  %v343 = vmax.f32 %v339, %v176
  %v344 = vmin.f32 %v340, %v175
  %v345 = vmin.f32 %v341, %v176
  %v346 = vmax.f32 %v342, %v185
  %v347 = vmax.f32 %v343, %v186
  %v348 = vmin.f32 %v344, %v185
  %v349 = vmin.f32 %v345, %v186
  %v350 = vsub.f32 %v346, %v348
  %v351 = vsub.f32 %v347, %v349
  %v352 = vadd.f32 %v336, %v350
  %v353 = vadd.f32 %v337, %v351
  %v354 = vld [vmem:[%s249 + $0x4] sm:$0xff]
  %v355 = vld [vmem:[%s249 + $0xc] sm:$0xff]
  %v356 = vmax.f32 %v187, %v354
  %v357 = vmax.f32 %v188, %v355
  %v358 = vmin.f32 %v187, %v354
  %v359 = vmin.f32 %v188, %v355
  %v360 = vmax.f32 %v356, %v199
  %v361 = vmax.f32 %v357, %v200
  %v362 = vmin.f32 %v358, %v199
  %v363 = vmin.f32 %v359, %v200
  %v364 = vmax.f32 %v360, %v209
  %v365 = vmax.f32 %v361, %v210
  %v366 = vmin.f32 %v362, %v209
  %v367 = vmin.f32 %v363, %v210
  %v368 = vsub.f32 %v364, %v366
  %v369 = vsub.f32 %v365, %v367
  %v370 = vadd.f32 %v352, %v368
  %v371 = vadd.f32 %v353, %v369
  %v372 = vmax.f32 %v211, %v217
  %v373 = vmax.f32 %v212, %v218
  %v374 = vmin.f32 %v211, %v217
  %v375 = vmin.f32 %v212, %v218
  %v376 = vmax.f32 %v372, %v223
  %v377 = vmax.f32 %v373, %v224
  %v378 = vmin.f32 %v374, %v223
  %v379 = vmin.f32 %v375, %v224
  %v380 = vld [vmem:[%s249 + $0x5] sm:$0xff]
  %v381 = vld [vmem:[%s249 + $0xd] sm:$0xff]
  %v382 = vmax.f32 %v376, %v380
  %v383 = vmax.f32 %v377, %v381
  %v384 = vmin.f32 %v378, %v380
  %v385 = vmin.f32 %v379, %v381
  %v386 = vsub.f32 %v382, %v384
  %v387 = vsub.f32 %v383, %v385
  %v388 = vadd.f32 %v370, %v386
  %v389 = vadd.f32 %v371, %v387
  %v390 = vmax.f32 %v49, %v55
  %v391 = vmax.f32 %v50, %v56
  %v392 = vmin.f32 %v49, %v55
  %v393 = vmin.f32 %v50, %v56
  %v394 = vmax.f32 %v390, %v65
  %v395 = vmax.f32 %v391, %v66
  %v396 = vmin.f32 %v392, %v65
  %v397 = vmin.f32 %v393, %v66
  %v398 = vmax.f32 %v394, %v67
  %v399 = vmax.f32 %v395, %v68
  %v400 = vmin.f32 %v396, %v67
  %v401 = vmin.f32 %v397, %v68
  %v402 = vsub.f32 %v398, %v400
  %v403 = vsub.f32 %v399, %v401
  %v404 = vadd.f32 %v388, %v402
  %v405 = vadd.f32 %v389, %v403
  %v406 = vmax.f32 %v73, %v79
  %v407 = vmax.f32 %v74, %v80
  %v408 = vmin.f32 %v73, %v79
  %v409 = vmin.f32 %v74, %v80
  %v410 = vmax.f32 %v406, %v89
  %v411 = vmax.f32 %v407, %v90
  %v412 = vmin.f32 %v408, %v89
  %v413 = vmin.f32 %v409, %v90
  %v414 = vmax.f32 %v410, %v91
  %v415 = vmax.f32 %v411, %v92
  %v416 = vmin.f32 %v412, %v91
  %v417 = vmin.f32 %v413, %v92
  %v418 = vsub.f32 %v414, %v416
  %v419 = vsub.f32 %v415, %v417
  %v420 = vadd.f32 %v404, %v418
  %v421 = vadd.f32 %v405, %v419
  %v422 = vmax.f32 %v97, %v103
  %v423 = vmax.f32 %v98, %v104
  %v424 = vmin.f32 %v97, %v103
  %v425 = vmin.f32 %v98, %v104
  %v426 = vmax.f32 %v422, %v113
  %v427 = vmax.f32 %v423, %v114
  %v428 = vmin.f32 %v424, %v113
  %v429 = vmin.f32 %v425, %v114
  %v430 = vmax.f32 %v426, %v115
  %v431 = vmax.f32 %v427, %v116
  %v432 = vmin.f32 %v428, %v115
  %v433 = vmin.f32 %v429, %v116
  %v434 = vsub.f32 %v430, %v432
  %v435 = vsub.f32 %v431, %v433
  %v436 = vadd.f32 %v420, %v434
  %v437 = vadd.f32 %v421, %v435
  %v438 = vmax.f32 %v121, %v127
  %v439 = vmax.f32 %v122, %v128
  %v440 = vmin.f32 %v121, %v127
  %v441 = vmin.f32 %v122, %v128
  %v442 = vmax.f32 %v438, %v137
  %v443 = vmax.f32 %v439, %v138
  %v444 = vmin.f32 %v440, %v137
  %v445 = vmin.f32 %v441, %v138
  %v446 = vmax.f32 %v442, %v139
  %v447 = vmax.f32 %v443, %v140
  %v448 = vmin.f32 %v444, %v139
  %v449 = vmin.f32 %v445, %v140
  %v450 = vsub.f32 %v446, %v448
  %v451 = vsub.f32 %v447, %v449
  %v452 = vadd.f32 %v436, %v450
  %v453 = vadd.f32 %v437, %v451
  %v454 = vmax.f32 %v145, %v151
  %v455 = vmax.f32 %v146, %v152
  %v456 = vmin.f32 %v145, %v151
  %v457 = vmin.f32 %v146, %v152
  %v458 = vmax.f32 %v454, %v161
  %v459 = vmax.f32 %v455, %v162
  %v460 = vmin.f32 %v456, %v161
  %v461 = vmin.f32 %v457, %v162
  %v462 = vmax.f32 %v458, %v163
  %v463 = vmax.f32 %v459, %v164
  %v464 = vmin.f32 %v460, %v163
  %v465 = vmin.f32 %v461, %v164
  %v466 = vsub.f32 %v462, %v464
  %v467 = vsub.f32 %v463, %v465
  %v468 = vadd.f32 %v452, %v466
  %v469 = vadd.f32 %v453, %v467
  %v470 = vmax.f32 %v169, %v175
  %v471 = vmax.f32 %v170, %v176
  %v472 = vmin.f32 %v169, %v175
  %v473 = vmin.f32 %v170, %v176
  %v474 = vmax.f32 %v470, %v185
  %v475 = vmax.f32 %v471, %v186
  %v476 = vmin.f32 %v472, %v185
  %v477 = vmin.f32 %v473, %v186
  %v478 = vmax.f32 %v474, %v187
  %v479 = vmax.f32 %v475, %v188
  %v480 = vmin.f32 %v476, %v187
  %v481 = vmin.f32 %v477, %v188
  %v482 = vsub.f32 %v478, %v480
  %v483 = vsub.f32 %v479, %v481
  %v484 = vadd.f32 %v468, %v482
  %v485 = vadd.f32 %v469, %v483
  %v486 = vmax.f32 %v193, %v199
  %v487 = vmax.f32 %v194, %v200
  %v488 = vmin.f32 %v193, %v199
  %v489 = vmin.f32 %v194, %v200
  %v490 = vmax.f32 %v486, %v209
  %v491 = vmax.f32 %v487, %v210
  %v492 = vmin.f32 %v488, %v209
  %v493 = vmin.f32 %v489, %v210
  %v494 = vmax.f32 %v490, %v211
  %v495 = vmax.f32 %v491, %v212
  %v496 = vmin.f32 %v492, %v211
  %v497 = vmin.f32 %v493, %v212
  %v498 = vsub.f32 %v494, %v496
  %v499 = vsub.f32 %v495, %v497
  %v500 = vadd.f32 %v484, %v498
  %v501 = vadd.f32 %v485, %v499
  %v502 = vmax.f32 %v217, %v223
  %v503 = vmax.f32 %v218, %v224
  %v504 = vmin.f32 %v217, %v223
  %v505 = vmin.f32 %v218, %v224
  %v506 = vld [vmem:[%s0 + $0x6] sm:$0xff]
  %v507 = vld [vmem:[%s0 + $0xe] sm:$0xff]
  %v508 = vmax.f32 %v502, %v506
  %v509 = vmax.f32 %v503, %v507
  %v510 = vmin.f32 %v504, %v506
  %v511 = vmin.f32 %v505, %v507
  %v512 = vld [vmem:[%s16 + $0x6] sm:$0xff]
  %v513 = vld [vmem:[%s16 + $0xe] sm:$0xff]
  %v514 = vmax.f32 %v508, %v512
  %v515 = vmax.f32 %v509, %v513
  %v516 = vmin.f32 %v510, %v512
  %v517 = vmin.f32 %v511, %v513
  %v518 = vsub.f32 %v514, %v516
  %v519 = vsub.f32 %v515, %v517
  %v520 = vadd.f32 %v500, %v518
  %v521 = vadd.f32 %v501, %v519
  %v522 = vld [vmem:[%s23 + $0x6] sm:$0xff]
  %v523 = vld [vmem:[%s23 + $0xe] sm:$0xff]
  %v524 = vld [vmem:[%s30 + $0x6] sm:$0xff]
  %v525 = vld [vmem:[%s30 + $0xe] sm:$0xff]
  %v526 = vmax.f32 %v522, %v524
  %v527 = vmax.f32 %v523, %v525
  %v528 = vmin.f32 %v522, %v524
  %v529 = vmin.f32 %v523, %v525
  %v530 = vld [vmem:[%s39 + $0x6] sm:$0xff]
  %v531 = vld [vmem:[%s39 + $0xe] sm:$0xff]
  %v532 = vmax.f32 %v526, %v530
  %v533 = vmax.f32 %v527, %v531
  %v534 = vmin.f32 %v528, %v530
  %v535 = vmin.f32 %v529, %v531
  %v536 = vld [vmem:[%s42 + $0x6] sm:$0xff]
  %v537 = vld [vmem:[%s42 + $0xe] sm:$0xff]
  %v538 = vmax.f32 %v532, %v536
  %v539 = vmax.f32 %v533, %v537
  %v540 = vmin.f32 %v534, %v536
  %v541 = vmin.f32 %v535, %v537
  %v542 = vsub.f32 %v538, %v540
  %v543 = vsub.f32 %v539, %v541
  %v544 = vadd.f32 %v520, %v542
  %v545 = vadd.f32 %v521, %v543
  %v546 = vmax.f32 %v55, %v65
  %v547 = vmax.f32 %v56, %v66
  %v548 = vmin.f32 %v55, %v65
  %v549 = vmin.f32 %v56, %v66
  %v550 = vmax.f32 %v546, %v67
  %v551 = vmax.f32 %v547, %v68
  %v552 = vmin.f32 %v548, %v67
  %v553 = vmin.f32 %v549, %v68
  %v554 = vmax.f32 %v550, %v73
  %v555 = vmax.f32 %v551, %v74
  %v556 = vmin.f32 %v552, %v73
  %v557 = vmin.f32 %v553, %v74
  %v558 = vsub.f32 %v554, %v556
  %v559 = vsub.f32 %v555, %v557
  %v560 = vadd.f32 %v544, %v558
  %v561 = vadd.f32 %v545, %v559
  %v562 = vmax.f32 %v79, %v276
  %v563 = vmax.f32 %v80, %v277
  %v564 = vmin.f32 %v79, %v276
  %v565 = vmin.f32 %v80, %v277
  %v566 = vmax.f32 %v562, %v91
  %v567 = vmax.f32 %v563, %v92
  %v568 = vmin.f32 %v564, %v91
  %v569 = vmin.f32 %v565, %v92
  %v570 = vmax.f32 %v566, %v97
  %v571 = vmax.f32 %v567, %v98
  %v572 = vmin.f32 %v568, %v97
  %v573 = vmin.f32 %v569, %v98
  %v574 = vsub.f32 %v570, %v572
  %v575 = vsub.f32 %v571, %v573
  %v576 = vadd.f32 %v560, %v574
  %v577 = vadd.f32 %v561, %v575
  %v578 = vmax.f32 %v103, %v113
  %v579 = vmax.f32 %v104, %v114
  %v580 = vmin.f32 %v103, %v113
  %v581 = vmin.f32 %v104, %v114
  %v582 = vmax.f32 %v578, %v115
  %v583 = vmax.f32 %v579, %v116
  %v584 = vmin.f32 %v580, %v115
  %v585 = vmin.f32 %v581, %v116
  %v586 = vmax.f32 %v582, %v302
  %v587 = vmax.f32 %v583, %v303
  %v588 = vmin.f32 %v584, %v302
  %v589 = vmin.f32 %v585, %v303
  %v590 = vsub.f32 %v586, %v588
  %v591 = vsub.f32 %v587, %v589
  %v592 = vadd.f32 %v576, %v590
  %v593 = vadd.f32 %v577, %v591
  %v594 = vmax.f32 %v127, %v137
  %v595 = vmax.f32 %v128, %v138
  %v596 = vmin.f32 %v127, %v137
  %v597 = vmin.f32 %v128, %v138
  %v598 = vmax.f32 %v594, %v139
  %v599 = vmax.f32 %v595, %v140
  %v600 = vmin.f32 %v596, %v139
  %v601 = vmin.f32 %v597, %v140
  %v602 = vmax.f32 %v598, %v145
  %v603 = vmax.f32 %v599, %v146
  %v604 = vmin.f32 %v600, %v145
  %v605 = vmin.f32 %v601, %v146
  %v606 = vsub.f32 %v602, %v604
  %v607 = vsub.f32 %v603, %v605
  %v608 = vadd.f32 %v592, %v606
  %v609 = vadd.f32 %v593, %v607
  %v610 = vmax.f32 %v151, %v328
  %v611 = vmax.f32 %v152, %v329
  %v612 = vmin.f32 %v151, %v328
  %v613 = vmin.f32 %v152, %v329
  %v614 = vmax.f32 %v610, %v163
  %v615 = vmax.f32 %v611, %v164
  %v616 = vmin.f32 %v612, %v163
  %v617 = vmin.f32 %v613, %v164
  %v618 = vmax.f32 %v614, %v169
  %v619 = vmax.f32 %v615, %v170
  %v620 = vmin.f32 %v616, %v169
  %v621 = vmin.f32 %v617, %v170
  %v622 = vsub.f32 %v618, %v620
  %v623 = vsub.f32 %v619, %v621
  %v624 = vadd.f32 %v608, %v622
  %v625 = vadd.f32 %v609, %v623
  %v626 = vmax.f32 %v175, %v185
  %v627 = vmax.f32 %v176, %v186
  %v628 = vmin.f32 %v175, %v185
  %v629 = vmin.f32 %v176, %v186
  %v630 = vmax.f32 %v626, %v187
  %v631 = vmax.f32 %v627, %v188
  %v632 = vmin.f32 %v628, %v187
  %v633 = vmin.f32 %v629, %v188
  %v634 = vmax.f32 %v630, %v354
  %v635 = vmax.f32 %v631, %v355
  %v636 = vmin.f32 %v632, %v354
  %v637 = vmin.f32 %v633, %v355
  %v638 = vsub.f32 %v634, %v636
  %v639 = vsub.f32 %v635, %v637
  %v640 = vadd.f32 %v624, %v638
  %v641 = vadd.f32 %v625, %v639
  %v642 = vmax.f32 %v199, %v209
  %v643 = vmax.f32 %v200, %v210
  %v644 = vmin.f32 %v199, %v209
  %v645 = vmin.f32 %v200, %v210
  %v646 = vmax.f32 %v642, %v211
  %v647 = vmax.f32 %v643, %v212
  %v648 = vmin.f32 %v644, %v211
  %v649 = vmin.f32 %v645, %v212
  %v650 = vmax.f32 %v646, %v217
  %v651 = vmax.f32 %v647, %v218
  %v652 = vmin.f32 %v648, %v217
  %v653 = vmin.f32 %v649, %v218
  %v654 = vsub.f32 %v650, %v652
  %v655 = vsub.f32 %v651, %v653
  %v656 = vadd.f32 %v640, %v654
  %v657 = vadd.f32 %v641, %v655
  %v658 = vmax.f32 %v223, %v380
  %v659 = vmax.f32 %v224, %v381
  %v660 = vmin.f32 %v223, %v380
  %v661 = vmin.f32 %v224, %v381
  %v662 = vmax.f32 %v658, %v512
  %v663 = vmax.f32 %v659, %v513
  %v664 = vmin.f32 %v660, %v512
  %v665 = vmin.f32 %v661, %v513
  %v666 = vmax.f32 %v662, %v522
  %v667 = vmax.f32 %v663, %v523
  %v668 = vmin.f32 %v664, %v522
  %v669 = vmin.f32 %v665, %v523
  %v670 = vsub.f32 %v666, %v668
  %v671 = vsub.f32 %v667, %v669
  %v672 = vadd.f32 %v656, %v670
  %v673 = vadd.f32 %v657, %v671
  %v674 = vmax.f32 %v524, %v530
  %v675 = vmax.f32 %v525, %v531
  %v676 = vmin.f32 %v524, %v530
  %v677 = vmin.f32 %v525, %v531
  %v678 = vmax.f32 %v674, %v536
  %v679 = vmax.f32 %v675, %v537
  %v680 = vmin.f32 %v676, %v536
  %v681 = vmin.f32 %v677, %v537
  %v682 = vld [vmem:[%s249 + $0x6] sm:$0xff]
  %v683 = vld [vmem:[%s249 + $0xe] sm:$0xff]
  %v684 = vmax.f32 %v678, %v682
  %v685 = vmax.f32 %v679, %v683
  %v686 = vmin.f32 %v680, %v682
  %v687 = vmin.f32 %v681, %v683
  %v688 = vsub.f32 %v684, %v686
  %v689 = vsub.f32 %v685, %v687
  %v690 = vadd.f32 %v672, %v688
  %v691 = vadd.f32 %v673, %v689
  %v692 = vmul.f32 %v690, 3.5
  %v693 = vmul.f32 %v691, 3.5
  %v694 = vadd.f32 %v692, 36.0
  %v695 = vadd.f32 %v693, 36.0
  %v696 = vlog2.pop %v694
  %v697 = vmul.f32 %v696, 0.6931472
  %v698 = vlog2.pop %v695
  %v699 = vmul.f32 %v698, 0.6931472
  %v700 = vmax.f32 %v33, %v40
  %v701 = vmax.f32 %v34, %v41
  %v702 = vmin.f32 %v35, %v40
  %v703 = vmin.f32 %v36, %v41
  %v704 = vmax.f32 %v700, %v49
  %v705 = vmax.f32 %v701, %v50
  %v706 = vmin.f32 %v702, %v49
  %v707 = vmin.f32 %v703, %v50
  %v708 = vmax.f32 %v704, %v55
  %v709 = vmax.f32 %v705, %v56
  %v710 = vmin.f32 %v706, %v55
  %v711 = vmin.f32 %v707, %v56
  %v712 = vmax.f32 %v708, %v65
  %v713 = vmax.f32 %v709, %v66
  %v714 = vmin.f32 %v710, %v65
  %v715 = vmin.f32 %v711, %v66
  %v716 = vmax.f32 %v712, %v67
  %v717 = vmax.f32 %v713, %v68
  %v718 = vmin.f32 %v714, %v67
  %v719 = vmin.f32 %v715, %v68
  %v720 = vsub.f32 %v716, %v718
  %v721 = vsub.f32 %v717, %v719
  %v722 = vmax.f32 %v73, %v89
  %v723 = vmax.f32 %v74, %v90
  %v724 = vmin.f32 %v73, %v89
  %v725 = vmin.f32 %v74, %v90
  %v726 = vmax.f32 %v722, %v91
  %v727 = vmax.f32 %v723, %v92
  %v728 = vmin.f32 %v724, %v91
  %v729 = vmin.f32 %v725, %v92
  %v730 = vmax.f32 %v726, %v97
  %v731 = vmax.f32 %v727, %v98
  %v732 = vmin.f32 %v728, %v97
  %v733 = vmin.f32 %v729, %v98
  %v734 = vmax.f32 %v730, %v103
  %v735 = vmax.f32 %v731, %v104
  %v736 = vmin.f32 %v732, %v103
  %v737 = vmin.f32 %v733, %v104
  %v738 = vmax.f32 %v734, %v113
  %v739 = vmax.f32 %v735, %v114
  %v740 = vmin.f32 %v736, %v113
  %v741 = vmin.f32 %v737, %v114
  %v742 = vmax.f32 %v738, %v121
  %v743 = vmax.f32 %v739, %v122
  %v744 = vmin.f32 %v740, %v121
  %v745 = vmin.f32 %v741, %v122
  %v746 = vmax.f32 %v742, %v127
  %v747 = vmax.f32 %v743, %v128
  %v748 = vmin.f32 %v744, %v127
  %v749 = vmin.f32 %v745, %v128
  %v750 = vmax.f32 %v746, %v137
  %v751 = vmax.f32 %v747, %v138
  %v752 = vmin.f32 %v748, %v137
  %v753 = vmin.f32 %v749, %v138
  %v754 = vsub.f32 %v750, %v752
  %v755 = vsub.f32 %v751, %v753
  %v756 = vadd.f32 %v720, %v754
  %v757 = vadd.f32 %v721, %v755
  %v758 = vmax.f32 %v320, %v161
  %v759 = vmax.f32 %v321, %v162
  %v760 = vmin.f32 %v322, %v161
  %v761 = vmin.f32 %v323, %v162
  %v762 = vmax.f32 %v758, %v163
  %v763 = vmax.f32 %v759, %v164
  %v764 = vmin.f32 %v760, %v163
  %v765 = vmin.f32 %v761, %v164
  %v766 = vmax.f32 %v762, %v169
  %v767 = vmax.f32 %v763, %v170
  %v768 = vmin.f32 %v764, %v169
  %v769 = vmin.f32 %v765, %v170
  %v770 = vmax.f32 %v766, %v175
  %v771 = vmax.f32 %v767, %v176
  %v772 = vmin.f32 %v768, %v175
  %v773 = vmin.f32 %v769, %v176
  %v774 = vmax.f32 %v770, %v185
  %v775 = vmax.f32 %v771, %v186
  %v776 = vmin.f32 %v772, %v185
  %v777 = vmin.f32 %v773, %v186
  %v778 = vmax.f32 %v774, %v17
  %v779 = vmax.f32 %v775, %v18
  %v780 = vmin.f32 %v776, %v17
  %v781 = vmin.f32 %v777, %v18
  %v782 = vmax.f32 %v778, %v24
  %v783 = vmax.f32 %v779, %v25
  %v784 = vmin.f32 %v780, %v24
  %v785 = vmin.f32 %v781, %v25
  %v786 = vsub.f32 %v782, %v784
  %v787 = vsub.f32 %v783, %v785
  %v788 = vadd.f32 %v756, %v786
  %v789 = vadd.f32 %v757, %v787
  %v790 = vmax.f32 %v31, %v40
  %v791 = vmax.f32 %v32, %v41
  %v792 = vmin.f32 %v31, %v40
  %v793 = vmin.f32 %v32, %v41
  %v794 = vmax.f32 %v790, %v43
  %v795 = vmax.f32 %v791, %v44
  %v796 = vmin.f32 %v792, %v43
  %v797 = vmin.f32 %v793, %v44
  %v798 = vmax.f32 %v794, %v55
  %v799 = vmax.f32 %v795, %v56
  %v800 = vmin.f32 %v796, %v55
  %v801 = vmin.f32 %v797, %v56
  %v802 = vmax.f32 %v798, %v65
  %v803 = vmax.f32 %v799, %v66
  %v804 = vmin.f32 %v800, %v65
  %v805 = vmin.f32 %v801, %v66
  %v806 = vmax.f32 %v802, %v67
  %v807 = vmax.f32 %v803, %v68
  %v808 = vmin.f32 %v804, %v67
  %v809 = vmin.f32 %v805, %v68
  %v810 = vmax.f32 %v806, %v73
  %v811 = vmax.f32 %v807, %v74
  %v812 = vmin.f32 %v808, %v73
  %v813 = vmin.f32 %v809, %v74
  %v814 = vmax.f32 %v810, %v79
  %v815 = vmax.f32 %v811, %v80
  %v816 = vmin.f32 %v812, %v79
  %v817 = vmin.f32 %v813, %v80
  %v818 = vmax.f32 %v814, %v91
  %v819 = vmax.f32 %v815, %v92
  %v820 = vmin.f32 %v816, %v91
  %v821 = vmin.f32 %v817, %v92
  %v822 = vsub.f32 %v818, %v820
  %v823 = vsub.f32 %v819, %v821
  %v824 = vadd.f32 %v788, %v822
  %v825 = vadd.f32 %v789, %v823
  %v826 = vmax.f32 %v430, %v127
  %v827 = vmax.f32 %v431, %v128
  %v828 = vmin.f32 %v432, %v127
  %v829 = vmin.f32 %v433, %v128
  %v830 = vmax.f32 %v826, %v137
  %v831 = vmax.f32 %v827, %v138
  %v832 = vmin.f32 %v828, %v137
  %v833 = vmin.f32 %v829, %v138
  %v834 = vmax.f32 %v830, %v139
  %v835 = vmax.f32 %v831, %v140
  %v836 = vmin.f32 %v832, %v139
  %v837 = vmin.f32 %v833, %v140
  %v838 = vmax.f32 %v834, %v145
  %v839 = vmax.f32 %v835, %v146
  %v840 = vmin.f32 %v836, %v145
  %v841 = vmin.f32 %v837, %v146
  %v842 = vmax.f32 %v838, %v151
  %v843 = vmax.f32 %v839, %v152
  %v844 = vmin.f32 %v840, %v151
  %v845 = vmin.f32 %v841, %v152
  %v846 = vsub.f32 %v842, %v844
  %v847 = vsub.f32 %v843, %v845
  %v848 = vadd.f32 %v824, %v846
  %v849 = vadd.f32 %v825, %v847
  %v850 = vmax.f32 %v346, %v187
  %v851 = vmax.f32 %v347, %v188
  %v852 = vmin.f32 %v348, %v187
  %v853 = vmin.f32 %v349, %v188
  %v854 = vmax.f32 %v850, %v24
  %v855 = vmax.f32 %v851, %v25
  %v856 = vmin.f32 %v852, %v24
  %v857 = vmin.f32 %v853, %v25
  %v858 = vmax.f32 %v854, %v31
  %v859 = vmax.f32 %v855, %v32
  %v860 = vmin.f32 %v856, %v31
  %v861 = vmin.f32 %v857, %v32
  %v862 = vmax.f32 %v858, %v40
  %v863 = vmax.f32 %v859, %v41
  %v864 = vmin.f32 %v860, %v40
  %v865 = vmin.f32 %v861, %v41
  %v866 = vmax.f32 %v862, %v43
  %v867 = vmax.f32 %v863, %v44
  %v868 = vmin.f32 %v864, %v43
  %v869 = vmin.f32 %v865, %v44
  %v870 = vsub.f32 %v866, %v868
  %v871 = vsub.f32 %v867, %v869
  %v872 = vadd.f32 %v848, %v870
  %v873 = vadd.f32 %v849, %v871
  %v874 = vmax.f32 %v250, %v65
  %v875 = vmax.f32 %v251, %v66
  %v876 = vmin.f32 %v250, %v65
  %v877 = vmin.f32 %v251, %v66
  %v878 = vmax.f32 %v874, %v67
  %v879 = vmax.f32 %v875, %v68
  %v880 = vmin.f32 %v876, %v67
  %v881 = vmin.f32 %v877, %v68
  %v882 = vmax.f32 %v878, %v73
  %v883 = vmax.f32 %v879, %v74
  %v884 = vmin.f32 %v880, %v73
  %v885 = vmin.f32 %v881, %v74
  %v886 = vmax.f32 %v882, %v79
  %v887 = vmax.f32 %v883, %v80
  %v888 = vmin.f32 %v884, %v79
  %v889 = vmin.f32 %v885, %v80
  %v890 = vmax.f32 %v886, %v276
  %v891 = vmax.f32 %v887, %v277
  %v892 = vmin.f32 %v888, %v276
  %v893 = vmin.f32 %v889, %v277
  %v894 = vmax.f32 %v890, %v97
  %v895 = vmax.f32 %v891, %v98
  %v896 = vmin.f32 %v892, %v97
  %v897 = vmin.f32 %v893, %v98
  %v898 = vmax.f32 %v894, %v103
  %v899 = vmax.f32 %v895, %v104
  %v900 = vmin.f32 %v896, %v103
  %v901 = vmin.f32 %v897, %v104
  %v902 = vmax.f32 %v898, %v113
  %v903 = vmax.f32 %v899, %v114
  %v904 = vmin.f32 %v900, %v113
  %v905 = vmin.f32 %v901, %v114
  %v906 = vsub.f32 %v902, %v904
  %v907 = vsub.f32 %v903, %v905
  %v908 = vadd.f32 %v872, %v906
  %v909 = vadd.f32 %v873, %v907
  %v910 = vmax.f32 %v304, %v137
  %v911 = vmax.f32 %v305, %v138
  %v912 = vmin.f32 %v306, %v137
  %v913 = vmin.f32 %v307, %v138
  %v914 = vmax.f32 %v910, %v139
  %v915 = vmax.f32 %v911, %v140
  %v916 = vmin.f32 %v912, %v139
  %v917 = vmin.f32 %v913, %v140
  %v918 = vmax.f32 %v914, %v145
  %v919 = vmax.f32 %v915, %v146
  %v920 = vmin.f32 %v916, %v145
  %v921 = vmin.f32 %v917, %v146
  %v922 = vmax.f32 %v918, %v151
  %v923 = vmax.f32 %v919, %v152
  %v924 = vmin.f32 %v920, %v151
  %v925 = vmin.f32 %v921, %v152
  %v926 = vmax.f32 %v922, %v328
  %v927 = vmax.f32 %v923, %v329
  %v928 = vmin.f32 %v924, %v328
  %v929 = vmin.f32 %v925, %v329
  %v930 = vmax.f32 %v926, %v169
  %v931 = vmax.f32 %v927, %v170
  %v932 = vmin.f32 %v928, %v169
  %v933 = vmin.f32 %v929, %v170
  %v934 = vmax.f32 %v930, %v175
  %v935 = vmax.f32 %v931, %v176
  %v936 = vmin.f32 %v932, %v175
  %v937 = vmin.f32 %v933, %v176
  %v938 = vsub.f32 %v934, %v936
  %v939 = vsub.f32 %v935, %v937
  %v940 = vadd.f32 %v908, %v938
  %v941 = vadd.f32 %v909, %v939
  %v942 = vmax.f32 %v189, %v354
  %v943 = vmax.f32 %v190, %v355
  %v944 = vmin.f32 %v191, %v354
  %v945 = vmin.f32 %v192, %v355
  %v946 = vmax.f32 %v942, %v49
  %v947 = vmax.f32 %v943, %v50
  %v948 = vmin.f32 %v944, %v49
  %v949 = vmin.f32 %v945, %v50
  %v950 = vmax.f32 %v946, %v55
  %v951 = vmax.f32 %v947, %v56
  %v952 = vmin.f32 %v948, %v55
  %v953 = vmin.f32 %v949, %v56
  %v954 = vmax.f32 %v950, %v65
  %v955 = vmax.f32 %v951, %v66
  %v956 = vmin.f32 %v952, %v65
  %v957 = vmin.f32 %v953, %v66
  %v958 = vmax.f32 %v954, %v67
  %v959 = vmax.f32 %v955, %v68
  %v960 = vmin.f32 %v956, %v67
  %v961 = vmin.f32 %v957, %v68
  %v962 = vmax.f32 %v958, %v73
  %v963 = vmax.f32 %v959, %v74
  %v964 = vmin.f32 %v960, %v73
  %v965 = vmin.f32 %v961, %v74
  %v966 = vmax.f32 %v962, %v89
  %v967 = vmax.f32 %v963, %v90
  %v968 = vmin.f32 %v964, %v89
  %v969 = vmin.f32 %v965, %v90
  %v970 = vsub.f32 %v966, %v968
  %v971 = vsub.f32 %v967, %v969
  %v972 = vadd.f32 %v940, %v970
  %v973 = vadd.f32 %v941, %v971
  %v974 = vmax.f32 %v294, %v121
  %v975 = vmax.f32 %v295, %v122
  %v976 = vmin.f32 %v296, %v121
  %v977 = vmin.f32 %v297, %v122
  %v978 = vmax.f32 %v974, %v127
  %v979 = vmax.f32 %v975, %v128
  %v980 = vmin.f32 %v976, %v127
  %v981 = vmin.f32 %v977, %v128
  %v982 = vmax.f32 %v978, %v137
  %v983 = vmax.f32 %v979, %v138
  %v984 = vmin.f32 %v980, %v137
  %v985 = vmin.f32 %v981, %v138
  %v986 = vmax.f32 %v982, %v139
  %v987 = vmax.f32 %v983, %v140
  %v988 = vmin.f32 %v984, %v139
  %v989 = vmin.f32 %v985, %v140
  %v990 = vmax.f32 %v986, %v145
  %v991 = vmax.f32 %v987, %v146
  %v992 = vmin.f32 %v988, %v145
  %v993 = vmin.f32 %v989, %v146
  %v994 = vsub.f32 %v990, %v992
  %v995 = vsub.f32 %v991, %v993
  %v996 = vadd.f32 %v972, %v994
  %v997 = vadd.f32 %v973, %v995
  %v998 = vmax.f32 %v177, %v185
  %v999 = vmax.f32 %v178, %v186
  %v1000 = vmin.f32 %v179, %v185
  %v1001 = vmin.f32 %v180, %v186
  %v1002 = vmax.f32 %v998, %v193
  %v1003 = vmax.f32 %v999, %v194
  %v1004 = vmin.f32 %v1000, %v193
  %v1005 = vmin.f32 %v1001, %v194
  %v1006 = vmax.f32 %v1002, %v199
  %v1007 = vmax.f32 %v1003, %v200
  %v1008 = vmin.f32 %v1004, %v199
  %v1009 = vmin.f32 %v1005, %v200
  %v1010 = vmax.f32 %v1006, %v209
  %v1011 = vmax.f32 %v1007, %v210
  %v1012 = vmin.f32 %v1008, %v209
  %v1013 = vmin.f32 %v1009, %v210
  %v1014 = vmax.f32 %v1010, %v211
  %v1015 = vmax.f32 %v1011, %v212
  %v1016 = vmin.f32 %v1012, %v211
  %v1017 = vmin.f32 %v1013, %v212
  %v1018 = vsub.f32 %v1014, %v1016
  %v1019 = vsub.f32 %v1015, %v1017
  %v1020 = vadd.f32 %v996, %v1018
  %v1021 = vadd.f32 %v997, %v1019
  %v1022 = vmax.f32 %v217, %v55
  %v1023 = vmax.f32 %v218, %v56
  %v1024 = vmin.f32 %v217, %v55
  %v1025 = vmin.f32 %v218, %v56
  %v1026 = vmax.f32 %v1022, %v65
  %v1027 = vmax.f32 %v1023, %v66
  %v1028 = vmin.f32 %v1024, %v65
  %v1029 = vmin.f32 %v1025, %v66
  %v1030 = vmax.f32 %v1026, %v67
  %v1031 = vmax.f32 %v1027, %v68
  %v1032 = vmin.f32 %v1028, %v67
  %v1033 = vmin.f32 %v1029, %v68
  %v1034 = vmax.f32 %v1030, %v73
  %v1035 = vmax.f32 %v1031, %v74
  %v1036 = vmin.f32 %v1032, %v73
  %v1037 = vmin.f32 %v1033, %v74
  %v1038 = vmax.f32 %v1034, %v79
  %v1039 = vmax.f32 %v1035, %v80
  %v1040 = vmin.f32 %v1036, %v79
  %v1041 = vmin.f32 %v1037, %v80
  %v1042 = vmax.f32 %v1038, %v91
  %v1043 = vmax.f32 %v1039, %v92
  %v1044 = vmin.f32 %v1040, %v91
  %v1045 = vmin.f32 %v1041, %v92
  %v1046 = vmax.f32 %v1042, %v97
  %v1047 = vmax.f32 %v1043, %v98
  %v1048 = vmin.f32 %v1044, %v97
  %v1049 = vmin.f32 %v1045, %v98
  %v1050 = vmax.f32 %v1046, %v103
  %v1051 = vmax.f32 %v1047, %v104
  %v1052 = vmin.f32 %v1048, %v103
  %v1053 = vmin.f32 %v1049, %v104
  %v1054 = vsub.f32 %v1050, %v1052
  %v1055 = vsub.f32 %v1051, %v1053
  %v1056 = vadd.f32 %v1020, %v1054
  %v1057 = vadd.f32 %v1021, %v1055
  %v1058 = vmax.f32 %v117, %v127
  %v1059 = vmax.f32 %v118, %v128
  %v1060 = vmin.f32 %v119, %v127
  %v1061 = vmin.f32 %v120, %v128
  %v1062 = vmax.f32 %v1058, %v137
  %v1063 = vmax.f32 %v1059, %v138
  %v1064 = vmin.f32 %v1060, %v137
  %v1065 = vmin.f32 %v1061, %v138
  %v1066 = vmax.f32 %v1062, %v139
  %v1067 = vmax.f32 %v1063, %v140
  %v1068 = vmin.f32 %v1064, %v139
  %v1069 = vmin.f32 %v1065, %v140
  %v1070 = vmax.f32 %v1066, %v145
  %v1071 = vmax.f32 %v1067, %v146
  %v1072 = vmin.f32 %v1068, %v145
  %v1073 = vmin.f32 %v1069, %v146
  %v1074 = vmax.f32 %v1070, %v151
  %v1075 = vmax.f32 %v1071, %v152
  %v1076 = vmin.f32 %v1072, %v151
  %v1077 = vmin.f32 %v1073, %v152
  %v1078 = vmax.f32 %v1074, %v163
  %v1079 = vmax.f32 %v1075, %v164
  %v1080 = vmin.f32 %v1076, %v163
  %v1081 = vmin.f32 %v1077, %v164
  %v1082 = vmax.f32 %v1078, %v169
  %v1083 = vmax.f32 %v1079, %v170
  %v1084 = vmin.f32 %v1080, %v169
  %v1085 = vmin.f32 %v1081, %v170
  %v1086 = vsub.f32 %v1082, %v1084
  %v1087 = vsub.f32 %v1083, %v1085
  %v1088 = vadd.f32 %v1056, %v1086
  %v1089 = vadd.f32 %v1057, %v1087
  %v1090 = vmax.f32 %v630, %v199
  %v1091 = vmax.f32 %v631, %v200
  %v1092 = vmin.f32 %v632, %v199
  %v1093 = vmin.f32 %v633, %v200
  %v1094 = vmax.f32 %v1090, %v209
  %v1095 = vmax.f32 %v1091, %v210
  %v1096 = vmin.f32 %v1092, %v209
  %v1097 = vmin.f32 %v1093, %v210
  %v1098 = vmax.f32 %v1094, %v211
  %v1099 = vmax.f32 %v1095, %v212
  %v1100 = vmin.f32 %v1096, %v211
  %v1101 = vmin.f32 %v1097, %v212
  %v1102 = vmax.f32 %v1098, %v217
  %v1103 = vmax.f32 %v1099, %v218
  %v1104 = vmin.f32 %v1100, %v217
  %v1105 = vmin.f32 %v1101, %v218
  %v1106 = vmax.f32 %v1102, %v223
  %v1107 = vmax.f32 %v1103, %v224
  %v1108 = vmin.f32 %v1104, %v223
  %v1109 = vmin.f32 %v1105, %v224
  %v1110 = vmax.f32 %v1106, %v65
  %v1111 = vmax.f32 %v1107, %v66
  %v1112 = vmin.f32 %v1108, %v65
  %v1113 = vmin.f32 %v1109, %v66
  %v1114 = vsub.f32 %v1110, %v1112
  %v1115 = vsub.f32 %v1111, %v1113
  %v1116 = vadd.f32 %v1088, %v1114
  %v1117 = vadd.f32 %v1089, %v1115
  %v1118 = vmax.f32 %v278, %v97
  %v1119 = vmax.f32 %v279, %v98
  %v1120 = vmin.f32 %v280, %v97
  %v1121 = vmin.f32 %v281, %v98
  %v1122 = vmax.f32 %v1118, %v103
  %v1123 = vmax.f32 %v1119, %v104
  %v1124 = vmin.f32 %v1120, %v103
  %v1125 = vmin.f32 %v1121, %v104
  %v1126 = vmax.f32 %v1122, %v113
  %v1127 = vmax.f32 %v1123, %v114
  %v1128 = vmin.f32 %v1124, %v113
  %v1129 = vmin.f32 %v1125, %v114
  %v1130 = vmax.f32 %v1126, %v115
  %v1131 = vmax.f32 %v1127, %v116
  %v1132 = vmin.f32 %v1128, %v115
  %v1133 = vmin.f32 %v1129, %v116
  %v1134 = vmax.f32 %v1130, %v302
  %v1135 = vmax.f32 %v1131, %v303
  %v1136 = vmin.f32 %v1132, %v302
  %v1137 = vmin.f32 %v1133, %v303
  %v1138 = vsub.f32 %v1134, %v1136
  %v1139 = vsub.f32 %v1135, %v1137
  %v1140 = vadd.f32 %v1116, %v1138
  %v1141 = vadd.f32 %v1117, %v1139
  %v1142 = vmax.f32 %v153, %v328
  %v1143 = vmax.f32 %v154, %v329
  %v1144 = vmin.f32 %v155, %v328
  %v1145 = vmin.f32 %v156, %v329
  %v1146 = vmax.f32 %v1142, %v169
  %v1147 = vmax.f32 %v1143, %v170
  %v1148 = vmin.f32 %v1144, %v169
  %v1149 = vmin.f32 %v1145, %v170
  %v1150 = vmax.f32 %v1146, %v175
  %v1151 = vmax.f32 %v1147, %v176
  %v1152 = vmin.f32 %v1148, %v175
  %v1153 = vmin.f32 %v1149, %v176
  %v1154 = vmax.f32 %v1150, %v185
  %v1155 = vmax.f32 %v1151, %v186
  %v1156 = vmin.f32 %v1152, %v185
  %v1157 = vmin.f32 %v1153, %v186
  %v1158 = vmax.f32 %v1154, %v187
  %v1159 = vmax.f32 %v1155, %v188
  %v1160 = vmin.f32 %v1156, %v187
  %v1161 = vmin.f32 %v1157, %v188
  %v1162 = vsub.f32 %v1158, %v1160
  %v1163 = vsub.f32 %v1159, %v1161
  %v1164 = vadd.f32 %v1140, %v1162
  %v1165 = vadd.f32 %v1141, %v1163
  %v1166 = vmax.f32 %v354, %v209
  %v1167 = vmax.f32 %v355, %v210
  %v1168 = vmin.f32 %v354, %v209
  %v1169 = vmin.f32 %v355, %v210
  %v1170 = vmax.f32 %v1166, %v211
  %v1171 = vmax.f32 %v1167, %v212
  %v1172 = vmin.f32 %v1168, %v211
  %v1173 = vmin.f32 %v1169, %v212
  %v1174 = vmax.f32 %v1170, %v217
  %v1175 = vmax.f32 %v1171, %v218
  %v1176 = vmin.f32 %v1172, %v217
  %v1177 = vmin.f32 %v1173, %v218
  %v1178 = vmax.f32 %v1174, %v223
  %v1179 = vmax.f32 %v1175, %v224
  %v1180 = vmin.f32 %v1176, %v223
  %v1181 = vmin.f32 %v1177, %v224
  %v1182 = vmax.f32 %v1178, %v380
  %v1183 = vmax.f32 %v1179, %v381
  %v1184 = vmin.f32 %v1180, %v380
  %v1185 = vmin.f32 %v1181, %v381
  %v1186 = vmax.f32 %v1182, %v89
  %v1187 = vmax.f32 %v1183, %v90
  %v1188 = vmin.f32 %v1184, %v89
  %v1189 = vmin.f32 %v1185, %v90
  %v1190 = vmax.f32 %v1186, %v91
  %v1191 = vmax.f32 %v1187, %v92
  %v1192 = vmin.f32 %v1188, %v91
  %v1193 = vmin.f32 %v1189, %v92
  %v1194 = vmax.f32 %v1190, %v97
  %v1195 = vmax.f32 %v1191, %v98
  %v1196 = vmin.f32 %v1192, %v97
  %v1197 = vmin.f32 %v1193, %v98
  %v1198 = vsub.f32 %v1194, %v1196
  %v1199 = vsub.f32 %v1195, %v1197
  %v1200 = vadd.f32 %v1164, %v1198
  %v1201 = vadd.f32 %v1165, %v1199
  %v1202 = vmax.f32 %v578, %v121
  %v1203 = vmax.f32 %v579, %v122
  %v1204 = vmin.f32 %v580, %v121
  %v1205 = vmin.f32 %v581, %v122
  %v1206 = vmax.f32 %v1202, %v127
  %v1207 = vmax.f32 %v1203, %v128
  %v1208 = vmin.f32 %v1204, %v127
  %v1209 = vmin.f32 %v1205, %v128
  %v1210 = vmax.f32 %v1206, %v137
  %v1211 = vmax.f32 %v1207, %v138
  %v1212 = vmin.f32 %v1208, %v137
  %v1213 = vmin.f32 %v1209, %v138
  %v1214 = vmax.f32 %v1210, %v139
  %v1215 = vmax.f32 %v1211, %v140
  %v1216 = vmin.f32 %v1212, %v139
  %v1217 = vmin.f32 %v1213, %v140
  %v1218 = vmax.f32 %v1214, %v145
  %v1219 = vmax.f32 %v1215, %v146
  %v1220 = vmin.f32 %v1216, %v145
  %v1221 = vmin.f32 %v1217, %v146
  %v1222 = vmax.f32 %v1218, %v161
  %v1223 = vmax.f32 %v1219, %v162
  %v1224 = vmin.f32 %v1220, %v161
  %v1225 = vmin.f32 %v1221, %v162
  %v1226 = vmax.f32 %v1222, %v163
  %v1227 = vmax.f32 %v1223, %v164
  %v1228 = vmin.f32 %v1224, %v163
  %v1229 = vmin.f32 %v1225, %v164
  %v1230 = vsub.f32 %v1226, %v1228
  %v1231 = vsub.f32 %v1227, %v1229
  %v1232 = vadd.f32 %v1200, %v1230
  %v1233 = vadd.f32 %v1201, %v1231
  %v1234 = vmax.f32 %v474, %v193
  %v1235 = vmax.f32 %v475, %v194
  %v1236 = vmin.f32 %v476, %v193
  %v1237 = vmin.f32 %v477, %v194
  %v1238 = vmax.f32 %v1234, %v199
  %v1239 = vmax.f32 %v1235, %v200
  %v1240 = vmin.f32 %v1236, %v199
  %v1241 = vmin.f32 %v1237, %v200
  %v1242 = vmax.f32 %v1238, %v209
  %v1243 = vmax.f32 %v1239, %v210
  %v1244 = vmin.f32 %v1240, %v209
  %v1245 = vmin.f32 %v1241, %v210
  %v1246 = vmax.f32 %v1242, %v211
  %v1247 = vmax.f32 %v1243, %v212
  %v1248 = vmin.f32 %v1244, %v211
  %v1249 = vmin.f32 %v1245, %v212
  %v1250 = vmax.f32 %v1246, %v217
  %v1251 = vmax.f32 %v1247, %v218
  %v1252 = vmin.f32 %v1248, %v217
  %v1253 = vmin.f32 %v1249, %v218
  %v1254 = vmax.f32 %v1250, %v506
  %v1255 = vmax.f32 %v1251, %v507
  %v1256 = vmin.f32 %v1252, %v506
  %v1257 = vmin.f32 %v1253, %v507
  %v1258 = vsub.f32 %v1254, %v1256
  %v1259 = vsub.f32 %v1255, %v1257
  %v1260 = vadd.f32 %v1232, %v1258
  %v1261 = vadd.f32 %v1233, %v1259
  %v1262 = vmax.f32 %v512, %v522
  %v1263 = vmax.f32 %v513, %v523
  %v1264 = vmin.f32 %v512, %v522
  %v1265 = vmin.f32 %v513, %v523
  %v1266 = vmax.f32 %v1262, %v524
  %v1267 = vmax.f32 %v1263, %v525
  %v1268 = vmin.f32 %v1264, %v524
  %v1269 = vmin.f32 %v1265, %v525
  %v1270 = vmax.f32 %v1266, %v530
  %v1271 = vmax.f32 %v1267, %v531
  %v1272 = vmin.f32 %v1268, %v530
  %v1273 = vmin.f32 %v1269, %v531
  %v1274 = vmax.f32 %v1270, %v91
  %v1275 = vmax.f32 %v1271, %v92
  %v1276 = vmin.f32 %v1272, %v91
  %v1277 = vmin.f32 %v1273, %v92
  %v1278 = vmax.f32 %v1274, %v97
  %v1279 = vmax.f32 %v1275, %v98
  %v1280 = vmin.f32 %v1276, %v97
  %v1281 = vmin.f32 %v1277, %v98
  %v1282 = vmax.f32 %v1278, %v103
  %v1283 = vmax.f32 %v1279, %v104
  %v1284 = vmin.f32 %v1280, %v103
  %v1285 = vmin.f32 %v1281, %v104
  %v1286 = vmax.f32 %v1282, %v113
  %v1287 = vmax.f32 %v1283, %v114
  %v1288 = vmin.f32 %v1284, %v113
  %v1289 = vmin.f32 %v1285, %v114
  %v1290 = vmax.f32 %v1286, %v115
  %v1291 = vmax.f32 %v1287, %v116
  %v1292 = vmin.f32 %v1288, %v115
  %v1293 = vmin.f32 %v1289, %v116
  %v1294 = vsub.f32 %v1290, %v1292
  %v1295 = vsub.f32 %v1291, %v1293
  %v1296 = vadd.f32 %v1260, %v1294
  %v1297 = vadd.f32 %v1261, %v1295
  %v1298 = vmax.f32 %v602, %v151
  %v1299 = vmax.f32 %v603, %v152
  %v1300 = vmin.f32 %v604, %v151
  %v1301 = vmin.f32 %v605, %v152
  %v1302 = vmax.f32 %v1298, %v163
  %v1303 = vmax.f32 %v1299, %v164
  %v1304 = vmin.f32 %v1300, %v163
  %v1305 = vmin.f32 %v1301, %v164
  %v1306 = vmax.f32 %v1302, %v169
  %v1307 = vmax.f32 %v1303, %v170
  %v1308 = vmin.f32 %v1304, %v169
  %v1309 = vmin.f32 %v1305, %v170
  %v1310 = vmax.f32 %v1306, %v175
  %v1311 = vmax.f32 %v1307, %v176
  %v1312 = vmin.f32 %v1308, %v175
  %v1313 = vmin.f32 %v1309, %v176
  %v1314 = vmax.f32 %v1310, %v185
  %v1315 = vmax.f32 %v1311, %v186
  %v1316 = vmin.f32 %v1312, %v185
  %v1317 = vmin.f32 %v1313, %v186
  %v1318 = vsub.f32 %v1314, %v1316
  %v1319 = vsub.f32 %v1315, %v1317
  %v1320 = vadd.f32 %v1296, %v1318
  %v1321 = vadd.f32 %v1297, %v1319
  %v1322 = vmax.f32 %v187, %v199
  %v1323 = vmax.f32 %v188, %v200
  %v1324 = vmin.f32 %v187, %v199
  %v1325 = vmin.f32 %v188, %v200
  %v1326 = vmax.f32 %v1322, %v209
  %v1327 = vmax.f32 %v1323, %v210
  %v1328 = vmin.f32 %v1324, %v209
  %v1329 = vmin.f32 %v1325, %v210
  %v1330 = vmax.f32 %v1326, %v211
  %v1331 = vmax.f32 %v1327, %v212
  %v1332 = vmin.f32 %v1328, %v211
  %v1333 = vmin.f32 %v1329, %v212
  %v1334 = vmax.f32 %v1330, %v217
  %v1335 = vmax.f32 %v1331, %v218
  %v1336 = vmin.f32 %v1332, %v217
  %v1337 = vmin.f32 %v1333, %v218
  %v1338 = vmax.f32 %v1334, %v223
  %v1339 = vmax.f32 %v1335, %v224
  %v1340 = vmin.f32 %v1336, %v223
  %v1341 = vmin.f32 %v1337, %v224
  %v1342 = vmax.f32 %v1338, %v512
  %v1343 = vmax.f32 %v1339, %v513
  %v1344 = vmin.f32 %v1340, %v512
  %v1345 = vmin.f32 %v1341, %v513
  %v1346 = vmax.f32 %v1342, %v522
  %v1347 = vmax.f32 %v1343, %v523
  %v1348 = vmin.f32 %v1344, %v522
  %v1349 = vmin.f32 %v1345, %v523
  %v1350 = vmax.f32 %v1346, %v524
  %v1351 = vmax.f32 %v1347, %v525
  %v1352 = vmin.f32 %v1348, %v524
  %v1353 = vmin.f32 %v1349, %v525
  %v1354 = vsub.f32 %v1350, %v1352
  %v1355 = vsub.f32 %v1351, %v1353
  %v1356 = vadd.f32 %v1320, %v1354
  %v1357 = vadd.f32 %v1321, %v1355
  %v1358 = vmax.f32 %v530, %v536
  %v1359 = vmax.f32 %v531, %v537
  %v1360 = vmin.f32 %v530, %v536
  %v1361 = vmin.f32 %v531, %v537
  %v1362 = vmax.f32 %v1358, %v97
  %v1363 = vmax.f32 %v1359, %v98
  %v1364 = vmin.f32 %v1360, %v97
  %v1365 = vmin.f32 %v1361, %v98
  %v1366 = vmax.f32 %v1362, %v103
  %v1367 = vmax.f32 %v1363, %v104
  %v1368 = vmin.f32 %v1364, %v103
  %v1369 = vmin.f32 %v1365, %v104
  %v1370 = vmax.f32 %v1366, %v113
  %v1371 = vmax.f32 %v1367, %v114
  %v1372 = vmin.f32 %v1368, %v113
  %v1373 = vmin.f32 %v1369, %v114
  %v1374 = vmax.f32 %v1370, %v115
  %v1375 = vmax.f32 %v1371, %v116
  %v1376 = vmin.f32 %v1372, %v115
  %v1377 = vmin.f32 %v1373, %v116
  %v1378 = vmax.f32 %v1374, %v302
  %v1379 = vmax.f32 %v1375, %v303
  %v1380 = vmin.f32 %v1376, %v302
  %v1381 = vmin.f32 %v1377, %v303
  %v1382 = vmax.f32 %v1378, %v137
  %v1383 = vmax.f32 %v1379, %v138
  %v1384 = vmin.f32 %v1380, %v137
  %v1385 = vmin.f32 %v1381, %v138
  %v1386 = vmax.f32 %v1382, %v139
  %v1387 = vmax.f32 %v1383, %v140
  %v1388 = vmin.f32 %v1384, %v139
  %v1389 = vmin.f32 %v1385, %v140
  %v1390 = vsub.f32 %v1386, %v1388
  %v1391 = vsub.f32 %v1387, %v1389
  %v1392 = vadd.f32 %v1356, %v1390
  %v1393 = vadd.f32 %v1357, %v1391
  %v1394 = vmax.f32 %v454, %v328
  %v1395 = vmax.f32 %v455, %v329
  %v1396 = vmin.f32 %v456, %v328
  %v1397 = vmin.f32 %v457, %v329
  %v1398 = vmax.f32 %v1394, %v169
  %v1399 = vmax.f32 %v1395, %v170
  %v1400 = vmin.f32 %v1396, %v169
  %v1401 = vmin.f32 %v1397, %v170
  %v1402 = vmax.f32 %v1398, %v175
  %v1403 = vmax.f32 %v1399, %v176
  %v1404 = vmin.f32 %v1400, %v175
  %v1405 = vmin.f32 %v1401, %v176
  %v1406 = vmax.f32 %v1402, %v185
  %v1407 = vmax.f32 %v1403, %v186
  %v1408 = vmin.f32 %v1404, %v185
  %v1409 = vmin.f32 %v1405, %v186
  %v1410 = vmax.f32 %v1406, %v187
  %v1411 = vmax.f32 %v1407, %v188
  %v1412 = vmin.f32 %v1408, %v187
  %v1413 = vmin.f32 %v1409, %v188
  %v1414 = vmax.f32 %v1410, %v354
  %v1415 = vmax.f32 %v1411, %v355
  %v1416 = vmin.f32 %v1412, %v354
  %v1417 = vmin.f32 %v1413, %v355
  %v1418 = vmax.f32 %v1414, %v209
  %v1419 = vmax.f32 %v1415, %v210
  %v1420 = vmin.f32 %v1416, %v209
  %v1421 = vmin.f32 %v1417, %v210
  %v1422 = vsub.f32 %v1418, %v1420
  %v1423 = vsub.f32 %v1419, %v1421
  %v1424 = vadd.f32 %v1392, %v1422
  %v1425 = vadd.f32 %v1393, %v1423
  %v1426 = vmax.f32 %v382, %v522
  %v1427 = vmax.f32 %v383, %v523
  %v1428 = vmin.f32 %v384, %v522
  %v1429 = vmin.f32 %v385, %v523
  %v1430 = vmax.f32 %v1426, %v524
  %v1431 = vmax.f32 %v1427, %v525
  %v1432 = vmin.f32 %v1428, %v524
  %v1433 = vmin.f32 %v1429, %v525
  %v1434 = vmax.f32 %v1430, %v530
  %v1435 = vmax.f32 %v1431, %v531
  %v1436 = vmin.f32 %v1432, %v530
  %v1437 = vmin.f32 %v1433, %v531
  %v1438 = vmax.f32 %v1434, %v536
  %v1439 = vmax.f32 %v1435, %v537
  %v1440 = vmin.f32 %v1436, %v536
  %v1441 = vmin.f32 %v1437, %v537
  %v1442 = vmax.f32 %v1438, %v682
  %v1443 = vmax.f32 %v1439, %v683
  %v1444 = vmin.f32 %v1440, %v682
  %v1445 = vmin.f32 %v1441, %v683
  %v1446 = vsub.f32 %v1442, %v1444
  %v1447 = vsub.f32 %v1443, %v1445
  %v1448 = vadd.f32 %v1424, %v1446
  %v1449 = vadd.f32 %v1425, %v1447
  %v1450 = vmul.f32 %v1448, 2.3333333
  %v1451 = vmul.f32 %v1449, 2.3333333
  %v1452 = vadd.f32 %v1450, 25.0
  %v1453 = vadd.f32 %v1451, 25.0
  %v1454 = vlog2.pop %v1452
  %v1455 = vmul.f32 %v1454, 0.6931472
  %v1456 = vlog2.pop %v1453
  %v1457 = vmul.f32 %v1456, 0.6931472
  %v1458 = vadd.f32 %v697, %v1455
  %v1459 = vadd.f32 %v699, %v1457
  %v1460 = vmul.f32 %v1458, 0.5
  %v1461 = vmul.f32 %v1459, 0.5
  %v1462 = vadd.f32 %v1460, %v139
  %v1463 = vadd.f32 %v1461, %v140
  %v1464 = vld [vmem:[%s1] sm:$0xff]
  %v1465 = vld [vmem:[%s1 + $0x8] sm:$0xff]
  %v1466 = vld [vmem:[%s1 + $0x10] sm:$0xff]
  %v1467 = vld [vmem:[%s1 + $0x18] sm:$0xff]
  %v1468 = vld [vmem:[%s1 + $0x20] sm:$0xff]
  %v1469 = vld [vmem:[%s1 + $0x28] sm:$0xff]
  %v1470 = vld [vmem:[%s1 + $0x30] sm:$0xff]
  %v1471 = vld [vmem:[%s1 + $0x38] sm:$0xff]
  %v1472 = vld [vmem:[%s1 + $0x40] sm:$0xff]
  %v1473 = vld [vmem:[%s1 + $0x48] sm:$0xff]
  %v1474 = vld [vmem:[%s1 + $0x50] sm:$0xff]
  %v1475 = vld [vmem:[%s1 + $0x58] sm:$0xff]
  %v1476 = vld [vmem:[%s1 + $0x60] sm:$0xff]
  %v1477 = vld [vmem:[%s1 + $0x68] sm:$0xff]
  %v1478 = vld [vmem:[%s1 + $0x70] sm:$0xff]
  %v1479 = vld [vmem:[%s1 + $0x78] sm:$0xff]
  %v1480 = vld [vmem:[%s2] sm:$0x1]
  %v1482 = vlaneseq
  %v1483 = vshrl.u32 %v1482, 7
  %v1484 = vsub.s32 0, %v1483
  %v1485 = vrot.slane %v1480, %v1484
  %1487 = vmatprep.subr.mxu0 0.0
  %v1488 = vand.u32 %v1464, 4294901760
  %1489 = vmatpush1.msra.mxu0 %v1488
  %1490 = vmatprep.subr.mxu0 0.0
  %v1491 = vand.u32 %v1465, 4294901760
  %1492 = vmatpush1.msra.mxu0 %v1491
  %1493 = vmatprep.subr.mxu0 0.0
  %v1494 = vand.u32 %v1466, 4294901760
  %1495 = vmatpush1.msra.mxu0 %v1494
  %1496 = vmatprep.subr.mxu0 0.0
  %v1497 = vand.u32 %v1467, 4294901760
  %1498 = vmatpush1.msra.mxu0 %v1497
  %1499 = vmatprep.subr.mxu0 0.0
  %v1500 = vand.u32 %v1468, 4294901760
  %1501 = vmatpush1.msra.mxu0 %v1500
  %1502 = vmatprep.subr.mxu0 0.0
  %v1503 = vand.u32 %v1469, 4294901760
  %1504 = vmatpush1.msra.mxu0 %v1503
  %1505 = vmatprep.subr.mxu0 0.0
  %v1506 = vand.u32 %v1470, 4294901760
  %1507 = vmatpush1.msra.mxu0 %v1506
  %1508 = vmatprep.subr.mxu0 0.0
  %v1509 = vand.u32 %v1471, 4294901760
  %1510 = vmatpush1.msra.mxu0 %v1509
  %1511 = vmatprep.subr.mxu0 0.0
  %v1512 = vand.u32 %v1472, 4294901760
  %1513 = vmatpush1.msra.mxu0 %v1512
  %1514 = vmatprep.subr.mxu0 0.0
  %v1515 = vand.u32 %v1473, 4294901760
  %1516 = vmatpush1.msra.mxu0 %v1515
  %1517 = vmatprep.subr.mxu0 0.0
  %v1518 = vand.u32 %v1474, 4294901760
  %1519 = vmatpush1.msra.mxu0 %v1518
  %1520 = vmatprep.subr.mxu0 0.0
  %v1521 = vand.u32 %v1475, 4294901760
  %1522 = vmatpush1.msra.mxu0 %v1521
  %1523 = vmatprep.subr.mxu0 0.0
  %v1524 = vand.u32 %v1476, 4294901760
  %1525 = vmatpush1.msra.mxu0 %v1524
  %1526 = vmatprep.subr.mxu0 0.0
  %v1527 = vand.u32 %v1477, 4294901760
  %1528 = vmatpush1.msra.mxu0 %v1527
  %1529 = vmatprep.subr.mxu0 0.0
  %v1530 = vand.u32 %v1478, 4294901760
  %1531 = vmatpush1.msra.mxu0 %v1530
  %1532 = vmatprep.subr.mxu0 0.0
  %v1533 = vand.u32 %v1479, 4294901760
  %1534 = vmatpush1.msra.mxu0 %v1533
  %1535 = vmatprep.subr.mxu0 0.0
  %1536 = vmatpush1.msra.mxu0 0.0
  %1537 = vmatprep.subr.mxu0 0.0
  %1538 = vmatpush1.msra.mxu0 0.0
  %1539 = vmatprep.subr.mxu0 0.0
  %1540 = vmatpush1.msra.mxu0 0.0
  %1541 = vmatprep.subr.mxu0 0.0
  %1542 = vmatpush1.msra.mxu0 0.0
  %1543 = vmatprep.subr.mxu0 0.0
  %1544 = vmatpush1.msra.mxu0 0.0
  %1545 = vmatprep.subr.mxu0 0.0
  %1546 = vmatpush1.msra.mxu0 0.0
  %1547 = vmatprep.subr.mxu0 0.0
  %1548 = vmatpush1.msra.mxu0 0.0
  %1549 = vmatprep.subr.mxu0 0.0
  %1550 = vmatpush1.msra.mxu0 0.0
  %1551 = vmatprep.subr.mxu0 0.0
  %1552 = vmatpush1.msra.mxu0 0.0
  %1553 = vmatprep.subr.mxu0 0.0
  %1554 = vmatpush1.msra.mxu0 0.0
  %1555 = vmatprep.subr.mxu0 0.0
  %1556 = vmatpush1.msra.mxu0 0.0
  %1557 = vmatprep.subr.mxu0 0.0
  %1558 = vmatpush1.msra.mxu0 0.0
  %1559 = vmatprep.subr.mxu0 0.0
  %1560 = vmatpush1.msra.mxu0 0.0
  %1561 = vmatprep.subr.mxu0 0.0
  %1562 = vmatpush1.msra.mxu0 0.0
  %1563 = vmatprep.subr.mxu0 0.0
  %1564 = vmatpush1.msra.mxu0 0.0
  %1565 = vmatprep.subr.mxu0 0.0
  %1566 = vmatpush1.msra.mxu0 0.0
  %1567 = vmatprep.mubr.f32.mxu0 0.0
  %v1568 = vand.u32 %v1462, 4294901760
  %v1569 = vsub.f32 %v1462, %v1568
  %v1570 = vand.u32 %v1569, 4294901760
  %v1571 = vsub.f32 %v1569, %v1570
  %v1572 = vand.u32 %v1571, 4294901760
  %1573 = vmatmul.mubr.f32.gmra.mrb[0].mxu0 %v1572
  %v1574 = vpop.f32.mrb[0].mxu0
  %v1575 = vadd.f32 %v1485, %v1574
  %v1576 = vpop.f32.mrb[0].mxu0
  %1577 = vmatprep.mubr.f32.mxu0 0.0
  %v1578 = vand.u32 %v1463, 4294901760
  %v1579 = vsub.f32 %v1463, %v1578
  %v1580 = vand.u32 %v1579, 4294901760
  %v1581 = vsub.f32 %v1579, %v1580
  %v1582 = vand.u32 %v1581, 4294901760
  %1583 = vmatmul.mubr.f32.gmra.mrb[0].mxu0 %v1582
  %v1584 = vpop.f32.mrb[0].mxu0
  %v1585 = vadd.f32 %v1485, %v1584
  %v1586 = vpop.f32.mrb[0].mxu0
  %1587 = vdwg.mxu0
  %1588 = vmatprep.subr.mxu0 0.0
  %v1589 = vand.u32 %v1464, 4294901760
  %v1590 = vsub.f32 %v1464, %v1589
  %v1591 = vand.u32 %v1590, 4294901760
  %v1592 = vsub.f32 %v1590, %v1591
  %v1593 = vand.u32 %v1592, 4294901760
  %1594 = vmatpush1.msra.mxu0 %v1593
  %1595 = vmatprep.subr.mxu0 0.0
  %v1596 = vand.u32 %v1465, 4294901760
  %v1597 = vsub.f32 %v1465, %v1596
  %v1598 = vand.u32 %v1597, 4294901760
  %v1599 = vsub.f32 %v1597, %v1598
  %v1600 = vand.u32 %v1599, 4294901760
  %1601 = vmatpush1.msra.mxu0 %v1600
  %1602 = vmatprep.subr.mxu0 0.0
  %v1603 = vand.u32 %v1466, 4294901760
  %v1604 = vsub.f32 %v1466, %v1603
  %v1605 = vand.u32 %v1604, 4294901760
  %v1606 = vsub.f32 %v1604, %v1605
  %v1607 = vand.u32 %v1606, 4294901760
  %1608 = vmatpush1.msra.mxu0 %v1607
  %1609 = vmatprep.subr.mxu0 0.0
  %v1610 = vand.u32 %v1467, 4294901760
  %v1611 = vsub.f32 %v1467, %v1610
  %v1612 = vand.u32 %v1611, 4294901760
  %v1613 = vsub.f32 %v1611, %v1612
  %v1614 = vand.u32 %v1613, 4294901760
  %1615 = vmatpush1.msra.mxu0 %v1614
  %1616 = vmatprep.subr.mxu0 0.0
  %v1617 = vand.u32 %v1468, 4294901760
  %v1618 = vsub.f32 %v1468, %v1617
  %v1619 = vand.u32 %v1618, 4294901760
  %v1620 = vsub.f32 %v1618, %v1619
  %v1621 = vand.u32 %v1620, 4294901760
  %1622 = vmatpush1.msra.mxu0 %v1621
  %1623 = vmatprep.subr.mxu0 0.0
  %v1624 = vand.u32 %v1469, 4294901760
  %v1625 = vsub.f32 %v1469, %v1624
  %v1626 = vand.u32 %v1625, 4294901760
  %v1627 = vsub.f32 %v1625, %v1626
  %v1628 = vand.u32 %v1627, 4294901760
  %1629 = vmatpush1.msra.mxu0 %v1628
  %1630 = vmatprep.subr.mxu0 0.0
  %v1631 = vand.u32 %v1470, 4294901760
  %v1632 = vsub.f32 %v1470, %v1631
  %v1633 = vand.u32 %v1632, 4294901760
  %v1634 = vsub.f32 %v1632, %v1633
  %v1635 = vand.u32 %v1634, 4294901760
  %1636 = vmatpush1.msra.mxu0 %v1635
  %1637 = vmatprep.subr.mxu0 0.0
  %v1638 = vand.u32 %v1471, 4294901760
  %v1639 = vsub.f32 %v1471, %v1638
  %v1640 = vand.u32 %v1639, 4294901760
  %v1641 = vsub.f32 %v1639, %v1640
  %v1642 = vand.u32 %v1641, 4294901760
  %1643 = vmatpush1.msra.mxu0 %v1642
  %1644 = vmatprep.subr.mxu0 0.0
  %v1645 = vand.u32 %v1472, 4294901760
  %v1646 = vsub.f32 %v1472, %v1645
  %v1647 = vand.u32 %v1646, 4294901760
  %v1648 = vsub.f32 %v1646, %v1647
  %v1649 = vand.u32 %v1648, 4294901760
  %1650 = vmatpush1.msra.mxu0 %v1649
  %1651 = vmatprep.subr.mxu0 0.0
  %v1652 = vand.u32 %v1473, 4294901760
  %v1653 = vsub.f32 %v1473, %v1652
  %v1654 = vand.u32 %v1653, 4294901760
  %v1655 = vsub.f32 %v1653, %v1654
  %v1656 = vand.u32 %v1655, 4294901760
  %1657 = vmatpush1.msra.mxu0 %v1656
  %1658 = vmatprep.subr.mxu0 0.0
  %v1659 = vand.u32 %v1474, 4294901760
  %v1660 = vsub.f32 %v1474, %v1659
  %v1661 = vand.u32 %v1660, 4294901760
  %v1662 = vsub.f32 %v1660, %v1661
  %v1663 = vand.u32 %v1662, 4294901760
  %1664 = vmatpush1.msra.mxu0 %v1663
  %1665 = vmatprep.subr.mxu0 0.0
  %v1666 = vand.u32 %v1475, 4294901760
  %v1667 = vsub.f32 %v1475, %v1666
  %v1668 = vand.u32 %v1667, 4294901760
  %v1669 = vsub.f32 %v1667, %v1668
  %v1670 = vand.u32 %v1669, 4294901760
  %1671 = vmatpush1.msra.mxu0 %v1670
  %1672 = vmatprep.subr.mxu0 0.0
  %v1673 = vand.u32 %v1476, 4294901760
  %v1674 = vsub.f32 %v1476, %v1673
  %v1675 = vand.u32 %v1674, 4294901760
  %v1676 = vsub.f32 %v1674, %v1675
  %v1677 = vand.u32 %v1676, 4294901760
  %1678 = vmatpush1.msra.mxu0 %v1677
  %1679 = vmatprep.subr.mxu0 0.0
  %v1680 = vand.u32 %v1477, 4294901760
  %v1681 = vsub.f32 %v1477, %v1680
  %v1682 = vand.u32 %v1681, 4294901760
  %v1683 = vsub.f32 %v1681, %v1682
  %v1684 = vand.u32 %v1683, 4294901760
  %1685 = vmatpush1.msra.mxu0 %v1684
  %1686 = vmatprep.subr.mxu0 0.0
  %v1687 = vand.u32 %v1478, 4294901760
  %v1688 = vsub.f32 %v1478, %v1687
  %v1689 = vand.u32 %v1688, 4294901760
  %v1690 = vsub.f32 %v1688, %v1689
  %v1691 = vand.u32 %v1690, 4294901760
  %1692 = vmatpush1.msra.mxu0 %v1691
  %1693 = vmatprep.subr.mxu0 0.0
  %v1694 = vand.u32 %v1479, 4294901760
  %v1695 = vsub.f32 %v1479, %v1694
  %v1696 = vand.u32 %v1695, 4294901760
  %v1697 = vsub.f32 %v1695, %v1696
  %v1698 = vand.u32 %v1697, 4294901760
  %1699 = vmatpush1.msra.mxu0 %v1698
  %1700 = vmatprep.subr.mxu0 0.0
  %1701 = vmatpush1.msra.mxu0 0.0
  %1702 = vmatprep.subr.mxu0 0.0
  %1703 = vmatpush1.msra.mxu0 0.0
  %1704 = vmatprep.subr.mxu0 0.0
  %1705 = vmatpush1.msra.mxu0 0.0
  %1706 = vmatprep.subr.mxu0 0.0
  %1707 = vmatpush1.msra.mxu0 0.0
  %1708 = vmatprep.subr.mxu0 0.0
  %1709 = vmatpush1.msra.mxu0 0.0
  %1710 = vmatprep.subr.mxu0 0.0
  %1711 = vmatpush1.msra.mxu0 0.0
  %1712 = vmatprep.subr.mxu0 0.0
  %1713 = vmatpush1.msra.mxu0 0.0
  %1714 = vmatprep.subr.mxu0 0.0
  %1715 = vmatpush1.msra.mxu0 0.0
  %1716 = vmatprep.subr.mxu0 0.0
  %1717 = vmatpush1.msra.mxu0 0.0
  %1718 = vmatprep.subr.mxu0 0.0
  %1719 = vmatpush1.msra.mxu0 0.0
  %1720 = vmatprep.subr.mxu0 0.0
  %1721 = vmatpush1.msra.mxu0 0.0
  %1722 = vmatprep.subr.mxu0 0.0
  %1723 = vmatpush1.msra.mxu0 0.0
  %1724 = vmatprep.subr.mxu0 0.0
  %1725 = vmatpush1.msra.mxu0 0.0
  %1726 = vmatprep.subr.mxu0 0.0
  %1727 = vmatpush1.msra.mxu0 0.0
  %1728 = vmatprep.subr.mxu0 0.0
  %1729 = vmatpush1.msra.mxu0 0.0
  %1730 = vmatprep.subr.mxu0 0.0
  %1731 = vmatpush1.msra.mxu0 0.0
  %1732 = vmatprep.mubr.f32.mxu0 0.0
  %v1733 = vand.u32 %v1462, 4294901760
  %1734 = vmatmul.mubr.f32.gmra.mrb[0].mxu0 %v1733
  %v1735 = vpop.f32.mrb[0].mxu0
  %v1736 = vadd.f32 %v1575, %v1735
  %v1737 = vpop.f32.mrb[0].mxu0
  %1738 = vmatprep.mubr.f32.mxu0 0.0
  %v1739 = vand.u32 %v1463, 4294901760
  %1740 = vmatmul.mubr.f32.gmra.mrb[0].mxu0 %v1739
  %v1741 = vpop.f32.mrb[0].mxu0
  %v1742 = vadd.f32 %v1585, %v1741
  %v1743 = vpop.f32.mrb[0].mxu0
  %1744 = vdwg.mxu0
  %1745 = vmatprep.subr.mxu0 0.0
  %v1746 = vand.u32 %v1464, 4294901760
  %v1747 = vsub.f32 %v1464, %v1746
  %1748 = vmatpush1.msra.mxu0 %v1747
  %1749 = vmatprep.subr.mxu0 0.0
  %v1750 = vand.u32 %v1465, 4294901760
  %v1751 = vsub.f32 %v1465, %v1750
  %1752 = vmatpush1.msra.mxu0 %v1751
  %1753 = vmatprep.subr.mxu0 0.0
  %v1754 = vand.u32 %v1466, 4294901760
  %v1755 = vsub.f32 %v1466, %v1754
  %1756 = vmatpush1.msra.mxu0 %v1755
  %1757 = vmatprep.subr.mxu0 0.0
  %v1758 = vand.u32 %v1467, 4294901760
  %v1759 = vsub.f32 %v1467, %v1758
  %1760 = vmatpush1.msra.mxu0 %v1759
  %1761 = vmatprep.subr.mxu0 0.0
  %v1762 = vand.u32 %v1468, 4294901760
  %v1763 = vsub.f32 %v1468, %v1762
  %1764 = vmatpush1.msra.mxu0 %v1763
  %1765 = vmatprep.subr.mxu0 0.0
  %v1766 = vand.u32 %v1469, 4294901760
  %v1767 = vsub.f32 %v1469, %v1766
  %1768 = vmatpush1.msra.mxu0 %v1767
  %1769 = vmatprep.subr.mxu0 0.0
  %v1770 = vand.u32 %v1470, 4294901760
  %v1771 = vsub.f32 %v1470, %v1770
  %1772 = vmatpush1.msra.mxu0 %v1771
  %1773 = vmatprep.subr.mxu0 0.0
  %v1774 = vand.u32 %v1471, 4294901760
  %v1775 = vsub.f32 %v1471, %v1774
  %1776 = vmatpush1.msra.mxu0 %v1775
  %1777 = vmatprep.subr.mxu0 0.0
  %v1778 = vand.u32 %v1472, 4294901760
  %v1779 = vsub.f32 %v1472, %v1778
  %1780 = vmatpush1.msra.mxu0 %v1779
  %1781 = vmatprep.subr.mxu0 0.0
  %v1782 = vand.u32 %v1473, 4294901760
  %v1783 = vsub.f32 %v1473, %v1782
  %1784 = vmatpush1.msra.mxu0 %v1783
  %1785 = vmatprep.subr.mxu0 0.0
  %v1786 = vand.u32 %v1474, 4294901760
  %v1787 = vsub.f32 %v1474, %v1786
  %1788 = vmatpush1.msra.mxu0 %v1787
  %1789 = vmatprep.subr.mxu0 0.0
  %v1790 = vand.u32 %v1475, 4294901760
  %v1791 = vsub.f32 %v1475, %v1790
  %1792 = vmatpush1.msra.mxu0 %v1791
  %1793 = vmatprep.subr.mxu0 0.0
  %v1794 = vand.u32 %v1476, 4294901760
  %v1795 = vsub.f32 %v1476, %v1794
  %1796 = vmatpush1.msra.mxu0 %v1795
  %1797 = vmatprep.subr.mxu0 0.0
  %v1798 = vand.u32 %v1477, 4294901760
  %v1799 = vsub.f32 %v1477, %v1798
  %1800 = vmatpush1.msra.mxu0 %v1799
  %1801 = vmatprep.subr.mxu0 0.0
  %v1802 = vand.u32 %v1478, 4294901760
  %v1803 = vsub.f32 %v1478, %v1802
  %1804 = vmatpush1.msra.mxu0 %v1803
  %1805 = vmatprep.subr.mxu0 0.0
  %v1806 = vand.u32 %v1479, 4294901760
  %v1807 = vsub.f32 %v1479, %v1806
  %1808 = vmatpush1.msra.mxu0 %v1807
  %1809 = vmatprep.subr.mxu0 0.0
  %1810 = vmatpush1.msra.mxu0 0.0
  %1811 = vmatprep.subr.mxu0 0.0
  %1812 = vmatpush1.msra.mxu0 0.0
  %1813 = vmatprep.subr.mxu0 0.0
  %1814 = vmatpush1.msra.mxu0 0.0
  %1815 = vmatprep.subr.mxu0 0.0
  %1816 = vmatpush1.msra.mxu0 0.0
  %1817 = vmatprep.subr.mxu0 0.0
  %1818 = vmatpush1.msra.mxu0 0.0
  %1819 = vmatprep.subr.mxu0 0.0
  %1820 = vmatpush1.msra.mxu0 0.0
  %1821 = vmatprep.subr.mxu0 0.0
  %1822 = vmatpush1.msra.mxu0 0.0
  %1823 = vmatprep.subr.mxu0 0.0
  %1824 = vmatpush1.msra.mxu0 0.0
  %1825 = vmatprep.subr.mxu0 0.0
  %1826 = vmatpush1.msra.mxu0 0.0
  %1827 = vmatprep.subr.mxu0 0.0
  %1828 = vmatpush1.msra.mxu0 0.0
  %1829 = vmatprep.subr.mxu0 0.0
  %1830 = vmatpush1.msra.mxu0 0.0
  %1831 = vmatprep.subr.mxu0 0.0
  %1832 = vmatpush1.msra.mxu0 0.0
  %1833 = vmatprep.subr.mxu0 0.0
  %1834 = vmatpush1.msra.mxu0 0.0
  %1835 = vmatprep.subr.mxu0 0.0
  %1836 = vmatpush1.msra.mxu0 0.0
  %1837 = vmatprep.subr.mxu0 0.0
  %1838 = vmatpush1.msra.mxu0 0.0
  %1839 = vmatprep.subr.mxu0 0.0
  %1840 = vmatpush1.msra.mxu0 0.0
  %1841 = vmatprep.mubr.f32.mxu0 0.0
  %v1842 = vand.u32 %v1462, 4294901760
  %v1843 = vsub.f32 %v1462, %v1842
  %1844 = vmatmul.mubr.f32.gmra.mrb[0].mxu0 %v1843
  %v1845 = vpop.f32.mrb[0].mxu0
  %v1846 = vadd.f32 %v1736, %v1845
  %v1847 = vpop.f32.mrb[0].mxu0
  %1848 = vmatprep.mubr.f32.mxu0 0.0
  %v1849 = vand.u32 %v1463, 4294901760
  %v1850 = vsub.f32 %v1463, %v1849
  %1851 = vmatmul.mubr.f32.gmra.mrb[0].mxu0 %v1850
  %v1852 = vpop.f32.mrb[0].mxu0
  %v1853 = vadd.f32 %v1742, %v1852
  %v1854 = vpop.f32.mrb[0].mxu0
  %1855 = vdwg.mxu0
  %1856 = vmatprep.subr.mxu0 0.0
  %v1857 = vand.u32 %v1464, 4294901760
  %1858 = vmatpush1.msra.mxu0 %v1857
  %1859 = vmatprep.subr.mxu0 0.0
  %v1860 = vand.u32 %v1465, 4294901760
  %1861 = vmatpush1.msra.mxu0 %v1860
  %1862 = vmatprep.subr.mxu0 0.0
  %v1863 = vand.u32 %v1466, 4294901760
  %1864 = vmatpush1.msra.mxu0 %v1863
  %1865 = vmatprep.subr.mxu0 0.0
  %v1866 = vand.u32 %v1467, 4294901760
  %1867 = vmatpush1.msra.mxu0 %v1866
  %1868 = vmatprep.subr.mxu0 0.0
  %v1869 = vand.u32 %v1468, 4294901760
  %1870 = vmatpush1.msra.mxu0 %v1869
  %1871 = vmatprep.subr.mxu0 0.0
  %v1872 = vand.u32 %v1469, 4294901760
  %1873 = vmatpush1.msra.mxu0 %v1872
  %1874 = vmatprep.subr.mxu0 0.0
  %v1875 = vand.u32 %v1470, 4294901760
  %1876 = vmatpush1.msra.mxu0 %v1875
  %1877 = vmatprep.subr.mxu0 0.0
  %v1878 = vand.u32 %v1471, 4294901760
  %1879 = vmatpush1.msra.mxu0 %v1878
  %1880 = vmatprep.subr.mxu0 0.0
  %v1881 = vand.u32 %v1472, 4294901760
  %1882 = vmatpush1.msra.mxu0 %v1881
  %1883 = vmatprep.subr.mxu0 0.0
  %v1884 = vand.u32 %v1473, 4294901760
  %1885 = vmatpush1.msra.mxu0 %v1884
  %1886 = vmatprep.subr.mxu0 0.0
  %v1887 = vand.u32 %v1474, 4294901760
  %1888 = vmatpush1.msra.mxu0 %v1887
  %1889 = vmatprep.subr.mxu0 0.0
  %v1890 = vand.u32 %v1475, 4294901760
  %1891 = vmatpush1.msra.mxu0 %v1890
  %1892 = vmatprep.subr.mxu0 0.0
  %v1893 = vand.u32 %v1476, 4294901760
  %1894 = vmatpush1.msra.mxu0 %v1893
  %1895 = vmatprep.subr.mxu0 0.0
  %v1896 = vand.u32 %v1477, 4294901760
  %1897 = vmatpush1.msra.mxu0 %v1896
  %1898 = vmatprep.subr.mxu0 0.0
  %v1899 = vand.u32 %v1478, 4294901760
  %1900 = vmatpush1.msra.mxu0 %v1899
  %1901 = vmatprep.subr.mxu0 0.0
  %v1902 = vand.u32 %v1479, 4294901760
  %1903 = vmatpush1.msra.mxu0 %v1902
  %1904 = vmatprep.subr.mxu0 0.0
  %1905 = vmatpush1.msra.mxu0 0.0
  %1906 = vmatprep.subr.mxu0 0.0
  %1907 = vmatpush1.msra.mxu0 0.0
  %1908 = vmatprep.subr.mxu0 0.0
  %1909 = vmatpush1.msra.mxu0 0.0
  %1910 = vmatprep.subr.mxu0 0.0
  %1911 = vmatpush1.msra.mxu0 0.0
  %1912 = vmatprep.subr.mxu0 0.0
  %1913 = vmatpush1.msra.mxu0 0.0
  %1914 = vmatprep.subr.mxu0 0.0
  %1915 = vmatpush1.msra.mxu0 0.0
  %1916 = vmatprep.subr.mxu0 0.0
  %1917 = vmatpush1.msra.mxu0 0.0
  %1918 = vmatprep.subr.mxu0 0.0
  %1919 = vmatpush1.msra.mxu0 0.0
  %1920 = vmatprep.subr.mxu0 0.0
  %1921 = vmatpush1.msra.mxu0 0.0
  %1922 = vmatprep.subr.mxu0 0.0
  %1923 = vmatpush1.msra.mxu0 0.0
  %1924 = vmatprep.subr.mxu0 0.0
  %1925 = vmatpush1.msra.mxu0 0.0
  %1926 = vmatprep.subr.mxu0 0.0
  %1927 = vmatpush1.msra.mxu0 0.0
  %1928 = vmatprep.subr.mxu0 0.0
  %1929 = vmatpush1.msra.mxu0 0.0
  %1930 = vmatprep.subr.mxu0 0.0
  %1931 = vmatpush1.msra.mxu0 0.0
  %1932 = vmatprep.subr.mxu0 0.0
  %1933 = vmatpush1.msra.mxu0 0.0
  %1934 = vmatprep.subr.mxu0 0.0
  %1935 = vmatpush1.msra.mxu0 0.0
  %1936 = vmatprep.mubr.f32.mxu0 0.0
  %v1937 = vand.u32 %v1462, 4294901760
  %v1938 = vsub.f32 %v1462, %v1937
  %v1939 = vand.u32 %v1938, 4294901760
  %1940 = vmatmul.mubr.f32.gmra.mrb[0].mxu0 %v1939
  %v1941 = vpop.f32.mrb[0].mxu0
  %v1942 = vadd.f32 %v1846, %v1941
  %v1943 = vpop.f32.mrb[0].mxu0
  %1944 = vmatprep.mubr.f32.mxu0 0.0
  %v1945 = vand.u32 %v1463, 4294901760
  %v1946 = vsub.f32 %v1463, %v1945
  %v1947 = vand.u32 %v1946, 4294901760
  %1948 = vmatmul.mubr.f32.gmra.mrb[0].mxu0 %v1947
  %v1949 = vpop.f32.mrb[0].mxu0
  %v1950 = vadd.f32 %v1853, %v1949
  %v1951 = vpop.f32.mrb[0].mxu0
  %1952 = vdwg.mxu0
  %1953 = vmatprep.subr.mxu0 0.0
  %v1954 = vand.u32 %v1464, 4294901760
  %v1955 = vsub.f32 %v1464, %v1954
  %v1956 = vand.u32 %v1955, 4294901760
  %1957 = vmatpush1.msra.mxu0 %v1956
  %1958 = vmatprep.subr.mxu0 0.0
  %v1959 = vand.u32 %v1465, 4294901760
  %v1960 = vsub.f32 %v1465, %v1959
  %v1961 = vand.u32 %v1960, 4294901760
  %1962 = vmatpush1.msra.mxu0 %v1961
  %1963 = vmatprep.subr.mxu0 0.0
  %v1964 = vand.u32 %v1466, 4294901760
  %v1965 = vsub.f32 %v1466, %v1964
  %v1966 = vand.u32 %v1965, 4294901760
  %1967 = vmatpush1.msra.mxu0 %v1966
  %1968 = vmatprep.subr.mxu0 0.0
  %v1969 = vand.u32 %v1467, 4294901760
  %v1970 = vsub.f32 %v1467, %v1969
  %v1971 = vand.u32 %v1970, 4294901760
  %1972 = vmatpush1.msra.mxu0 %v1971
  %1973 = vmatprep.subr.mxu0 0.0
  %v1974 = vand.u32 %v1468, 4294901760
  %v1975 = vsub.f32 %v1468, %v1974
  %v1976 = vand.u32 %v1975, 4294901760
  %1977 = vmatpush1.msra.mxu0 %v1976
  %1978 = vmatprep.subr.mxu0 0.0
  %v1979 = vand.u32 %v1469, 4294901760
  %v1980 = vsub.f32 %v1469, %v1979
  %v1981 = vand.u32 %v1980, 4294901760
  %1982 = vmatpush1.msra.mxu0 %v1981
  %1983 = vmatprep.subr.mxu0 0.0
  %v1984 = vand.u32 %v1470, 4294901760
  %v1985 = vsub.f32 %v1470, %v1984
  %v1986 = vand.u32 %v1985, 4294901760
  %1987 = vmatpush1.msra.mxu0 %v1986
  %1988 = vmatprep.subr.mxu0 0.0
  %v1989 = vand.u32 %v1471, 4294901760
  %v1990 = vsub.f32 %v1471, %v1989
  %v1991 = vand.u32 %v1990, 4294901760
  %1992 = vmatpush1.msra.mxu0 %v1991
  %1993 = vmatprep.subr.mxu0 0.0
  %v1994 = vand.u32 %v1472, 4294901760
  %v1995 = vsub.f32 %v1472, %v1994
  %v1996 = vand.u32 %v1995, 4294901760
  %1997 = vmatpush1.msra.mxu0 %v1996
  %1998 = vmatprep.subr.mxu0 0.0
  %v1999 = vand.u32 %v1473, 4294901760
  %v2000 = vsub.f32 %v1473, %v1999
  %v2001 = vand.u32 %v2000, 4294901760
  %2002 = vmatpush1.msra.mxu0 %v2001
  %2003 = vmatprep.subr.mxu0 0.0
  %v2004 = vand.u32 %v1474, 4294901760
  %v2005 = vsub.f32 %v1474, %v2004
  %v2006 = vand.u32 %v2005, 4294901760
  %2007 = vmatpush1.msra.mxu0 %v2006
  %2008 = vmatprep.subr.mxu0 0.0
  %v2009 = vand.u32 %v1475, 4294901760
  %v2010 = vsub.f32 %v1475, %v2009
  %v2011 = vand.u32 %v2010, 4294901760
  %2012 = vmatpush1.msra.mxu0 %v2011
  %2013 = vmatprep.subr.mxu0 0.0
  %v2014 = vand.u32 %v1476, 4294901760
  %v2015 = vsub.f32 %v1476, %v2014
  %v2016 = vand.u32 %v2015, 4294901760
  %2017 = vmatpush1.msra.mxu0 %v2016
  %2018 = vmatprep.subr.mxu0 0.0
  %v2019 = vand.u32 %v1477, 4294901760
  %v2020 = vsub.f32 %v1477, %v2019
  %v2021 = vand.u32 %v2020, 4294901760
  %2022 = vmatpush1.msra.mxu0 %v2021
  %2023 = vmatprep.subr.mxu0 0.0
  %v2024 = vand.u32 %v1478, 4294901760
  %v2025 = vsub.f32 %v1478, %v2024
  %v2026 = vand.u32 %v2025, 4294901760
  %2027 = vmatpush1.msra.mxu0 %v2026
  %2028 = vmatprep.subr.mxu0 0.0
  %v2029 = vand.u32 %v1479, 4294901760
  %v2030 = vsub.f32 %v1479, %v2029
  %v2031 = vand.u32 %v2030, 4294901760
  %2032 = vmatpush1.msra.mxu0 %v2031
  %2033 = vmatprep.subr.mxu0 0.0
  %2034 = vmatpush1.msra.mxu0 0.0
  %2035 = vmatprep.subr.mxu0 0.0
  %2036 = vmatpush1.msra.mxu0 0.0
  %2037 = vmatprep.subr.mxu0 0.0
  %2038 = vmatpush1.msra.mxu0 0.0
  %2039 = vmatprep.subr.mxu0 0.0
  %2040 = vmatpush1.msra.mxu0 0.0
  %2041 = vmatprep.subr.mxu0 0.0
  %2042 = vmatpush1.msra.mxu0 0.0
  %2043 = vmatprep.subr.mxu0 0.0
  %2044 = vmatpush1.msra.mxu0 0.0
  %2045 = vmatprep.subr.mxu0 0.0
  %2046 = vmatpush1.msra.mxu0 0.0
  %2047 = vmatprep.subr.mxu0 0.0
  %2048 = vmatpush1.msra.mxu0 0.0
  %2049 = vmatprep.subr.mxu0 0.0
  %2050 = vmatpush1.msra.mxu0 0.0
  %2051 = vmatprep.subr.mxu0 0.0
  %2052 = vmatpush1.msra.mxu0 0.0
  %2053 = vmatprep.subr.mxu0 0.0
  %2054 = vmatpush1.msra.mxu0 0.0
  %2055 = vmatprep.subr.mxu0 0.0
  %2056 = vmatpush1.msra.mxu0 0.0
  %2057 = vmatprep.subr.mxu0 0.0
  %2058 = vmatpush1.msra.mxu0 0.0
  %2059 = vmatprep.subr.mxu0 0.0
  %2060 = vmatpush1.msra.mxu0 0.0
  %2061 = vmatprep.subr.mxu0 0.0
  %2062 = vmatpush1.msra.mxu0 0.0
  %2063 = vmatprep.subr.mxu0 0.0
  %2064 = vmatpush1.msra.mxu0 0.0
  %2065 = vmatprep.mubr.f32.mxu0 0.0
  %v2066 = vand.u32 %v1462, 4294901760
  %2067 = vmatmul.mubr.f32.gmra.mrb[0].mxu0 %v2066
  %v2068 = vpop.f32.mrb[0].mxu0
  %v2069 = vadd.f32 %v1942, %v2068
  %v2070 = vpop.f32.mrb[0].mxu0
  %2071 = vmatprep.mubr.f32.mxu0 0.0
  %v2072 = vand.u32 %v1463, 4294901760
  %2073 = vmatmul.mubr.f32.gmra.mrb[0].mxu0 %v2072
  %v2074 = vpop.f32.mrb[0].mxu0
  %v2075 = vadd.f32 %v1950, %v2074
  %v2076 = vpop.f32.mrb[0].mxu0
  %2077 = vdwg.mxu0
  %2078 = vmatprep.subr.mxu0 0.0
  %v2079 = vand.u32 %v1464, 4294901760
  %2080 = vmatpush1.msra.mxu0 %v2079
  %2081 = vmatprep.subr.mxu0 0.0
  %v2082 = vand.u32 %v1465, 4294901760
  %2083 = vmatpush1.msra.mxu0 %v2082
  %2084 = vmatprep.subr.mxu0 0.0
  %v2085 = vand.u32 %v1466, 4294901760
  %2086 = vmatpush1.msra.mxu0 %v2085
  %2087 = vmatprep.subr.mxu0 0.0
  %v2088 = vand.u32 %v1467, 4294901760
  %2089 = vmatpush1.msra.mxu0 %v2088
  %2090 = vmatprep.subr.mxu0 0.0
  %v2091 = vand.u32 %v1468, 4294901760
  %2092 = vmatpush1.msra.mxu0 %v2091
  %2093 = vmatprep.subr.mxu0 0.0
  %v2094 = vand.u32 %v1469, 4294901760
  %2095 = vmatpush1.msra.mxu0 %v2094
  %2096 = vmatprep.subr.mxu0 0.0
  %v2097 = vand.u32 %v1470, 4294901760
  %2098 = vmatpush1.msra.mxu0 %v2097
  %2099 = vmatprep.subr.mxu0 0.0
  %v2100 = vand.u32 %v1471, 4294901760
  %2101 = vmatpush1.msra.mxu0 %v2100
  %2102 = vmatprep.subr.mxu0 0.0
  %v2103 = vand.u32 %v1472, 4294901760
  %2104 = vmatpush1.msra.mxu0 %v2103
  %2105 = vmatprep.subr.mxu0 0.0
  %v2106 = vand.u32 %v1473, 4294901760
  %2107 = vmatpush1.msra.mxu0 %v2106
  %2108 = vmatprep.subr.mxu0 0.0
  %v2109 = vand.u32 %v1474, 4294901760
  %2110 = vmatpush1.msra.mxu0 %v2109
  %2111 = vmatprep.subr.mxu0 0.0
  %v2112 = vand.u32 %v1475, 4294901760
  %2113 = vmatpush1.msra.mxu0 %v2112
  %2114 = vmatprep.subr.mxu0 0.0
  %v2115 = vand.u32 %v1476, 4294901760
  %2116 = vmatpush1.msra.mxu0 %v2115
  %2117 = vmatprep.subr.mxu0 0.0
  %v2118 = vand.u32 %v1477, 4294901760
  %2119 = vmatpush1.msra.mxu0 %v2118
  %2120 = vmatprep.subr.mxu0 0.0
  %v2121 = vand.u32 %v1478, 4294901760
  %2122 = vmatpush1.msra.mxu0 %v2121
  %2123 = vmatprep.subr.mxu0 0.0
  %v2124 = vand.u32 %v1479, 4294901760
  %2125 = vmatpush1.msra.mxu0 %v2124
  %2126 = vmatprep.subr.mxu0 0.0
  %2127 = vmatpush1.msra.mxu0 0.0
  %2128 = vmatprep.subr.mxu0 0.0
  %2129 = vmatpush1.msra.mxu0 0.0
  %2130 = vmatprep.subr.mxu0 0.0
  %2131 = vmatpush1.msra.mxu0 0.0
  %2132 = vmatprep.subr.mxu0 0.0
  %2133 = vmatpush1.msra.mxu0 0.0
  %2134 = vmatprep.subr.mxu0 0.0
  %2135 = vmatpush1.msra.mxu0 0.0
  %2136 = vmatprep.subr.mxu0 0.0
  %2137 = vmatpush1.msra.mxu0 0.0
  %2138 = vmatprep.subr.mxu0 0.0
  %2139 = vmatpush1.msra.mxu0 0.0
  %2140 = vmatprep.subr.mxu0 0.0
  %2141 = vmatpush1.msra.mxu0 0.0
  %2142 = vmatprep.subr.mxu0 0.0
  %2143 = vmatpush1.msra.mxu0 0.0
  %2144 = vmatprep.subr.mxu0 0.0
  %2145 = vmatpush1.msra.mxu0 0.0
  %2146 = vmatprep.subr.mxu0 0.0
  %2147 = vmatpush1.msra.mxu0 0.0
  %2148 = vmatprep.subr.mxu0 0.0
  %2149 = vmatpush1.msra.mxu0 0.0
  %2150 = vmatprep.subr.mxu0 0.0
  %2151 = vmatpush1.msra.mxu0 0.0
  %2152 = vmatprep.subr.mxu0 0.0
  %2153 = vmatpush1.msra.mxu0 0.0
  %2154 = vmatprep.subr.mxu0 0.0
  %2155 = vmatpush1.msra.mxu0 0.0
  %2156 = vmatprep.subr.mxu0 0.0
  %2157 = vmatpush1.msra.mxu0 0.0
  %2158 = vmatprep.mubr.f32.mxu0 0.0
  %v2159 = vand.u32 %v1462, 4294901760
  %2160 = vmatmul.mubr.f32.gmra.mrb[0].mxu0 %v2159
  %v2161 = vpop.f32.mrb[0].mxu0
  %v2162 = vadd.f32 %v2069, %v2161
  %v2163 = vpop.f32.mrb[0].mxu0
  %2164 = vmatprep.mubr.f32.mxu0 0.0
  %v2165 = vand.u32 %v1463, 4294901760
  %2166 = vmatmul.mubr.f32.gmra.mrb[0].mxu0 %v2165
  %v2167 = vpop.f32.mrb[0].mxu0
  %v2168 = vadd.f32 %v2075, %v2167
  %v2169 = vpop.f32.mrb[0].mxu0
  %2170 = vdwg.mxu0
  %2171 = vst [vmem:[%s3] sm:$0xff] %v2162
  %2172 = vst [vmem:[%s3 + $0x8] sm:$0xff] %v2168
  // Predicated region
  $region14: #{frat_piror_forward.1} parent=0 // pred_check
    _
  $region15: #{frat_piror_forward.1} parent=0 // pred_check_branch
    %2174 = sbr.rel (0) target = $region17
  $region16: #{frat_piror_forward.1} parent=0 // pred_region
    _
  $region17: #{frat_piror_forward.1} parent=0 // pred_fallthru
    _
  // Predicated region
  $region18: #{frat_piror_forward.1} parent=0 // pred_check
    _
  $region19: #{frat_piror_forward.1} parent=0 // pred_check_branch
    %2176 = sbr.rel (0) target = $region21
  $region20: #{frat_piror_forward.1} parent=0 // pred_region
    _
  $region21: #{frat_piror_forward.1} parent=0 // pred_fallthru
    _

</llo_original>
